<compile_context>
chip_gen: v6e
topology: v6e:2x2x1
jax: 0.10.0
libtpu: 0.0.40
codegen_flags: <defaults>
</compile_context>

<pallas_src>
import functools

import jax
import jax.numpy as jnp
from jax.experimental import pallas as pl
from jax.experimental.pallas import tpu as pltpu


QKV_PAD = 128   # lane-dense padded width of the fused QKV projection output
FFN_PAD = 128   # lane-dense padded width of the FFN hidden projection output


# ---------------------------------------------------------------------------
# Fused kernel: one grid step per batch element.
# ---------------------------------------------------------------------------

def _fused_bert_kernel(
        x_ref, mask_ref,                         # [1,S,H] activations, [1,1,S] mask
        emb_g_ref, emb_b_ref,                    # embedding LayerNorm params
        wqkv_ref, bqkv_ref, wo_ref, bo_ref,      # attention weights (stacked over L)
        ln1_g_ref, ln1_b_ref,
        w1_ref, b1_ref, w2_ref, b2_ref,          # FFN weights (stacked over L)
        ln2_g_ref, ln2_b_ref,
        pool_w_ref, pool_b_ref,                  # pooler
        cls_w_ref, cls_b_ref,                    # classifier head
        o_ref,                                   # [1,1,C] output probabilities
        *, num_layers, num_heads, head_dim, eps):
    S, H = x_ref.shape[1], x_ref.shape[2]
    bf16 = jnp.bfloat16

    def layernorm(y, g, b):
        # f32 statistics / affine; one cast to bf16 so activations stay bf16
        # between matmuls (MXU inputs need bf16 anyway).
        mean = jnp.mean(y, axis=-1, keepdims=True)
        var = jnp.mean(jnp.square(y - mean), axis=-1, keepdims=True)
        return ((y - mean) * jax.lax.rsqrt(var + eps) * g + b).astype(bf16)

    def mm(a_bf16, w_bf16):
        # bf16 MXU inputs, f32 accumulation.
        return jnp.dot(a_bf16, w_bf16, preferred_element_type=jnp.float32)

    add_mask = mask_ref[0]                                     # [1, S] 0 / -1e4
    x = layernorm(x_ref[0], emb_g_ref[...], emb_b_ref[...])    # [S, H] bf16

    for l in range(num_layers):
        # --- self-attention: fused QKV projection, heads batched in one einsum ---
        qkv = mm(x, wqkv_ref[l]) + bqkv_ref[l]                 # [S, QKV_PAD] f32
        q = qkv[:, 0:H].reshape(S, num_heads, head_dim)
        k = qkv[:, H:2 * H].reshape(S, num_heads, head_dim)
        v = qkv[:, 2 * H:3 * H].reshape(S, num_heads, head_dim)
        qh = jnp.swapaxes(q, 0, 1).astype(bf16)                # [nH, S, dH]
        kh = jnp.swapaxes(k, 0, 1).astype(bf16)
        vh = jnp.swapaxes(v, 0, 1).astype(bf16)

        # 1/sqrt(head_dim) is pre-folded into the Q columns of wqkv at init.
        s = jnp.einsum('hsd,htd->hst', qh, kh,
                       preferred_element_type=jnp.float32) + add_mask   # [nH,S,S]
        s = s - jnp.max(s, axis=-1, keepdims=True)
        p = jnp.exp(s)
        p = p * pl.reciprocal(jnp.sum(p, axis=-1, keepdims=True), approx=True)
        ctx = jnp.einsum('hst,htd->hsd', p.astype(bf16), vh,
                         preferred_element_type=jnp.float32)            # [nH,S,dH]
        ctx = jnp.swapaxes(ctx, 0, 1).reshape(S, H).astype(bf16)        # [S, H]

        attn_out = mm(ctx, wo_ref[l]) + bo_ref[l]                       # [S, H] f32
        x = layernorm(x + attn_out, ln1_g_ref[l], ln1_b_ref[l])         # residual+LN

        # --- FFN with tanh-approx GELU (EUP path) ---
        hfc = mm(x, w1_ref[l]) + b1_ref[l]                              # [S, FFN_PAD]
        c = jnp.float32(0.7978845608028654)                             # sqrt(2/pi)
        hfc = 0.5 * hfc * (1.0 + jnp.tanh(c * (hfc + 0.044715 * hfc * hfc * hfc)))
        ffn_out = mm(hfc.astype(bf16), w2_ref[l]) + b2_ref[l]           # [S, H]
        x = layernorm(x + ffn_out, ln2_g_ref[l], ln2_b_ref[l])          # residual+LN

    # --- BERT pooler: first token -> Linear -> tanh ---
    pooled = jnp.tanh(mm(x[0:1, :], pool_w_ref[...]) + pool_b_ref[...])  # [1, H]

    # --- BertLMHead: dropout(p=0.5) identity in eval; fc + exact softmax(dim=1) ---
    # TODO(synk): training-mode dropout not implemented (inference semantics).
    logits = mm(pooled.astype(bf16), cls_w_ref[...]) + cls_b_ref[...]    # [1, C]
    m = jnp.max(logits, axis=-1, keepdims=True)
    e = jnp.exp(logits - m)
    # TODO(synk): C=2 output is a 2-lane masked store; pad/pack if C grows.
    o_ref[0] = e / jnp.sum(e, axis=-1, keepdims=True)


# ---------------------------------------------------------------------------
# Synthetic-BERT parameters (deterministic init, fused+padded QKV, stacked layers)
# ---------------------------------------------------------------------------

def init_params(key, *, vocab=50, hidden=32, num_layers=2, num_heads=4,
                ffn=64, max_pos=8, type_vocab=2, num_classes=2):
    def nrm(k, shape, scale=0.02):
        return jax.random.normal(k, shape, jnp.float32) * scale

    H, F, L = hidden, ffn, num_layers
    dH = H // num_heads
    assert 3 * H <= QKV_PAD and F <= FFN_PAD
    q_scale = 1.0 / float(dH) ** 0.5
    keys = iter(jax.random.split(key, 5 + 6 * L))

    wqkv, wo, w1, w2 = [], [], [], []
    for _ in range(L):
        # Fold the 1/sqrt(head_dim) attention scale into the Q projection.
        # (Q bias is zero here; a nonzero Q bias would be scaled identically.)
        wq = nrm(next(keys), (H, H)) * q_scale
        wk = nrm(next(keys), (H, H))
        wv = nrm(next(keys), (H, H))
        w = jnp.concatenate([wq, wk, wv], axis=1)                      # [H, 3H]
        wqkv.append(jnp.pad(w, ((0, 0), (0, QKV_PAD - 3 * H))))        # lane-dense
        wo.append(nrm(next(keys), (H, H)))
        w1.append(jnp.pad(nrm(next(keys), (H, F)), ((0, 0), (0, FFN_PAD - F))))
        w2.append(jnp.pad(nrm(next(keys), (F, H)), ((0, FFN_PAD - F), (0, 0))))

    bf16 = jnp.bfloat16
    return {
        "num_heads": num_heads,
        "num_layers": L,
        "word_emb": nrm(next(keys), (vocab, H)),
        "pos_emb": nrm(next(keys), (max_pos, H)),
        "type_emb": nrm(next(keys), (type_vocab, H)),
        "emb_ln_g": jnp.ones((1, H), jnp.float32),
        "emb_ln_b": jnp.zeros((1, H), jnp.float32),
        # stacked per-layer weights; bf16 halves weight DMA and feeds the MXU.
        "wqkv": jnp.stack(wqkv).astype(bf16),                    # [L, H, QKV_PAD]
        "bqkv": jnp.zeros((L, 1, QKV_PAD), jnp.float32),
        "wo": jnp.stack(wo).astype(bf16),                        # [L, H, H]
        "bo": jnp.zeros((L, 1, H), jnp.float32),
        "ln1_g": jnp.ones((L, 1, H), jnp.float32),
        "ln1_b": jnp.zeros((L, 1, H), jnp.float32),
        "w1": jnp.stack(w1).astype(bf16),                        # [L, H, FFN_PAD]
        "b1": jnp.zeros((L, 1, FFN_PAD), jnp.float32),
        "w2": jnp.stack(w2).astype(bf16),                        # [L, FFN_PAD, H]
        "b2": jnp.zeros((L, 1, H), jnp.float32),
        "ln2_g": jnp.ones((L, 1, H), jnp.float32),
        "ln2_b": jnp.zeros((L, 1, H), jnp.float32),
        "pool_w": nrm(next(keys), (H, H)).astype(bf16),
        "pool_b": jnp.zeros((1, H), jnp.float32),
        "cls_w": nrm(next(keys), (H, num_classes)).astype(bf16),
        "cls_b": jnp.zeros((1, num_classes), jnp.float32),
    }


# ---------------------------------------------------------------------------
# Forward pass = BertSentimentClassifier.forward(texts)
# ---------------------------------------------------------------------------

def bert_sentiment_forward(params, input_ids, attention_mask, token_type_ids):
    B, S = input_ids.shape
    H = params["word_emb"].shape[1]
    C = params["cls_b"].shape[1]
    nH = params["num_heads"]
    L = params["num_layers"]
    dH = H // nH

    # Embedding row gathers stay in XLA (one small fused gather/add chain).
    # TODO(synk): pull the gather in-kernel via PrefetchScalarGridSpec row DMA.
    pos_ids = jnp.arange(S, dtype=jnp.int32)[None, :]
    x_emb = (params["word_emb"][input_ids]
             + params["pos_emb"][pos_ids]
             + params["type_emb"][token_type_ids]).astype(jnp.float32)   # [B,S,H]

    # additive attention mask over keys: 0 for real tokens, -1e4 for padding.
    add_mask = ((1.0 - attention_mask.astype(jnp.float32)) * -10000.0)[:, None, :]

    kernel = functools.partial(
        _fused_bert_kernel,
        num_layers=L, num_heads=nH, head_dim=dH, eps=1e-12)

    def const_spec(a):
        return pl.BlockSpec(a.shape, lambda b, n=a.ndim: (0,) * n)

    weights = [
        params["emb_ln_g"], params["emb_ln_b"],
        params["wqkv"], params["bqkv"], params["wo"], params["bo"],
        params["ln1_g"], params["ln1_b"],
        params["w1"], params["b1"], params["w2"], params["b2"],
        params["ln2_g"], params["ln2_b"],
        params["pool_w"], params["pool_b"],
        params["cls_w"], params["cls_b"],
    ]

    # grid=(B,) "parallel": on v7x each TensorCore takes one batch element.
    # TODO(synk): on single-TC chips (v5e/v6e) fold batch into one [B*S, H]
    #             slab per grid step to remove per-step overhead.
    # TODO(synk): at real BERT sizes add a layer grid axis ("arbitrary") and
    #             stream per-layer weights instead of keeping all L resident.
    probs = pl.pallas_call(
        kernel,
        out_shape=jax.ShapeDtypeStruct((B, 1, C), jnp.float32),
        grid_spec=pltpu.PrefetchScalarGridSpec(
            num_scalar_prefetch=0,
            grid=(B,),
            in_specs=[pl.BlockSpec((1, S, H), lambda b: (b, 0, 0)),
                      pl.BlockSpec((1, 1, S), lambda b: (b, 0, 0))]
                     + [const_spec(w) for w in weights],
            out_specs=pl.BlockSpec((1, 1, C), lambda b: (b, 0, 0))),
        compiler_params=pltpu.CompilerParams(
            dimension_semantics=("parallel",),
            vmem_limit_bytes=32 * 1024 * 1024),
    )(x_emb, add_mask, *weights)

    return probs.reshape(B, C)


# ---------------------------------------------------------------------------

if __name__ == "__main__":
    key = jax.random.PRNGKey(0)
    pkey, ikey = jax.random.split(key)

    B, S, VOCAB, NUM_CLASSES = 2, 8, 50, 2
    params = init_params(pkey, vocab=VOCAB, hidden=32, num_layers=2,
                         num_heads=4, ffn=64, max_pos=S, num_classes=NUM_CLASSES)

    input_ids = jax.random.randint(ikey, (B, S), 0, VOCAB, dtype=jnp.int32)
    attention_mask = jnp.ones((B, S), jnp.int32).at[1, 6:].set(0)  # 2nd seq padded
    token_type_ids = jnp.zeros((B, S), jnp.int32)

    probs = bert_sentiment_forward(params, input_ids, attention_mask, token_type_ids)
    probs = jax.block_until_ready(probs)

    assert probs.shape == (B, NUM_CLASSES)
    assert bool(jnp.all(jnp.abs(jnp.sum(probs, axis=1) - 1.0) < 1e-5))
    print("KERNEL_OK")
</pallas_src>

<mosaic_0001>
module attributes {stable_mosaic.version = 11 : i64} {
  func.func @_fused_bert_kernel(%arg0: i32, %arg1: memref<1x8x32xf32, #tpu.memory_space<vmem>>, %arg2: memref<1x1x8xf32, #tpu.memory_space<vmem>>, %arg3: memref<1x32xf32, #tpu.memory_space<vmem>>, %arg4: memref<1x32xf32, #tpu.memory_space<vmem>>, %arg5: memref<2x32x128xbf16, #tpu.memory_space<vmem>>, %arg6: memref<2x1x128xf32, #tpu.memory_space<vmem>>, %arg7: memref<2x32x32xbf16, #tpu.memory_space<vmem>>, %arg8: memref<2x1x32xf32, #tpu.memory_space<vmem>>, %arg9: memref<2x1x32xf32, #tpu.memory_space<vmem>>, %arg10: memref<2x1x32xf32, #tpu.memory_space<vmem>>, %arg11: memref<2x32x128xbf16, #tpu.memory_space<vmem>>, %arg12: memref<2x1x128xf32, #tpu.memory_space<vmem>>, %arg13: memref<2x128x32xbf16, #tpu.memory_space<vmem>>, %arg14: memref<2x1x32xf32, #tpu.memory_space<vmem>>, %arg15: memref<2x1x32xf32, #tpu.memory_space<vmem>>, %arg16: memref<2x1x32xf32, #tpu.memory_space<vmem>>, %arg17: memref<32x32xbf16, #tpu.memory_space<vmem>>, %arg18: memref<1x32xf32, #tpu.memory_space<vmem>>, %arg19: memref<32x2xbf16, #tpu.memory_space<vmem>>, %arg20: memref<1x2xf32, #tpu.memory_space<vmem>>, %arg21: memref<1x1x2xf32, #tpu.memory_space<vmem>>) attributes {dimension_semantics = [#tpu.dimension_semantics<parallel>], iteration_bounds = array<i64: 2>, scalar_prefetch = 0 : i64, scratch_operands = 0 : i64, tpu.core_type = #tpu.core_type<tc>, window_params = [{transform_indices = @transform_0, window_bounds = array<i64: 1, 8, 32>}, {transform_indices = @transform_1, window_bounds = array<i64: 1, 1, 8>}, {pipeline_mode = #tpu.pipeline_mode<synchronous>, transform_indices = @transform_2, window_bounds = array<i64: 1, 32>}, {pipeline_mode = #tpu.pipeline_mode<synchronous>, transform_indices = @transform_3, window_bounds = array<i64: 1, 32>}, {pipeline_mode = #tpu.pipeline_mode<synchronous>, transform_indices = @transform_4, window_bounds = array<i64: 2, 32, 128>}, {pipeline_mode = #tpu.pipeline_mode<synchronous>, transform_indices = @transform_5, window_bounds = array<i64: 2, 1, 128>}, {pipeline_mode = #tpu.pipeline_mode<synchronous>, transform_indices = @transform_6, window_bounds = array<i64: 2, 32, 32>}, {pipeline_mode = #tpu.pipeline_mode<synchronous>, transform_indices = @transform_7, window_bounds = array<i64: 2, 1, 32>}, {pipeline_mode = #tpu.pipeline_mode<synchronous>, transform_indices = @transform_8, window_bounds = array<i64: 2, 1, 32>}, {pipeline_mode = #tpu.pipeline_mode<synchronous>, transform_indices = @transform_9, window_bounds = array<i64: 2, 1, 32>}, {pipeline_mode = #tpu.pipeline_mode<synchronous>, transform_indices = @transform_10, window_bounds = array<i64: 2, 32, 128>}, {pipeline_mode = #tpu.pipeline_mode<synchronous>, transform_indices = @transform_11, window_bounds = array<i64: 2, 1, 128>}, {pipeline_mode = #tpu.pipeline_mode<synchronous>, transform_indices = @transform_12, window_bounds = array<i64: 2, 128, 32>}, {pipeline_mode = #tpu.pipeline_mode<synchronous>, transform_indices = @transform_13, window_bounds = array<i64: 2, 1, 32>}, {pipeline_mode = #tpu.pipeline_mode<synchronous>, transform_indices = @transform_14, window_bounds = array<i64: 2, 1, 32>}, {pipeline_mode = #tpu.pipeline_mode<synchronous>, transform_indices = @transform_15, window_bounds = array<i64: 2, 1, 32>}, {pipeline_mode = #tpu.pipeline_mode<synchronous>, transform_indices = @transform_16, window_bounds = array<i64: 32, 32>}, {pipeline_mode = #tpu.pipeline_mode<synchronous>, transform_indices = @transform_17, window_bounds = array<i64: 1, 32>}, {pipeline_mode = #tpu.pipeline_mode<synchronous>, transform_indices = @transform_18, window_bounds = array<i64: 32, 2>}, {pipeline_mode = #tpu.pipeline_mode<synchronous>, transform_indices = @transform_19, window_bounds = array<i64: 1, 2>}, {transform_indices = @transform_20, window_bounds = array<i64: 1, 1, 2>}]} {
    %c0 = arith.constant 0 : index
    %c0_0 = arith.constant 0 : index
    %c0_1 = arith.constant 0 : index
    %0 = vector.load %arg2[%c0, %c0_0, %c0_1] : memref<1x1x8xf32, #tpu.memory_space<vmem>>, vector<1x1x8xf32>
    %1 = vector.shape_cast %0 : vector<1x1x8xf32> to vector<1x8xf32>
    %c0_2 = arith.constant 0 : index
    %c0_3 = arith.constant 0 : index
    %c0_4 = arith.constant 0 : index
    %2 = vector.load %arg1[%c0_2, %c0_3, %c0_4] : memref<1x8x32xf32, #tpu.memory_space<vmem>>, vector<1x8x32xf32>
    %3 = vector.shape_cast %2 : vector<1x8x32xf32> to vector<8x32xf32>
    %c0_5 = arith.constant 0 : index
    %c0_6 = arith.constant 0 : index
    %4 = vector.load %arg3[%c0_5, %c0_6] : memref<1x32xf32, #tpu.memory_space<vmem>>, vector<1x32xf32>
    %c0_7 = arith.constant 0 : index
    %c0_8 = arith.constant 0 : index
    %5 = vector.load %arg4[%c0_7, %c0_8] : memref<1x32xf32, #tpu.memory_space<vmem>>, vector<1x32xf32>
    %cst = arith.constant dense<0.000000e+00> : vector<8xf32>
    %6 = vector.multi_reduction <add>, %3, %cst [1] : vector<8x32xf32> to vector<8xf32>
    %7 = vector.shape_cast %6 : vector<8xf32> to vector<8x1xf32>
    %cst_9 = arith.constant 3.200000e+01 : f32
    %8 = vector.broadcast %cst_9 : f32 to vector<8x1xf32>
    %9 = arith.divf %7, %8 : vector<8x1xf32>
    %10 = vector.broadcast %9 : vector<8x1xf32> to vector<8x32xf32>
    %11 = arith.subf %3, %10 : vector<8x32xf32>
    %12 = arith.mulf %11, %11 : vector<8x32xf32>
    %cst_10 = arith.constant dense<0.000000e+00> : vector<8xf32>
    %13 = vector.multi_reduction <add>, %12, %cst_10 [1] : vector<8x32xf32> to vector<8xf32>
    %14 = vector.shape_cast %13 : vector<8xf32> to vector<8x1xf32>
    %cst_11 = arith.constant 3.200000e+01 : f32
    %15 = vector.broadcast %cst_11 : f32 to vector<8x1xf32>
    %16 = arith.divf %14, %15 : vector<8x1xf32>
    %17 = vector.broadcast %9 : vector<8x1xf32> to vector<8x32xf32>
    %18 = arith.subf %3, %17 : vector<8x32xf32>
    %cst_12 = arith.constant 9.99999996E-13 : f32
    %19 = vector.broadcast %cst_12 : f32 to vector<8x1xf32>
    %20 = arith.addf %16, %19 : vector<8x1xf32>
    %21 = math.rsqrt %20 : vector<8x1xf32>
    %22 = vector.broadcast %21 : vector<8x1xf32> to vector<8x32xf32>
    %23 = arith.mulf %18, %22 : vector<8x32xf32>
    %24 = vector.broadcast %4 : vector<1x32xf32> to vector<8x32xf32>
    %25 = arith.mulf %23, %24 : vector<8x32xf32>
    %26 = vector.broadcast %5 : vector<1x32xf32> to vector<8x32xf32>
    %27 = arith.addf %25, %26 : vector<8x32xf32>
    %28 = arith.truncf %27 : vector<8x32xf32> to vector<8x32xbf16>
    %c0_13 = arith.constant 0 : index
    %c0_14 = arith.constant 0 : index
    %c0_15 = arith.constant 0 : index
    %29 = vector.load %arg5[%c0_13, %c0_14, %c0_15] : memref<2x32x128xbf16, #tpu.memory_space<vmem>>, vector<1x32x128xbf16>
    %30 = vector.shape_cast %29 : vector<1x32x128xbf16> to vector<32x128xbf16>
    %cst_16 = arith.constant dense<0.000000e+00> : vector<8x128xf32>
    %31 = tpu.matmul %28, %30, %cst_16 {dimension_numbers = #tpu.dot_dimension_numbers<[1], [0], [0], [1], [0, 0, 1, 1], [], []>} : vector<8x32xbf16>, vector<32x128xbf16>, vector<8x128xf32> -> vector<8x128xf32>
    %c0_17 = arith.constant 0 : index
    %c0_18 = arith.constant 0 : index
    %c0_19 = arith.constant 0 : index
    %32 = vector.load %arg6[%c0_17, %c0_18, %c0_19] : memref<2x1x128xf32, #tpu.memory_space<vmem>>, vector<1x1x128xf32>
    %33 = vector.shape_cast %32 : vector<1x1x128xf32> to vector<1x128xf32>
    %34 = vector.broadcast %33 : vector<1x128xf32> to vector<8x128xf32>
    %35 = arith.addf %31, %34 : vector<8x128xf32>
    %36 = vector.extract_strided_slice %35 {offsets = [0, 0], sizes = [8, 32], strides = [1, 1]} : vector<8x128xf32> to vector<8x32xf32>
    %37 = vector.shape_cast %36 : vector<8x32xf32> to vector<8x4x8xf32>
    %38 = vector.extract_strided_slice %35 {offsets = [0, 32], sizes = [8, 32], strides = [1, 1]} : vector<8x128xf32> to vector<8x32xf32>
    %39 = vector.shape_cast %38 : vector<8x32xf32> to vector<8x4x8xf32>
    %40 = vector.extract_strided_slice %35 {offsets = [0, 64], sizes = [8, 32], strides = [1, 1]} : vector<8x128xf32> to vector<8x32xf32>
    %41 = vector.shape_cast %40 : vector<8x32xf32> to vector<8x4x8xf32>
    %42 = tpu.transpose %37, [1, 0, 2] : vector<8x4x8xf32> -> vector<4x8x8xf32>
    %43 = arith.truncf %42 : vector<4x8x8xf32> to vector<4x8x8xbf16>
    %44 = tpu.transpose %39, [1, 0, 2] : vector<8x4x8xf32> -> vector<4x8x8xf32>
    %45 = arith.truncf %44 : vector<4x8x8xf32> to vector<4x8x8xbf16>
    %46 = tpu.transpose %41, [1, 0, 2] : vector<8x4x8xf32> -> vector<4x8x8xf32>
    %47 = arith.truncf %46 : vector<4x8x8xf32> to vector<4x8x8xbf16>
    "tpu.trace_start"() <{level = 10 : i32, message = "hsd,htd->hst"}> : () -> ()
    %cst_20 = arith.constant dense<0.000000e+00> : vector<4x8x8xf32>
    %48 = tpu.matmul %43, %45, %cst_20 {dimension_numbers = #tpu.dot_dimension_numbers<[2], [2], [1], [1], [0, 0, 0, 1, 1, 1], [0], [0]>} : vector<4x8x8xbf16>, vector<4x8x8xbf16>, vector<4x8x8xf32> -> vector<4x8x8xf32>
    "tpu.trace_stop"() : () -> ()
    %49 = vector.shape_cast %1 : vector<1x8xf32> to vector<1x1x8xf32>
    %50 = vector.broadcast %49 : vector<1x1x8xf32> to vector<4x8x8xf32>
    %51 = arith.addf %48, %50 : vector<4x8x8xf32>
    %cst_21 = arith.constant dense<0xFF800000> : vector<4x8xf32>
    %52 = vector.multi_reduction <maximumf>, %51, %cst_21 [2] : vector<4x8x8xf32> to vector<4x8xf32>
    %53 = vector.shape_cast %52 : vector<4x8xf32> to vector<4x8x1xf32>
    %54 = vector.broadcast %53 : vector<4x8x1xf32> to vector<4x8x8xf32>
    %55 = arith.subf %51, %54 : vector<4x8x8xf32>
    %56 = math.exp %55 : vector<4x8x8xf32>
    %cst_22 = arith.constant dense<0.000000e+00> : vector<4x8xf32>
    %57 = vector.multi_reduction <add>, %56, %cst_22 [2] : vector<4x8x8xf32> to vector<4x8xf32>
    %58 = vector.shape_cast %57 : vector<4x8xf32> to vector<4x8x1xf32>
    %59 = tpu.reciprocal %58 {approx = true} : vector<4x8x1xf32> -> vector<4x8x1xf32>
    %60 = vector.broadcast %59 : vector<4x8x1xf32> to vector<4x8x8xf32>
    %61 = arith.mulf %56, %60 : vector<4x8x8xf32>
    %62 = arith.truncf %61 : vector<4x8x8xf32> to vector<4x8x8xbf16>
    "tpu.trace_start"() <{level = 10 : i32, message = "hst,htd->hsd"}> : () -> ()
    %cst_23 = arith.constant dense<0.000000e+00> : vector<4x8x8xf32>
    %63 = tpu.matmul %62, %47, %cst_23 {dimension_numbers = #tpu.dot_dimension_numbers<[2], [1], [1], [2], [0, 0, 0, 1, 1, 2], [0], [0]>} : vector<4x8x8xbf16>, vector<4x8x8xbf16>, vector<4x8x8xf32> -> vector<4x8x8xf32>
    "tpu.trace_stop"() : () -> ()
    %64 = tpu.transpose %63, [1, 0, 2] : vector<4x8x8xf32> -> vector<8x4x8xf32>
    %65 = vector.shape_cast %64 : vector<8x4x8xf32> to vector<8x32xf32>
    %66 = arith.truncf %65 : vector<8x32xf32> to vector<8x32xbf16>
    %c0_24 = arith.constant 0 : index
    %c0_25 = arith.constant 0 : index
    %c0_26 = arith.constant 0 : index
    %67 = vector.load %arg7[%c0_24, %c0_25, %c0_26] : memref<2x32x32xbf16, #tpu.memory_space<vmem>>, vector<1x32x32xbf16>
    %68 = vector.shape_cast %67 : vector<1x32x32xbf16> to vector<32x32xbf16>
    %cst_27 = arith.constant dense<0.000000e+00> : vector<8x32xf32>
    %69 = tpu.matmul %66, %68, %cst_27 {dimension_numbers = #tpu.dot_dimension_numbers<[1], [0], [0], [1], [0, 0, 1, 1], [], []>} : vector<8x32xbf16>, vector<32x32xbf16>, vector<8x32xf32> -> vector<8x32xf32>
    %c0_28 = arith.constant 0 : index
    %c0_29 = arith.constant 0 : index
    %c0_30 = arith.constant 0 : index
    %70 = vector.load %arg8[%c0_28, %c0_29, %c0_30] : memref<2x1x32xf32, #tpu.memory_space<vmem>>, vector<1x1x32xf32>
    %71 = vector.shape_cast %70 : vector<1x1x32xf32> to vector<1x32xf32>
    %72 = vector.broadcast %71 : vector<1x32xf32> to vector<8x32xf32>
    %73 = arith.addf %69, %72 : vector<8x32xf32>
    %74 = arith.extf %28 : vector<8x32xbf16> to vector<8x32xf32>
    %75 = arith.addf %74, %73 : vector<8x32xf32>
    %c0_31 = arith.constant 0 : index
    %c0_32 = arith.constant 0 : index
    %c0_33 = arith.constant 0 : index
    %76 = vector.load %arg9[%c0_31, %c0_32, %c0_33] : memref<2x1x32xf32, #tpu.memory_space<vmem>>, vector<1x1x32xf32>
    %77 = vector.shape_cast %76 : vector<1x1x32xf32> to vector<1x32xf32>
    %c0_34 = arith.constant 0 : index
    %c0_35 = arith.constant 0 : index
    %c0_36 = arith.constant 0 : index
    %78 = vector.load %arg10[%c0_34, %c0_35, %c0_36] : memref<2x1x32xf32, #tpu.memory_space<vmem>>, vector<1x1x32xf32>
    %79 = vector.shape_cast %78 : vector<1x1x32xf32> to vector<1x32xf32>
    %cst_37 = arith.constant dense<0.000000e+00> : vector<8xf32>
    %80 = vector.multi_reduction <add>, %75, %cst_37 [1] : vector<8x32xf32> to vector<8xf32>
    %81 = vector.shape_cast %80 : vector<8xf32> to vector<8x1xf32>
    %cst_38 = arith.constant 3.200000e+01 : f32
    %82 = vector.broadcast %cst_38 : f32 to vector<8x1xf32>
    %83 = arith.divf %81, %82 : vector<8x1xf32>
    %84 = vector.broadcast %83 : vector<8x1xf32> to vector<8x32xf32>
    %85 = arith.subf %75, %84 : vector<8x32xf32>
    %86 = arith.mulf %85, %85 : vector<8x32xf32>
    %cst_39 = arith.constant dense<0.000000e+00> : vector<8xf32>
    %87 = vector.multi_reduction <add>, %86, %cst_39 [1] : vector<8x32xf32> to vector<8xf32>
    %88 = vector.shape_cast %87 : vector<8xf32> to vector<8x1xf32>
    %cst_40 = arith.constant 3.200000e+01 : f32
    %89 = vector.broadcast %cst_40 : f32 to vector<8x1xf32>
    %90 = arith.divf %88, %89 : vector<8x1xf32>
    %91 = vector.broadcast %83 : vector<8x1xf32> to vector<8x32xf32>
    %92 = arith.subf %75, %91 : vector<8x32xf32>
    %cst_41 = arith.constant 9.99999996E-13 : f32
    %93 = vector.broadcast %cst_41 : f32 to vector<8x1xf32>
    %94 = arith.addf %90, %93 : vector<8x1xf32>
    %95 = math.rsqrt %94 : vector<8x1xf32>
    %96 = vector.broadcast %95 : vector<8x1xf32> to vector<8x32xf32>
    %97 = arith.mulf %92, %96 : vector<8x32xf32>
    %98 = vector.broadcast %77 : vector<1x32xf32> to vector<8x32xf32>
    %99 = arith.mulf %97, %98 : vector<8x32xf32>
    %100 = vector.broadcast %79 : vector<1x32xf32> to vector<8x32xf32>
    %101 = arith.addf %99, %100 : vector<8x32xf32>
    %102 = arith.truncf %101 : vector<8x32xf32> to vector<8x32xbf16>
    %c0_42 = arith.constant 0 : index
    %c0_43 = arith.constant 0 : index
    %c0_44 = arith.constant 0 : index
    %103 = vector.load %arg11[%c0_42, %c0_43, %c0_44] : memref<2x32x128xbf16, #tpu.memory_space<vmem>>, vector<1x32x128xbf16>
    %104 = vector.shape_cast %103 : vector<1x32x128xbf16> to vector<32x128xbf16>
    %cst_45 = arith.constant dense<0.000000e+00> : vector<8x128xf32>
    %105 = tpu.matmul %102, %104, %cst_45 {dimension_numbers = #tpu.dot_dimension_numbers<[1], [0], [0], [1], [0, 0, 1, 1], [], []>} : vector<8x32xbf16>, vector<32x128xbf16>, vector<8x128xf32> -> vector<8x128xf32>
    %c0_46 = arith.constant 0 : index
    %c0_47 = arith.constant 0 : index
    %c0_48 = arith.constant 0 : index
    %106 = vector.load %arg12[%c0_46, %c0_47, %c0_48] : memref<2x1x128xf32, #tpu.memory_space<vmem>>, vector<1x1x128xf32>
    %107 = vector.shape_cast %106 : vector<1x1x128xf32> to vector<1x128xf32>
    %108 = vector.broadcast %107 : vector<1x128xf32> to vector<8x128xf32>
    %109 = arith.addf %105, %108 : vector<8x128xf32>
    %cst_49 = arith.constant 5.000000e-01 : f32
    %110 = vector.broadcast %cst_49 : f32 to vector<8x128xf32>
    %111 = arith.mulf %110, %109 : vector<8x128xf32>
    %cst_50 = arith.constant 4.471500e-02 : f32
    %112 = vector.broadcast %cst_50 : f32 to vector<8x128xf32>
    %113 = arith.mulf %112, %109 : vector<8x128xf32>
    %114 = arith.mulf %113, %109 : vector<8x128xf32>
    %115 = arith.mulf %114, %109 : vector<8x128xf32>
    %116 = arith.addf %109, %115 : vector<8x128xf32>
    %cst_51 = arith.constant 0.797884583 : f32
    %117 = vector.broadcast %cst_51 : f32 to vector<8x128xf32>
    %118 = arith.mulf %117, %116 : vector<8x128xf32>
    %119 = math.tanh %118 : vector<8x128xf32>
    %cst_52 = arith.constant 1.000000e+00 : f32
    %120 = vector.broadcast %cst_52 : f32 to vector<8x128xf32>
    %121 = arith.addf %120, %119 : vector<8x128xf32>
    %122 = arith.mulf %111, %121 : vector<8x128xf32>
    %123 = arith.truncf %122 : vector<8x128xf32> to vector<8x128xbf16>
    %c0_53 = arith.constant 0 : index
    %c0_54 = arith.constant 0 : index
    %c0_55 = arith.constant 0 : index
    %124 = vector.load %arg13[%c0_53, %c0_54, %c0_55] : memref<2x128x32xbf16, #tpu.memory_space<vmem>>, vector<1x128x32xbf16>
    %125 = vector.shape_cast %124 : vector<1x128x32xbf16> to vector<128x32xbf16>
    %cst_56 = arith.constant dense<0.000000e+00> : vector<8x32xf32>
    %126 = tpu.matmul %123, %125, %cst_56 {dimension_numbers = #tpu.dot_dimension_numbers<[1], [0], [0], [1], [0, 0, 1, 1], [], []>} : vector<8x128xbf16>, vector<128x32xbf16>, vector<8x32xf32> -> vector<8x32xf32>
    %c0_57 = arith.constant 0 : index
    %c0_58 = arith.constant 0 : index
    %c0_59 = arith.constant 0 : index
    %127 = vector.load %arg14[%c0_57, %c0_58, %c0_59] : memref<2x1x32xf32, #tpu.memory_space<vmem>>, vector<1x1x32xf32>
    %128 = vector.shape_cast %127 : vector<1x1x32xf32> to vector<1x32xf32>
    %129 = vector.broadcast %128 : vector<1x32xf32> to vector<8x32xf32>
    %130 = arith.addf %126, %129 : vector<8x32xf32>
    %131 = arith.extf %102 : vector<8x32xbf16> to vector<8x32xf32>
    %132 = arith.addf %131, %130 : vector<8x32xf32>
    %c0_60 = arith.constant 0 : index
    %c0_61 = arith.constant 0 : index
    %c0_62 = arith.constant 0 : index
    %133 = vector.load %arg15[%c0_60, %c0_61, %c0_62] : memref<2x1x32xf32, #tpu.memory_space<vmem>>, vector<1x1x32xf32>
    %134 = vector.shape_cast %133 : vector<1x1x32xf32> to vector<1x32xf32>
    %c0_63 = arith.constant 0 : index
    %c0_64 = arith.constant 0 : index
    %c0_65 = arith.constant 0 : index
    %135 = vector.load %arg16[%c0_63, %c0_64, %c0_65] : memref<2x1x32xf32, #tpu.memory_space<vmem>>, vector<1x1x32xf32>
    %136 = vector.shape_cast %135 : vector<1x1x32xf32> to vector<1x32xf32>
    %cst_66 = arith.constant dense<0.000000e+00> : vector<8xf32>
    %137 = vector.multi_reduction <add>, %132, %cst_66 [1] : vector<8x32xf32> to vector<8xf32>
    %138 = vector.shape_cast %137 : vector<8xf32> to vector<8x1xf32>
    %cst_67 = arith.constant 3.200000e+01 : f32
    %139 = vector.broadcast %cst_67 : f32 to vector<8x1xf32>
    %140 = arith.divf %138, %139 : vector<8x1xf32>
    %141 = vector.broadcast %140 : vector<8x1xf32> to vector<8x32xf32>
    %142 = arith.subf %132, %141 : vector<8x32xf32>
    %143 = arith.mulf %142, %142 : vector<8x32xf32>
    %cst_68 = arith.constant dense<0.000000e+00> : vector<8xf32>
    %144 = vector.multi_reduction <add>, %143, %cst_68 [1] : vector<8x32xf32> to vector<8xf32>
    %145 = vector.shape_cast %144 : vector<8xf32> to vector<8x1xf32>
    %cst_69 = arith.constant 3.200000e+01 : f32
    %146 = vector.broadcast %cst_69 : f32 to vector<8x1xf32>
    %147 = arith.divf %145, %146 : vector<8x1xf32>
    %148 = vector.broadcast %140 : vector<8x1xf32> to vector<8x32xf32>
    %149 = arith.subf %132, %148 : vector<8x32xf32>
    %cst_70 = arith.constant 9.99999996E-13 : f32
    %150 = vector.broadcast %cst_70 : f32 to vector<8x1xf32>
    %151 = arith.addf %147, %150 : vector<8x1xf32>
    %152 = math.rsqrt %151 : vector<8x1xf32>
    %153 = vector.broadcast %152 : vector<8x1xf32> to vector<8x32xf32>
    %154 = arith.mulf %149, %153 : vector<8x32xf32>
    %155 = vector.broadcast %134 : vector<1x32xf32> to vector<8x32xf32>
    %156 = arith.mulf %154, %155 : vector<8x32xf32>
    %157 = vector.broadcast %136 : vector<1x32xf32> to vector<8x32xf32>
    %158 = arith.addf %156, %157 : vector<8x32xf32>
    %159 = arith.truncf %158 : vector<8x32xf32> to vector<8x32xbf16>
    %c1 = arith.constant 1 : index
    %c0_71 = arith.constant 0 : index
    %c0_72 = arith.constant 0 : index
    %160 = vector.load %arg5[%c1, %c0_71, %c0_72] : memref<2x32x128xbf16, #tpu.memory_space<vmem>>, vector<1x32x128xbf16>
    %161 = vector.shape_cast %160 : vector<1x32x128xbf16> to vector<32x128xbf16>
    %cst_73 = arith.constant dense<0.000000e+00> : vector<8x128xf32>
    %162 = tpu.matmul %159, %161, %cst_73 {dimension_numbers = #tpu.dot_dimension_numbers<[1], [0], [0], [1], [0, 0, 1, 1], [], []>} : vector<8x32xbf16>, vector<32x128xbf16>, vector<8x128xf32> -> vector<8x128xf32>
    %c1_74 = arith.constant 1 : index
    %c0_75 = arith.constant 0 : index
    %c0_76 = arith.constant 0 : index
    %163 = vector.load %arg6[%c1_74, %c0_75, %c0_76] : memref<2x1x128xf32, #tpu.memory_space<vmem>>, vector<1x1x128xf32>
    %164 = vector.shape_cast %163 : vector<1x1x128xf32> to vector<1x128xf32>
    %165 = vector.broadcast %164 : vector<1x128xf32> to vector<8x128xf32>
    %166 = arith.addf %162, %165 : vector<8x128xf32>
    %167 = vector.extract_strided_slice %166 {offsets = [0, 0], sizes = [8, 32], strides = [1, 1]} : vector<8x128xf32> to vector<8x32xf32>
    %168 = vector.shape_cast %167 : vector<8x32xf32> to vector<8x4x8xf32>
    %169 = vector.extract_strided_slice %166 {offsets = [0, 32], sizes = [8, 32], strides = [1, 1]} : vector<8x128xf32> to vector<8x32xf32>
    %170 = vector.shape_cast %169 : vector<8x32xf32> to vector<8x4x8xf32>
    %171 = vector.extract_strided_slice %166 {offsets = [0, 64], sizes = [8, 32], strides = [1, 1]} : vector<8x128xf32> to vector<8x32xf32>
    %172 = vector.shape_cast %171 : vector<8x32xf32> to vector<8x4x8xf32>
    %173 = tpu.transpose %168, [1, 0, 2] : vector<8x4x8xf32> -> vector<4x8x8xf32>
    %174 = arith.truncf %173 : vector<4x8x8xf32> to vector<4x8x8xbf16>
    %175 = tpu.transpose %170, [1, 0, 2] : vector<8x4x8xf32> -> vector<4x8x8xf32>
    %176 = arith.truncf %175 : vector<4x8x8xf32> to vector<4x8x8xbf16>
    %177 = tpu.transpose %172, [1, 0, 2] : vector<8x4x8xf32> -> vector<4x8x8xf32>
    %178 = arith.truncf %177 : vector<4x8x8xf32> to vector<4x8x8xbf16>
    "tpu.trace_start"() <{level = 10 : i32, message = "hsd,htd->hst"}> : () -> ()
    %cst_77 = arith.constant dense<0.000000e+00> : vector<4x8x8xf32>
    %179 = tpu.matmul %174, %176, %cst_77 {dimension_numbers = #tpu.dot_dimension_numbers<[2], [2], [1], [1], [0, 0, 0, 1, 1, 1], [0], [0]>} : vector<4x8x8xbf16>, vector<4x8x8xbf16>, vector<4x8x8xf32> -> vector<4x8x8xf32>
    "tpu.trace_stop"() : () -> ()
    %180 = vector.shape_cast %1 : vector<1x8xf32> to vector<1x1x8xf32>
    %181 = vector.broadcast %180 : vector<1x1x8xf32> to vector<4x8x8xf32>
    %182 = arith.addf %179, %181 : vector<4x8x8xf32>
    %cst_78 = arith.constant dense<0xFF800000> : vector<4x8xf32>
    %183 = vector.multi_reduction <maximumf>, %182, %cst_78 [2] : vector<4x8x8xf32> to vector<4x8xf32>
    %184 = vector.shape_cast %183 : vector<4x8xf32> to vector<4x8x1xf32>
    %185 = vector.broadcast %184 : vector<4x8x1xf32> to vector<4x8x8xf32>
    %186 = arith.subf %182, %185 : vector<4x8x8xf32>
    %187 = math.exp %186 : vector<4x8x8xf32>
    %cst_79 = arith.constant dense<0.000000e+00> : vector<4x8xf32>
    %188 = vector.multi_reduction <add>, %187, %cst_79 [2] : vector<4x8x8xf32> to vector<4x8xf32>
    %189 = vector.shape_cast %188 : vector<4x8xf32> to vector<4x8x1xf32>
    %190 = tpu.reciprocal %189 {approx = true} : vector<4x8x1xf32> -> vector<4x8x1xf32>
    %191 = vector.broadcast %190 : vector<4x8x1xf32> to vector<4x8x8xf32>
    %192 = arith.mulf %187, %191 : vector<4x8x8xf32>
    %193 = arith.truncf %192 : vector<4x8x8xf32> to vector<4x8x8xbf16>
    "tpu.trace_start"() <{level = 10 : i32, message = "hst,htd->hsd"}> : () -> ()
    %cst_80 = arith.constant dense<0.000000e+00> : vector<4x8x8xf32>
    %194 = tpu.matmul %193, %178, %cst_80 {dimension_numbers = #tpu.dot_dimension_numbers<[2], [1], [1], [2], [0, 0, 0, 1, 1, 2], [0], [0]>} : vector<4x8x8xbf16>, vector<4x8x8xbf16>, vector<4x8x8xf32> -> vector<4x8x8xf32>
    "tpu.trace_stop"() : () -> ()
    %195 = tpu.transpose %194, [1, 0, 2] : vector<4x8x8xf32> -> vector<8x4x8xf32>
    %196 = vector.shape_cast %195 : vector<8x4x8xf32> to vector<8x32xf32>
    %197 = arith.truncf %196 : vector<8x32xf32> to vector<8x32xbf16>
    %c1_81 = arith.constant 1 : index
    %c0_82 = arith.constant 0 : index
    %c0_83 = arith.constant 0 : index
    %198 = vector.load %arg7[%c1_81, %c0_82, %c0_83] : memref<2x32x32xbf16, #tpu.memory_space<vmem>>, vector<1x32x32xbf16>
    %199 = vector.shape_cast %198 : vector<1x32x32xbf16> to vector<32x32xbf16>
    %cst_84 = arith.constant dense<0.000000e+00> : vector<8x32xf32>
    %200 = tpu.matmul %197, %199, %cst_84 {dimension_numbers = #tpu.dot_dimension_numbers<[1], [0], [0], [1], [0, 0, 1, 1], [], []>} : vector<8x32xbf16>, vector<32x32xbf16>, vector<8x32xf32> -> vector<8x32xf32>
    %c1_85 = arith.constant 1 : index
    %c0_86 = arith.constant 0 : index
    %c0_87 = arith.constant 0 : index
    %201 = vector.load %arg8[%c1_85, %c0_86, %c0_87] : memref<2x1x32xf32, #tpu.memory_space<vmem>>, vector<1x1x32xf32>
    %202 = vector.shape_cast %201 : vector<1x1x32xf32> to vector<1x32xf32>
    %203 = vector.broadcast %202 : vector<1x32xf32> to vector<8x32xf32>
    %204 = arith.addf %200, %203 : vector<8x32xf32>
    %205 = arith.extf %159 : vector<8x32xbf16> to vector<8x32xf32>
    %206 = arith.addf %205, %204 : vector<8x32xf32>
    %c1_88 = arith.constant 1 : index
    %c0_89 = arith.constant 0 : index
    %c0_90 = arith.constant 0 : index
    %207 = vector.load %arg9[%c1_88, %c0_89, %c0_90] : memref<2x1x32xf32, #tpu.memory_space<vmem>>, vector<1x1x32xf32>
    %208 = vector.shape_cast %207 : vector<1x1x32xf32> to vector<1x32xf32>
    %c1_91 = arith.constant 1 : index
    %c0_92 = arith.constant 0 : index
    %c0_93 = arith.constant 0 : index
    %209 = vector.load %arg10[%c1_91, %c0_92, %c0_93] : memref<2x1x32xf32, #tpu.memory_space<vmem>>, vector<1x1x32xf32>
    %210 = vector.shape_cast %209 : vector<1x1x32xf32> to vector<1x32xf32>
    %cst_94 = arith.constant dense<0.000000e+00> : vector<8xf32>
    %211 = vector.multi_reduction <add>, %206, %cst_94 [1] : vector<8x32xf32> to vector<8xf32>
    %212 = vector.shape_cast %211 : vector<8xf32> to vector<8x1xf32>
    %cst_95 = arith.constant 3.200000e+01 : f32
    %213 = vector.broadcast %cst_95 : f32 to vector<8x1xf32>
    %214 = arith.divf %212, %213 : vector<8x1xf32>
    %215 = vector.broadcast %214 : vector<8x1xf32> to vector<8x32xf32>
    %216 = arith.subf %206, %215 : vector<8x32xf32>
    %217 = arith.mulf %216, %216 : vector<8x32xf32>
    %cst_96 = arith.constant dense<0.000000e+00> : vector<8xf32>
    %218 = vector.multi_reduction <add>, %217, %cst_96 [1] : vector<8x32xf32> to vector<8xf32>
    %219 = vector.shape_cast %218 : vector<8xf32> to vector<8x1xf32>
    %cst_97 = arith.constant 3.200000e+01 : f32
    %220 = vector.broadcast %cst_97 : f32 to vector<8x1xf32>
    %221 = arith.divf %219, %220 : vector<8x1xf32>
    %222 = vector.broadcast %214 : vector<8x1xf32> to vector<8x32xf32>
    %223 = arith.subf %206, %222 : vector<8x32xf32>
    %cst_98 = arith.constant 9.99999996E-13 : f32
    %224 = vector.broadcast %cst_98 : f32 to vector<8x1xf32>
    %225 = arith.addf %221, %224 : vector<8x1xf32>
    %226 = math.rsqrt %225 : vector<8x1xf32>
    %227 = vector.broadcast %226 : vector<8x1xf32> to vector<8x32xf32>
    %228 = arith.mulf %223, %227 : vector<8x32xf32>
    %229 = vector.broadcast %208 : vector<1x32xf32> to vector<8x32xf32>
    %230 = arith.mulf %228, %229 : vector<8x32xf32>
    %231 = vector.broadcast %210 : vector<1x32xf32> to vector<8x32xf32>
    %232 = arith.addf %230, %231 : vector<8x32xf32>
    %233 = arith.truncf %232 : vector<8x32xf32> to vector<8x32xbf16>
    %c1_99 = arith.constant 1 : index
    %c0_100 = arith.constant 0 : index
    %c0_101 = arith.constant 0 : index
    %234 = vector.load %arg11[%c1_99, %c0_100, %c0_101] : memref<2x32x128xbf16, #tpu.memory_space<vmem>>, vector<1x32x128xbf16>
    %235 = vector.shape_cast %234 : vector<1x32x128xbf16> to vector<32x128xbf16>
    %cst_102 = arith.constant dense<0.000000e+00> : vector<8x128xf32>
    %236 = tpu.matmul %233, %235, %cst_102 {dimension_numbers = #tpu.dot_dimension_numbers<[1], [0], [0], [1], [0, 0, 1, 1], [], []>} : vector<8x32xbf16>, vector<32x128xbf16>, vector<8x128xf32> -> vector<8x128xf32>
    %c1_103 = arith.constant 1 : index
    %c0_104 = arith.constant 0 : index
    %c0_105 = arith.constant 0 : index
    %237 = vector.load %arg12[%c1_103, %c0_104, %c0_105] : memref<2x1x128xf32, #tpu.memory_space<vmem>>, vector<1x1x128xf32>
    %238 = vector.shape_cast %237 : vector<1x1x128xf32> to vector<1x128xf32>
    %239 = vector.broadcast %238 : vector<1x128xf32> to vector<8x128xf32>
    %240 = arith.addf %236, %239 : vector<8x128xf32>
    %cst_106 = arith.constant 5.000000e-01 : f32
    %241 = vector.broadcast %cst_106 : f32 to vector<8x128xf32>
    %242 = arith.mulf %241, %240 : vector<8x128xf32>
    %cst_107 = arith.constant 4.471500e-02 : f32
    %243 = vector.broadcast %cst_107 : f32 to vector<8x128xf32>
    %244 = arith.mulf %243, %240 : vector<8x128xf32>
    %245 = arith.mulf %244, %240 : vector<8x128xf32>
    %246 = arith.mulf %245, %240 : vector<8x128xf32>
    %247 = arith.addf %240, %246 : vector<8x128xf32>
    %cst_108 = arith.constant 0.797884583 : f32
    %248 = vector.broadcast %cst_108 : f32 to vector<8x128xf32>
    %249 = arith.mulf %248, %247 : vector<8x128xf32>
    %250 = math.tanh %249 : vector<8x128xf32>
    %cst_109 = arith.constant 1.000000e+00 : f32
    %251 = vector.broadcast %cst_109 : f32 to vector<8x128xf32>
    %252 = arith.addf %251, %250 : vector<8x128xf32>
    %253 = arith.mulf %242, %252 : vector<8x128xf32>
    %254 = arith.truncf %253 : vector<8x128xf32> to vector<8x128xbf16>
    %c1_110 = arith.constant 1 : index
    %c0_111 = arith.constant 0 : index
    %c0_112 = arith.constant 0 : index
    %255 = vector.load %arg13[%c1_110, %c0_111, %c0_112] : memref<2x128x32xbf16, #tpu.memory_space<vmem>>, vector<1x128x32xbf16>
    %256 = vector.shape_cast %255 : vector<1x128x32xbf16> to vector<128x32xbf16>
    %cst_113 = arith.constant dense<0.000000e+00> : vector<8x32xf32>
    %257 = tpu.matmul %254, %256, %cst_113 {dimension_numbers = #tpu.dot_dimension_numbers<[1], [0], [0], [1], [0, 0, 1, 1], [], []>} : vector<8x128xbf16>, vector<128x32xbf16>, vector<8x32xf32> -> vector<8x32xf32>
    %c1_114 = arith.constant 1 : index
    %c0_115 = arith.constant 0 : index
    %c0_116 = arith.constant 0 : index
    %258 = vector.load %arg14[%c1_114, %c0_115, %c0_116] : memref<2x1x32xf32, #tpu.memory_space<vmem>>, vector<1x1x32xf32>
    %259 = vector.shape_cast %258 : vector<1x1x32xf32> to vector<1x32xf32>
    %260 = vector.broadcast %259 : vector<1x32xf32> to vector<8x32xf32>
    %261 = arith.addf %257, %260 : vector<8x32xf32>
    %262 = arith.extf %233 : vector<8x32xbf16> to vector<8x32xf32>
    %263 = arith.addf %262, %261 : vector<8x32xf32>
    %c1_117 = arith.constant 1 : index
    %c0_118 = arith.constant 0 : index
    %c0_119 = arith.constant 0 : index
    %264 = vector.load %arg15[%c1_117, %c0_118, %c0_119] : memref<2x1x32xf32, #tpu.memory_space<vmem>>, vector<1x1x32xf32>
    %265 = vector.shape_cast %264 : vector<1x1x32xf32> to vector<1x32xf32>
    %c1_120 = arith.constant 1 : index
    %c0_121 = arith.constant 0 : index
    %c0_122 = arith.constant 0 : index
    %266 = vector.load %arg16[%c1_120, %c0_121, %c0_122] : memref<2x1x32xf32, #tpu.memory_space<vmem>>, vector<1x1x32xf32>
    %267 = vector.shape_cast %266 : vector<1x1x32xf32> to vector<1x32xf32>
    %cst_123 = arith.constant dense<0.000000e+00> : vector<8xf32>
    %268 = vector.multi_reduction <add>, %263, %cst_123 [1] : vector<8x32xf32> to vector<8xf32>
    %269 = vector.shape_cast %268 : vector<8xf32> to vector<8x1xf32>
    %cst_124 = arith.constant 3.200000e+01 : f32
    %270 = vector.broadcast %cst_124 : f32 to vector<8x1xf32>
    %271 = arith.divf %269, %270 : vector<8x1xf32>
    %272 = vector.broadcast %271 : vector<8x1xf32> to vector<8x32xf32>
    %273 = arith.subf %263, %272 : vector<8x32xf32>
    %274 = arith.mulf %273, %273 : vector<8x32xf32>
    %cst_125 = arith.constant dense<0.000000e+00> : vector<8xf32>
    %275 = vector.multi_reduction <add>, %274, %cst_125 [1] : vector<8x32xf32> to vector<8xf32>
    %276 = vector.shape_cast %275 : vector<8xf32> to vector<8x1xf32>
    %cst_126 = arith.constant 3.200000e+01 : f32
    %277 = vector.broadcast %cst_126 : f32 to vector<8x1xf32>
    %278 = arith.divf %276, %277 : vector<8x1xf32>
    %279 = vector.broadcast %271 : vector<8x1xf32> to vector<8x32xf32>
    %280 = arith.subf %263, %279 : vector<8x32xf32>
    %cst_127 = arith.constant 9.99999996E-13 : f32
    %281 = vector.broadcast %cst_127 : f32 to vector<8x1xf32>
    %282 = arith.addf %278, %281 : vector<8x1xf32>
    %283 = math.rsqrt %282 : vector<8x1xf32>
    %284 = vector.broadcast %283 : vector<8x1xf32> to vector<8x32xf32>
    %285 = arith.mulf %280, %284 : vector<8x32xf32>
    %286 = vector.broadcast %265 : vector<1x32xf32> to vector<8x32xf32>
    %287 = arith.mulf %285, %286 : vector<8x32xf32>
    %288 = vector.broadcast %267 : vector<1x32xf32> to vector<8x32xf32>
    %289 = arith.addf %287, %288 : vector<8x32xf32>
    %290 = arith.truncf %289 : vector<8x32xf32> to vector<8x32xbf16>
    %291 = vector.extract_strided_slice %290 {offsets = [0, 0], sizes = [1, 32], strides = [1, 1]} : vector<8x32xbf16> to vector<1x32xbf16>
    %c0_128 = arith.constant 0 : index
    %c0_129 = arith.constant 0 : index
    %292 = vector.load %arg17[%c0_128, %c0_129] : memref<32x32xbf16, #tpu.memory_space<vmem>>, vector<32x32xbf16>
    %cst_130 = arith.constant dense<0.000000e+00> : vector<1x32xf32>
    %293 = tpu.matmul %291, %292, %cst_130 {dimension_numbers = #tpu.dot_dimension_numbers<[1], [0], [0], [1], [0, 0, 1, 1], [], []>} : vector<1x32xbf16>, vector<32x32xbf16>, vector<1x32xf32> -> vector<1x32xf32>
    %c0_131 = arith.constant 0 : index
    %c0_132 = arith.constant 0 : index
    %294 = vector.load %arg18[%c0_131, %c0_132] : memref<1x32xf32, #tpu.memory_space<vmem>>, vector<1x32xf32>
    %295 = arith.addf %293, %294 : vector<1x32xf32>
    %296 = math.tanh %295 : vector<1x32xf32>
    %297 = arith.truncf %296 : vector<1x32xf32> to vector<1x32xbf16>
    %c0_133 = arith.constant 0 : index
    %c0_134 = arith.constant 0 : index
    %298 = vector.load %arg19[%c0_133, %c0_134] : memref<32x2xbf16, #tpu.memory_space<vmem>>, vector<32x2xbf16>
    %cst_135 = arith.constant dense<0.000000e+00> : vector<1x2xf32>
    %299 = tpu.matmul %297, %298, %cst_135 {dimension_numbers = #tpu.dot_dimension_numbers<[1], [0], [0], [1], [0, 0, 1, 1], [], []>} : vector<1x32xbf16>, vector<32x2xbf16>, vector<1x2xf32> -> vector<1x2xf32>
    %c0_136 = arith.constant 0 : index
    %c0_137 = arith.constant 0 : index
    %300 = vector.load %arg20[%c0_136, %c0_137] : memref<1x2xf32, #tpu.memory_space<vmem>>, vector<1x2xf32>
    %301 = arith.addf %299, %300 : vector<1x2xf32>
    %cst_138 = arith.constant dense<0xFF800000> : vector<1xf32>
    %302 = vector.multi_reduction <maximumf>, %301, %cst_138 [1] : vector<1x2xf32> to vector<1xf32>
    %303 = vector.shape_cast %302 : vector<1xf32> to vector<1x1xf32>
    %304 = vector.broadcast %303 : vector<1x1xf32> to vector<1x2xf32>
    %305 = arith.subf %301, %304 : vector<1x2xf32>
    %306 = math.exp %305 : vector<1x2xf32>
    %cst_139 = arith.constant dense<0.000000e+00> : vector<1xf32>
    %307 = vector.multi_reduction <add>, %306, %cst_139 [1] : vector<1x2xf32> to vector<1xf32>
    %308 = vector.shape_cast %307 : vector<1xf32> to vector<1x1xf32>
    %309 = vector.broadcast %308 : vector<1x1xf32> to vector<1x2xf32>
    %310 = arith.divf %306, %309 : vector<1x2xf32>
    %c0_140 = arith.constant 0 : index
    %c0_141 = arith.constant 0 : index
    %c0_142 = arith.constant 0 : index
    %311 = vector.load %arg21[%c0_140, %c0_141, %c0_142] : memref<1x1x2xf32, #tpu.memory_space<vmem>>, vector<1x1x2xf32>
    %312 = vector.shape_cast %311 : vector<1x1x2xf32> to vector<1x2xf32>
    %313 = vector.shape_cast %310 : vector<1x2xf32> to vector<1x1x2xf32>
    tpu.vector_store %arg21[%c0_140, %c0_141, %c0_142], %313 {strides = array<i32>} : memref<1x1x2xf32, #tpu.memory_space<vmem>>, vector<1x1x2xf32>,
    return
  }
  func.func @transform_0(%arg0: i32) -> (i32, i32, i32) {
    %c0_i32 = arith.constant 0 : i32
    %c0_i32_0 = arith.constant 0 : i32
    %c0_i32_1 = arith.constant 0 : i32
    return %arg0, %c0_i32, %c0_i32_0 : i32, i32, i32
  }
  func.func @transform_1(%arg0: i32) -> (i32, i32, i32) {
    %c0_i32 = arith.constant 0 : i32
    %c0_i32_0 = arith.constant 0 : i32
    %c0_i32_1 = arith.constant 0 : i32
    return %arg0, %c0_i32, %c0_i32_0 : i32, i32, i32
  }
  func.func @transform_2(%arg0: i32) -> (i32, i32) {
    %c0_i32 = arith.constant 0 : i32
    %c0_i32_0 = arith.constant 0 : i32
    %c0_i32_1 = arith.constant 0 : i32
    return %c0_i32, %c0_i32_0 : i32, i32
  }
  func.func @transform_3(%arg0: i32) -> (i32, i32) {
    %c0_i32 = arith.constant 0 : i32
    %c0_i32_0 = arith.constant 0 : i32
    %c0_i32_1 = arith.constant 0 : i32
    return %c0_i32, %c0_i32_0 : i32, i32
  }
  func.func @transform_4(%arg0: i32) -> (i32, i32, i32) {
    %c0_i32 = arith.constant 0 : i32
    %c0_i32_0 = arith.constant 0 : i32
    %c0_i32_1 = arith.constant 0 : i32
    %c0_i32_2 = arith.constant 0 : i32
    return %c0_i32, %c0_i32_0, %c0_i32_1 : i32, i32, i32
  }
  func.func @transform_5(%arg0: i32) -> (i32, i32, i32) {
    %c0_i32 = arith.constant 0 : i32
    %c0_i32_0 = arith.constant 0 : i32
    %c0_i32_1 = arith.constant 0 : i32
    %c0_i32_2 = arith.constant 0 : i32
    return %c0_i32, %c0_i32_0, %c0_i32_1 : i32, i32, i32
  }
  func.func @transform_6(%arg0: i32) -> (i32, i32, i32) {
    %c0_i32 = arith.constant 0 : i32
    %c0_i32_0 = arith.constant 0 : i32
    %c0_i32_1 = arith.constant 0 : i32
    %c0_i32_2 = arith.constant 0 : i32
    return %c0_i32, %c0_i32_0, %c0_i32_1 : i32, i32, i32
  }
  func.func @transform_7(%arg0: i32) -> (i32, i32, i32) {
    %c0_i32 = arith.constant 0 : i32
    %c0_i32_0 = arith.constant 0 : i32
    %c0_i32_1 = arith.constant 0 : i32
    %c0_i32_2 = arith.constant 0 : i32
    return %c0_i32, %c0_i32_0, %c0_i32_1 : i32, i32, i32
  }
  func.func @transform_8(%arg0: i32) -> (i32, i32, i32) {
    %c0_i32 = arith.constant 0 : i32
    %c0_i32_0 = arith.constant 0 : i32
    %c0_i32_1 = arith.constant 0 : i32
    %c0_i32_2 = arith.constant 0 : i32
    return %c0_i32, %c0_i32_0, %c0_i32_1 : i32, i32, i32
  }
  func.func @transform_9(%arg0: i32) -> (i32, i32, i32) {
    %c0_i32 = arith.constant 0 : i32
    %c0_i32_0 = arith.constant 0 : i32
    %c0_i32_1 = arith.constant 0 : i32
    %c0_i32_2 = arith.constant 0 : i32
    return %c0_i32, %c0_i32_0, %c0_i32_1 : i32, i32, i32
  }
  func.func @transform_10(%arg0: i32) -> (i32, i32, i32) {
    %c0_i32 = arith.constant 0 : i32
    %c0_i32_0 = arith.constant 0 : i32
    %c0_i32_1 = arith.constant 0 : i32
    %c0_i32_2 = arith.constant 0 : i32
    return %c0_i32, %c0_i32_0, %c0_i32_1 : i32, i32, i32
  }
  func.func @transform_11(%arg0: i32) -> (i32, i32, i32) {
    %c0_i32 = arith.constant 0 : i32
    %c0_i32_0 = arith.constant 0 : i32
    %c0_i32_1 = arith.constant 0 : i32
    %c0_i32_2 = arith.constant 0 : i32
    return %c0_i32, %c0_i32_0, %c0_i32_1 : i32, i32, i32
  }
  func.func @transform_12(%arg0: i32) -> (i32, i32, i32) {
    %c0_i32 = arith.constant 0 : i32
    %c0_i32_0 = arith.constant 0 : i32
    %c0_i32_1 = arith.constant 0 : i32
    %c0_i32_2 = arith.constant 0 : i32
    return %c0_i32, %c0_i32_0, %c0_i32_1 : i32, i32, i32
  }
  func.func @transform_13(%arg0: i32) -> (i32, i32, i32) {
    %c0_i32 = arith.constant 0 : i32
    %c0_i32_0 = arith.constant 0 : i32
    %c0_i32_1 = arith.constant 0 : i32
    %c0_i32_2 = arith.constant 0 : i32
    return %c0_i32, %c0_i32_0, %c0_i32_1 : i32, i32, i32
  }
  func.func @transform_14(%arg0: i32) -> (i32, i32, i32) {
    %c0_i32 = arith.constant 0 : i32
    %c0_i32_0 = arith.constant 0 : i32
    %c0_i32_1 = arith.constant 0 : i32
    %c0_i32_2 = arith.constant 0 : i32
    return %c0_i32, %c0_i32_0, %c0_i32_1 : i32, i32, i32
  }
  func.func @transform_15(%arg0: i32) -> (i32, i32, i32) {
    %c0_i32 = arith.constant 0 : i32
    %c0_i32_0 = arith.constant 0 : i32
    %c0_i32_1 = arith.constant 0 : i32
    %c0_i32_2 = arith.constant 0 : i32
    return %c0_i32, %c0_i32_0, %c0_i32_1 : i32, i32, i32
  }
  func.func @transform_16(%arg0: i32) -> (i32, i32) {
    %c0_i32 = arith.constant 0 : i32
    %c0_i32_0 = arith.constant 0 : i32
    %c0_i32_1 = arith.constant 0 : i32
    return %c0_i32, %c0_i32_0 : i32, i32
  }
  func.func @transform_17(%arg0: i32) -> (i32, i32) {
    %c0_i32 = arith.constant 0 : i32
    %c0_i32_0 = arith.constant 0 : i32
    %c0_i32_1 = arith.constant 0 : i32
    return %c0_i32, %c0_i32_0 : i32, i32
  }
  func.func @transform_18(%arg0: i32) -> (i32, i32) {
    %c0_i32 = arith.constant 0 : i32
    %c0_i32_0 = arith.constant 0 : i32
    %c0_i32_1 = arith.constant 0 : i32
    return %c0_i32, %c0_i32_0 : i32, i32
  }
  func.func @transform_19(%arg0: i32) -> (i32, i32) {
    %c0_i32 = arith.constant 0 : i32
    %c0_i32_0 = arith.constant 0 : i32
    %c0_i32_1 = arith.constant 0 : i32
    return %c0_i32, %c0_i32_0 : i32, i32
  }
  func.func @transform_20(%arg0: i32) -> (i32, i32, i32) {
    %c0_i32 = arith.constant 0 : i32
    %c0_i32_0 = arith.constant 0 : i32
    %c0_i32_1 = arith.constant 0 : i32
    return %arg0, %c0_i32, %c0_i32_0 : i32, i32, i32
  }
}

</mosaic_0001>

<llo_original>
// kernel: tpu_custom_call.1
$region0: #{tpu_custom_call.1}
  #allocation0 [shape = 'u32[]', space=smem, size = 0x4, offset = 0x4, fixed_abs, tag = 'smem constant byte address 0x4 - core index']
  #allocation1 [shape = 'u32[144,128]{1,0:T(1,128)}', space=vmem, size = 0x12000, scoped, tag = 'internal scratch']
  %s0 = inlined_call_operand.vmem [shape: f32[2,8,32], index: 0, kind: input, shape index: {}]
  %s1 = inlined_call_operand.vmem [shape: f32[2,1,8], index: 1, kind: input, shape index: {}]
  %s2 = inlined_call_operand.vmem [shape: f32[1,32], index: 2, kind: input, shape index: {}]
  %s3 = inlined_call_operand.vmem [shape: f32[1,32], index: 3, kind: input, shape index: {}]
  %s4 = inlined_call_operand.vmem [shape: bf16[2,32,128], index: 4, kind: input, shape index: {}]
  %s5 = inlined_call_operand.vmem [shape: f32[2,1,128], index: 5, kind: input, shape index: {}]
  %s6 = inlined_call_operand.vmem [shape: bf16[2,32,32], index: 6, kind: input, shape index: {}]
  %s7 = inlined_call_operand.vmem [shape: f32[2,1,32], index: 7, kind: input, shape index: {}]
  %s8 = inlined_call_operand.vmem [shape: f32[2,1,32], index: 8, kind: input, shape index: {}]
  %s9 = inlined_call_operand.vmem [shape: f32[2,1,32], index: 9, kind: input, shape index: {}]
  %s10 = inlined_call_operand.vmem [shape: bf16[2,32,128], index: 10, kind: input, shape index: {}]
  %s11 = inlined_call_operand.vmem [shape: f32[2,1,128], index: 11, kind: input, shape index: {}]
  %s12 = inlined_call_operand.vmem [shape: bf16[2,128,32], index: 12, kind: input, shape index: {}]
  %s13 = inlined_call_operand.vmem [shape: f32[2,1,32], index: 13, kind: input, shape index: {}]
  %s14 = inlined_call_operand.vmem [shape: f32[2,1,32], index: 14, kind: input, shape index: {}]
  %s15 = inlined_call_operand.vmem [shape: f32[2,1,32], index: 15, kind: input, shape index: {}]
  %s16 = inlined_call_operand.vmem [shape: bf16[32,32], index: 16, kind: input, shape index: {}]
  %s17 = inlined_call_operand.vmem [shape: f32[1,32], index: 17, kind: input, shape index: {}]
  %s18 = inlined_call_operand.vmem [shape: bf16[32,2], index: 18, kind: input, shape index: {}]
  %s19 = inlined_call_operand.vmem [shape: f32[1,2], index: 19, kind: input, shape index: {}]
  %s20 = inlined_call_operand.hbm [shape: f32[2,1,2], index: 20, kind: output, shape index: {}]
  %s21 = sld [smem:[#allocation0]]
  $region113: #{tpu_custom_call.1} parent=0
    _
  %s23 = ssub.s32 1, %s21
  %s24 = scalar_select 0, %s23, %s21
  $region1: #{tpu_custom_call.1} parent=0
    #allocation2 [shape = 'u8[1024]{0}', space=vmem, size = 0x400, scoped, tag = 'output window, operand 0']
    #allocation3 [shape = 's32[2]{0}', space=sflag, size = 0x8, scoped, tag = 'scoped memory for tpu_custom_call.1']
    %25 = vsyncpa [#allocation3], 0
    %s26 = scalar_lea.sflag [#allocation3], 1
    %27 = vsyncpa %s26, 0
    loop: start=0, step=1, limit=4
    $region2: #{tpu_custom_call.1} parent=1 // loop_pre_header
      _
    $region3: #{tpu_custom_call.1} parent=1 // loop_header
      %s29 = sphi 0, %s33
      %p30 = scmp.ge.s32.totalorder %s29, 4
      %s39 = sphi 0, %s41
      %s42 = sphi 0, %s39
      %s43 = sphi 0, %s42
      %s59 = sphi 0, %s43
      %s65 = sphi 0, %s67
      %s68 = sphi 0, %s65
      %s69 = sphi 0, %s68
      %s85 = sphi 0, %s69
      %s89 = sphi 0, %s89
      %s91 = sphi 0, %s89
      %s92 = sphi 0, %s91
      %s106 = sphi 0, %s92
      %s110 = sphi 0, %s110
      %s112 = sphi 0, %s110
      %s113 = sphi 0, %s112
      %s127 = sphi 0, %s113
      %s131 = sphi 0, %s131
      %s133 = sphi 0, %s131
      %s134 = sphi 0, %s133
      %s148 = sphi 0, %s134
      %s152 = sphi 0, %s152
      %s154 = sphi 0, %s152
      %s155 = sphi 0, %s154
      %s169 = sphi 0, %s155
      %s173 = sphi 0, %s173
      %s175 = sphi 0, %s173
      %s176 = sphi 0, %s175
      %s190 = sphi 0, %s176
      %s194 = sphi 0, %s194
      %s196 = sphi 0, %s194
      %s197 = sphi 0, %s196
      %s211 = sphi 0, %s197
      %s215 = sphi 0, %s215
      %s217 = sphi 0, %s215
      %s218 = sphi 0, %s217
      %s232 = sphi 0, %s218
      %s236 = sphi 0, %s236
      %s238 = sphi 0, %s236
      %s239 = sphi 0, %s238
      %s253 = sphi 0, %s239
      %s257 = sphi 0, %s257
      %s259 = sphi 0, %s257
      %s260 = sphi 0, %s259
      %s274 = sphi 0, %s260
      %s278 = sphi 0, %s278
      %s280 = sphi 0, %s278
      %s281 = sphi 0, %s280
      %s295 = sphi 0, %s281
      %s299 = sphi 0, %s299
      %s301 = sphi 0, %s299
      %s302 = sphi 0, %s301
      %s316 = sphi 0, %s302
      %s320 = sphi 0, %s320
      %s322 = sphi 0, %s320
      %s323 = sphi 0, %s322
      %s337 = sphi 0, %s323
      %s341 = sphi 0, %s341
      %s343 = sphi 0, %s341
      %s344 = sphi 0, %s343
      %s358 = sphi 0, %s344
      %s362 = sphi 0, %s362
      %s364 = sphi 0, %s362
      %s365 = sphi 0, %s364
      %s379 = sphi 0, %s365
      %s383 = sphi 0, %s383
      %s385 = sphi 0, %s383
      %s386 = sphi 0, %s385
      %s400 = sphi 0, %s386
      %s404 = sphi 0, %s404
      %s406 = sphi 0, %s404
      %s407 = sphi 0, %s406
      %s421 = sphi 0, %s407
      %s425 = sphi 0, %s425
      %s427 = sphi 0, %s425
      %s428 = sphi 0, %s427
      %s442 = sphi 0, %s428
      %s446 = sphi 0, %s446
      %s448 = sphi 0, %s446
      %s449 = sphi 0, %s448
      %s463 = sphi 0, %s449
      %s469 = sphi 0, %s471
      %s472 = sphi 0, %s469
      %s473 = sphi 0, %s472
      %s489 = sphi 0, %s473
    $region4: #{tpu_custom_call.1} parent=1 // loop_header_branch
      %32 = sbr.rel (%p30) target = $region8
    $region5: #{tpu_custom_call.1} parent=1 // loop_body
      %s34 = ssub.s32 %s29, 1
      %s35 = ssub.s32 %s29, 2
      %s36 = sadd.s32 %s29, 1
      %s37 = ssub.s32 %s29, %s36
      %p38 = scmp.eq.s32.totalorder %s37, 0
      %s40 = sadd.s32 %s39, 1
      %s41 = scalar_select %p38, %s39, %s40
      %p44 = pneg %p38
      %p45 = scmp.eq.s32.totalorder %s29, 1
      %p46 = por %p44, %p45
      %p47 = scmp.ne.s32.totalorder %s39, %s42
      %p48 = scmp.eq.s32.totalorder %s29, 0
      %p49 = por %p47, %p48
      %p50 = scmp.ne.s32.totalorder %s39, %s42
      %p51 = scmp.eq.s32.totalorder %s34, 1
      %p52 = por %p50, %p51
      %p53 = scmp.ne.s32.totalorder %s42, %s43
      %p54 = scmp.eq.s32.totalorder %s34, 0
      %p55 = por %p53, %p54
      %p56 = scmp.ne.s32.totalorder %s42, %s43
      %p57 = scmp.eq.s32.totalorder %s35, 1
      %p58 = por %p56, %p57
      %p60 = scmp.ne.s32.totalorder %s43, %s59
      %p61 = scmp.eq.s32.totalorder %s35, 0
      %p62 = por %p60, %p61
      %s63 = ssub.s32 %s29, %s36
      %p64 = scmp.eq.s32.totalorder %s63, 0
      %s66 = sadd.s32 %s65, 1
      %s67 = scalar_select %p64, %s65, %s66
      %p70 = pneg %p64
      %p71 = scmp.eq.s32.totalorder %s29, 1
      %p72 = por %p70, %p71
      %p73 = scmp.ne.s32.totalorder %s65, %s68
      %p74 = scmp.eq.s32.totalorder %s29, 0
      %p75 = por %p73, %p74
      %p76 = scmp.ne.s32.totalorder %s65, %s68
      %p77 = scmp.eq.s32.totalorder %s34, 1
      %p78 = por %p76, %p77
      %p79 = scmp.ne.s32.totalorder %s68, %s69
      %p80 = scmp.eq.s32.totalorder %s34, 0
      %p81 = por %p79, %p80
      %p82 = scmp.ne.s32.totalorder %s68, %s69
      %p83 = scmp.eq.s32.totalorder %s35, 1
      %p84 = por %p82, %p83
      %p86 = scmp.ne.s32.totalorder %s69, %s85
      %p87 = scmp.eq.s32.totalorder %s35, 0
      %p88 = por %p86, %p87
      %s90 = sadd.s32 %s89, 1
      %p93 = scmp.eq.s32.totalorder %s29, 1
      %p94 = scmp.ne.s32.totalorder %s89, %s91
      %p95 = scmp.eq.s32.totalorder %s29, 0
      %p96 = por %p94, %p95
      %p97 = scmp.ne.s32.totalorder %s89, %s91
      %p98 = scmp.eq.s32.totalorder %s34, 1
      %p99 = por %p97, %p98
      %p100 = scmp.ne.s32.totalorder %s91, %s92
      %p101 = scmp.eq.s32.totalorder %s34, 0
      %p102 = por %p100, %p101
      %p103 = scmp.ne.s32.totalorder %s91, %s92
      %p104 = scmp.eq.s32.totalorder %s35, 1
      %p105 = por %p103, %p104
      %p107 = scmp.ne.s32.totalorder %s92, %s106
      %p108 = scmp.eq.s32.totalorder %s35, 0
      %p109 = por %p107, %p108
      %s111 = sadd.s32 %s110, 1
      %p114 = scmp.eq.s32.totalorder %s29, 1
      %p115 = scmp.ne.s32.totalorder %s110, %s112
      %p116 = scmp.eq.s32.totalorder %s29, 0
      %p117 = por %p115, %p116
      %p118 = scmp.ne.s32.totalorder %s110, %s112
      %p119 = scmp.eq.s32.totalorder %s34, 1
      %p120 = por %p118, %p119
      %p121 = scmp.ne.s32.totalorder %s112, %s113
      %p122 = scmp.eq.s32.totalorder %s34, 0
      %p123 = por %p121, %p122
      %p124 = scmp.ne.s32.totalorder %s112, %s113
      %p125 = scmp.eq.s32.totalorder %s35, 1
      %p126 = por %p124, %p125
      %p128 = scmp.ne.s32.totalorder %s113, %s127
      %p129 = scmp.eq.s32.totalorder %s35, 0
      %p130 = por %p128, %p129
      %s132 = sadd.s32 %s131, 1
      %p135 = scmp.eq.s32.totalorder %s29, 1
      %p136 = scmp.ne.s32.totalorder %s131, %s133
      %p137 = scmp.eq.s32.totalorder %s29, 0
      %p138 = por %p136, %p137
      %p139 = scmp.ne.s32.totalorder %s131, %s133
      %p140 = scmp.eq.s32.totalorder %s34, 1
      %p141 = por %p139, %p140
      %p142 = scmp.ne.s32.totalorder %s133, %s134
      %p143 = scmp.eq.s32.totalorder %s34, 0
      %p144 = por %p142, %p143
      %p145 = scmp.ne.s32.totalorder %s133, %s134
      %p146 = scmp.eq.s32.totalorder %s35, 1
      %p147 = por %p145, %p146
      %p149 = scmp.ne.s32.totalorder %s134, %s148
      %p150 = scmp.eq.s32.totalorder %s35, 0
      %p151 = por %p149, %p150
      %s153 = sadd.s32 %s152, 1
      %p156 = scmp.eq.s32.totalorder %s29, 1
      %p157 = scmp.ne.s32.totalorder %s152, %s154
      %p158 = scmp.eq.s32.totalorder %s29, 0
      %p159 = por %p157, %p158
      %p160 = scmp.ne.s32.totalorder %s152, %s154
      %p161 = scmp.eq.s32.totalorder %s34, 1
      %p162 = por %p160, %p161
      %p163 = scmp.ne.s32.totalorder %s154, %s155
      %p164 = scmp.eq.s32.totalorder %s34, 0
      %p165 = por %p163, %p164
      %p166 = scmp.ne.s32.totalorder %s154, %s155
      %p167 = scmp.eq.s32.totalorder %s35, 1
      %p168 = por %p166, %p167
      %p170 = scmp.ne.s32.totalorder %s155, %s169
      %p171 = scmp.eq.s32.totalorder %s35, 0
      %p172 = por %p170, %p171
      %s174 = sadd.s32 %s173, 1
      %p177 = scmp.eq.s32.totalorder %s29, 1
      %p178 = scmp.ne.s32.totalorder %s173, %s175
      %p179 = scmp.eq.s32.totalorder %s29, 0
      %p180 = por %p178, %p179
      %p181 = scmp.ne.s32.totalorder %s173, %s175
      %p182 = scmp.eq.s32.totalorder %s34, 1
      %p183 = por %p181, %p182
      %p184 = scmp.ne.s32.totalorder %s175, %s176
      %p185 = scmp.eq.s32.totalorder %s34, 0
      %p186 = por %p184, %p185
      %p187 = scmp.ne.s32.totalorder %s175, %s176
      %p188 = scmp.eq.s32.totalorder %s35, 1
      %p189 = por %p187, %p188
      %p191 = scmp.ne.s32.totalorder %s176, %s190
      %p192 = scmp.eq.s32.totalorder %s35, 0
      %p193 = por %p191, %p192
      %s195 = sadd.s32 %s194, 1
      %p198 = scmp.eq.s32.totalorder %s29, 1
      %p199 = scmp.ne.s32.totalorder %s194, %s196
      %p200 = scmp.eq.s32.totalorder %s29, 0
      %p201 = por %p199, %p200
      %p202 = scmp.ne.s32.totalorder %s194, %s196
      %p203 = scmp.eq.s32.totalorder %s34, 1
      %p204 = por %p202, %p203
      %p205 = scmp.ne.s32.totalorder %s196, %s197
      %p206 = scmp.eq.s32.totalorder %s34, 0
      %p207 = por %p205, %p206
      %p208 = scmp.ne.s32.totalorder %s196, %s197
      %p209 = scmp.eq.s32.totalorder %s35, 1
      %p210 = por %p208, %p209
      %p212 = scmp.ne.s32.totalorder %s197, %s211
      %p213 = scmp.eq.s32.totalorder %s35, 0
      %p214 = por %p212, %p213
      %s216 = sadd.s32 %s215, 1
      %p219 = scmp.eq.s32.totalorder %s29, 1
      %p220 = scmp.ne.s32.totalorder %s215, %s217
      %p221 = scmp.eq.s32.totalorder %s29, 0
      %p222 = por %p220, %p221
      %p223 = scmp.ne.s32.totalorder %s215, %s217
      %p224 = scmp.eq.s32.totalorder %s34, 1
      %p225 = por %p223, %p224
      %p226 = scmp.ne.s32.totalorder %s217, %s218
      %p227 = scmp.eq.s32.totalorder %s34, 0
      %p228 = por %p226, %p227
      %p229 = scmp.ne.s32.totalorder %s217, %s218
      %p230 = scmp.eq.s32.totalorder %s35, 1
      %p231 = por %p229, %p230
      %p233 = scmp.ne.s32.totalorder %s218, %s232
      %p234 = scmp.eq.s32.totalorder %s35, 0
      %p235 = por %p233, %p234
      %s237 = sadd.s32 %s236, 1
      %p240 = scmp.eq.s32.totalorder %s29, 1
      %p241 = scmp.ne.s32.totalorder %s236, %s238
      %p242 = scmp.eq.s32.totalorder %s29, 0
      %p243 = por %p241, %p242
      %p244 = scmp.ne.s32.totalorder %s236, %s238
      %p245 = scmp.eq.s32.totalorder %s34, 1
      %p246 = por %p244, %p245
      %p247 = scmp.ne.s32.totalorder %s238, %s239
      %p248 = scmp.eq.s32.totalorder %s34, 0
      %p249 = por %p247, %p248
      %p250 = scmp.ne.s32.totalorder %s238, %s239
      %p251 = scmp.eq.s32.totalorder %s35, 1
      %p252 = por %p250, %p251
      %p254 = scmp.ne.s32.totalorder %s239, %s253
      %p255 = scmp.eq.s32.totalorder %s35, 0
      %p256 = por %p254, %p255
      %s258 = sadd.s32 %s257, 1
      %p261 = scmp.eq.s32.totalorder %s29, 1
      %p262 = scmp.ne.s32.totalorder %s257, %s259
      %p263 = scmp.eq.s32.totalorder %s29, 0
      %p264 = por %p262, %p263
      %p265 = scmp.ne.s32.totalorder %s257, %s259
      %p266 = scmp.eq.s32.totalorder %s34, 1
      %p267 = por %p265, %p266
      %p268 = scmp.ne.s32.totalorder %s259, %s260
      %p269 = scmp.eq.s32.totalorder %s34, 0
      %p270 = por %p268, %p269
      %p271 = scmp.ne.s32.totalorder %s259, %s260
      %p272 = scmp.eq.s32.totalorder %s35, 1
      %p273 = por %p271, %p272
      %p275 = scmp.ne.s32.totalorder %s260, %s274
      %p276 = scmp.eq.s32.totalorder %s35, 0
      %p277 = por %p275, %p276
      %s279 = sadd.s32 %s278, 1
      %p282 = scmp.eq.s32.totalorder %s29, 1
      %p283 = scmp.ne.s32.totalorder %s278, %s280
      %p284 = scmp.eq.s32.totalorder %s29, 0
      %p285 = por %p283, %p284
      %p286 = scmp.ne.s32.totalorder %s278, %s280
      %p287 = scmp.eq.s32.totalorder %s34, 1
      %p288 = por %p286, %p287
      %p289 = scmp.ne.s32.totalorder %s280, %s281
      %p290 = scmp.eq.s32.totalorder %s34, 0
      %p291 = por %p289, %p290
      %p292 = scmp.ne.s32.totalorder %s280, %s281
      %p293 = scmp.eq.s32.totalorder %s35, 1
      %p294 = por %p292, %p293
      %p296 = scmp.ne.s32.totalorder %s281, %s295
      %p297 = scmp.eq.s32.totalorder %s35, 0
      %p298 = por %p296, %p297
      %s300 = sadd.s32 %s299, 1
      %p303 = scmp.eq.s32.totalorder %s29, 1
      %p304 = scmp.ne.s32.totalorder %s299, %s301
      %p305 = scmp.eq.s32.totalorder %s29, 0
      %p306 = por %p304, %p305
      %p307 = scmp.ne.s32.totalorder %s299, %s301
      %p308 = scmp.eq.s32.totalorder %s34, 1
      %p309 = por %p307, %p308
      %p310 = scmp.ne.s32.totalorder %s301, %s302
      %p311 = scmp.eq.s32.totalorder %s34, 0
      %p312 = por %p310, %p311
      %p313 = scmp.ne.s32.totalorder %s301, %s302
      %p314 = scmp.eq.s32.totalorder %s35, 1
      %p315 = por %p313, %p314
      %p317 = scmp.ne.s32.totalorder %s302, %s316
      %p318 = scmp.eq.s32.totalorder %s35, 0
      %p319 = por %p317, %p318
      %s321 = sadd.s32 %s320, 1
      %p324 = scmp.eq.s32.totalorder %s29, 1
      %p325 = scmp.ne.s32.totalorder %s320, %s322
      %p326 = scmp.eq.s32.totalorder %s29, 0
      %p327 = por %p325, %p326
      %p328 = scmp.ne.s32.totalorder %s320, %s322
      %p329 = scmp.eq.s32.totalorder %s34, 1
      %p330 = por %p328, %p329
      %p331 = scmp.ne.s32.totalorder %s322, %s323
      %p332 = scmp.eq.s32.totalorder %s34, 0
      %p333 = por %p331, %p332
      %p334 = scmp.ne.s32.totalorder %s322, %s323
      %p335 = scmp.eq.s32.totalorder %s35, 1
      %p336 = por %p334, %p335
      %p338 = scmp.ne.s32.totalorder %s323, %s337
      %p339 = scmp.eq.s32.totalorder %s35, 0
      %p340 = por %p338, %p339
      %s342 = sadd.s32 %s341, 1
      %p345 = scmp.eq.s32.totalorder %s29, 1
      %p346 = scmp.ne.s32.totalorder %s341, %s343
      %p347 = scmp.eq.s32.totalorder %s29, 0
      %p348 = por %p346, %p347
      %p349 = scmp.ne.s32.totalorder %s341, %s343
      %p350 = scmp.eq.s32.totalorder %s34, 1
      %p351 = por %p349, %p350
      %p352 = scmp.ne.s32.totalorder %s343, %s344
      %p353 = scmp.eq.s32.totalorder %s34, 0
      %p354 = por %p352, %p353
      %p355 = scmp.ne.s32.totalorder %s343, %s344
      %p356 = scmp.eq.s32.totalorder %s35, 1
      %p357 = por %p355, %p356
      %p359 = scmp.ne.s32.totalorder %s344, %s358
      %p360 = scmp.eq.s32.totalorder %s35, 0
      %p361 = por %p359, %p360
      %s363 = sadd.s32 %s362, 1
      %p366 = scmp.eq.s32.totalorder %s29, 1
      %p367 = scmp.ne.s32.totalorder %s362, %s364
      %p368 = scmp.eq.s32.totalorder %s29, 0
      %p369 = por %p367, %p368
      %p370 = scmp.ne.s32.totalorder %s362, %s364
      %p371 = scmp.eq.s32.totalorder %s34, 1
      %p372 = por %p370, %p371
      %p373 = scmp.ne.s32.totalorder %s364, %s365
      %p374 = scmp.eq.s32.totalorder %s34, 0
      %p375 = por %p373, %p374
      %p376 = scmp.ne.s32.totalorder %s364, %s365
      %p377 = scmp.eq.s32.totalorder %s35, 1
      %p378 = por %p376, %p377
      %p380 = scmp.ne.s32.totalorder %s365, %s379
      %p381 = scmp.eq.s32.totalorder %s35, 0
      %p382 = por %p380, %p381
      %s384 = sadd.s32 %s383, 1
      %p387 = scmp.eq.s32.totalorder %s29, 1
      %p388 = scmp.ne.s32.totalorder %s383, %s385
      %p389 = scmp.eq.s32.totalorder %s29, 0
      %p390 = por %p388, %p389
      %p391 = scmp.ne.s32.totalorder %s383, %s385
      %p392 = scmp.eq.s32.totalorder %s34, 1
      %p393 = por %p391, %p392
      %p394 = scmp.ne.s32.totalorder %s385, %s386
      %p395 = scmp.eq.s32.totalorder %s34, 0
      %p396 = por %p394, %p395
      %p397 = scmp.ne.s32.totalorder %s385, %s386
      %p398 = scmp.eq.s32.totalorder %s35, 1
      %p399 = por %p397, %p398
      %p401 = scmp.ne.s32.totalorder %s386, %s400
      %p402 = scmp.eq.s32.totalorder %s35, 0
      %p403 = por %p401, %p402
      %s405 = sadd.s32 %s404, 1
      %p408 = scmp.eq.s32.totalorder %s29, 1
      %p409 = scmp.ne.s32.totalorder %s404, %s406
      %p410 = scmp.eq.s32.totalorder %s29, 0
      %p411 = por %p409, %p410
      %p412 = scmp.ne.s32.totalorder %s404, %s406
      %p413 = scmp.eq.s32.totalorder %s34, 1
      %p414 = por %p412, %p413
      %p415 = scmp.ne.s32.totalorder %s406, %s407
      %p416 = scmp.eq.s32.totalorder %s34, 0
      %p417 = por %p415, %p416
      %p418 = scmp.ne.s32.totalorder %s406, %s407
      %p419 = scmp.eq.s32.totalorder %s35, 1
      %p420 = por %p418, %p419
      %p422 = scmp.ne.s32.totalorder %s407, %s421
      %p423 = scmp.eq.s32.totalorder %s35, 0
      %p424 = por %p422, %p423
      %s426 = sadd.s32 %s425, 1
      %p429 = scmp.eq.s32.totalorder %s29, 1
      %p430 = scmp.ne.s32.totalorder %s425, %s427
      %p431 = scmp.eq.s32.totalorder %s29, 0
      %p432 = por %p430, %p431
      %p433 = scmp.ne.s32.totalorder %s425, %s427
      %p434 = scmp.eq.s32.totalorder %s34, 1
      %p435 = por %p433, %p434
      %p436 = scmp.ne.s32.totalorder %s427, %s428
      %p437 = scmp.eq.s32.totalorder %s34, 0
      %p438 = por %p436, %p437
      %p439 = scmp.ne.s32.totalorder %s427, %s428
      %p440 = scmp.eq.s32.totalorder %s35, 1
      %p441 = por %p439, %p440
      %p443 = scmp.ne.s32.totalorder %s428, %s442
      %p444 = scmp.eq.s32.totalorder %s35, 0
      %p445 = por %p443, %p444
      %s447 = sadd.s32 %s446, 1
      %p450 = scmp.eq.s32.totalorder %s29, 1
      %p451 = scmp.ne.s32.totalorder %s446, %s448
      %p452 = scmp.eq.s32.totalorder %s29, 0
      %p453 = por %p451, %p452
      %p454 = scmp.ne.s32.totalorder %s446, %s448
      %p455 = scmp.eq.s32.totalorder %s34, 1
      %p456 = por %p454, %p455
      %p457 = scmp.ne.s32.totalorder %s448, %s449
      %p458 = scmp.eq.s32.totalorder %s34, 0
      %p459 = por %p457, %p458
      %p460 = scmp.ne.s32.totalorder %s448, %s449
      %p461 = scmp.eq.s32.totalorder %s35, 1
      %p462 = por %p460, %p461
      %p464 = scmp.ne.s32.totalorder %s449, %s463
      %p465 = scmp.eq.s32.totalorder %s35, 0
      %p466 = por %p464, %p465
      %s467 = ssub.s32 %s29, %s36
      %p468 = scmp.eq.s32.totalorder %s467, 0
      %s470 = sadd.s32 %s469, 1
      %s471 = scalar_select %p468, %s469, %s470
      %p474 = pneg %p468
      %p475 = scmp.eq.s32.totalorder %s29, 1
      %p476 = por %p474, %p475
      %p477 = scmp.ne.s32.totalorder %s469, %s472
      %p478 = scmp.eq.s32.totalorder %s29, 0
      %p479 = por %p477, %p478
      %p480 = scmp.ne.s32.totalorder %s469, %s472
      %p481 = scmp.eq.s32.totalorder %s34, 1
      %p482 = por %p480, %p481
      %p483 = scmp.ne.s32.totalorder %s472, %s473
      %p484 = scmp.eq.s32.totalorder %s34, 0
      %p485 = por %p483, %p484
      %p486 = scmp.ne.s32.totalorder %s472, %s473
      %p487 = scmp.eq.s32.totalorder %s35, 1
      %p488 = por %p486, %p487
      %p490 = scmp.ne.s32.totalorder %s473, %s489
      %p491 = scmp.eq.s32.totalorder %s35, 0
      %p492 = por %p490, %p491
      %p493 = scmp.le.s32.totalorder 1, %s29
      %p494 = scmp.lt.s32.totalorder %s29, 3
      %p495 = pnand %p493, %p494
      %p496 = pneg %p495
      // Predicated region
      $region9: #{tpu_custom_call.1} parent=5 // pred_check
        _
      $region10: #{tpu_custom_call.1} parent=5 // pred_check_branch
        %498 = sbr.rel (%p495) target = $region12
      $region11: #{tpu_custom_call.1} parent=5 // pred_region
        %s499 = ssub.s32 %s29, 1
        // Predicated region
        $region13: #{tpu_custom_call.1} parent=11 // pred_check
          %p500 = pneg %p102
        $region14: #{tpu_custom_call.1} parent=11 // pred_check_branch
          %502 = sbr.rel (%p500) target = $region16
        $region15: #{tpu_custom_call.1} parent=11 // pred_region
          _
        $region16: #{tpu_custom_call.1} parent=11 // pred_fallthru
          _
        // Predicated region
        $region17: #{tpu_custom_call.1} parent=11 // pred_check
          %p503 = pneg %p123
        $region18: #{tpu_custom_call.1} parent=11 // pred_check_branch
          %505 = sbr.rel (%p503) target = $region20
        $region19: #{tpu_custom_call.1} parent=11 // pred_region
          _
        $region20: #{tpu_custom_call.1} parent=11 // pred_fallthru
          _
        // Predicated region
        $region21: #{tpu_custom_call.1} parent=11 // pred_check
          %p506 = pneg %p144
        $region22: #{tpu_custom_call.1} parent=11 // pred_check_branch
          %508 = sbr.rel (%p506) target = $region24
        $region23: #{tpu_custom_call.1} parent=11 // pred_region
          _
        $region24: #{tpu_custom_call.1} parent=11 // pred_fallthru
          _
        // Predicated region
        $region25: #{tpu_custom_call.1} parent=11 // pred_check
          %p509 = pneg %p165
        $region26: #{tpu_custom_call.1} parent=11 // pred_check_branch
          %511 = sbr.rel (%p509) target = $region28
        $region27: #{tpu_custom_call.1} parent=11 // pred_region
          _
        $region28: #{tpu_custom_call.1} parent=11 // pred_fallthru
          _
        // Predicated region
        $region29: #{tpu_custom_call.1} parent=11 // pred_check
          %p512 = pneg %p186
        $region30: #{tpu_custom_call.1} parent=11 // pred_check_branch
          %514 = sbr.rel (%p512) target = $region32
        $region31: #{tpu_custom_call.1} parent=11 // pred_region
          _
        $region32: #{tpu_custom_call.1} parent=11 // pred_fallthru
          _
        // Predicated region
        $region33: #{tpu_custom_call.1} parent=11 // pred_check
          %p515 = pneg %p207
        $region34: #{tpu_custom_call.1} parent=11 // pred_check_branch
          %517 = sbr.rel (%p515) target = $region36
        $region35: #{tpu_custom_call.1} parent=11 // pred_region
          _
        $region36: #{tpu_custom_call.1} parent=11 // pred_fallthru
          _
        // Predicated region
        $region37: #{tpu_custom_call.1} parent=11 // pred_check
          %p518 = pneg %p228
        $region38: #{tpu_custom_call.1} parent=11 // pred_check_branch
          %520 = sbr.rel (%p518) target = $region40
        $region39: #{tpu_custom_call.1} parent=11 // pred_region
          _
        $region40: #{tpu_custom_call.1} parent=11 // pred_fallthru
          _
        // Predicated region
        $region41: #{tpu_custom_call.1} parent=11 // pred_check
          %p521 = pneg %p249
        $region42: #{tpu_custom_call.1} parent=11 // pred_check_branch
          %523 = sbr.rel (%p521) target = $region44
        $region43: #{tpu_custom_call.1} parent=11 // pred_region
          _
        $region44: #{tpu_custom_call.1} parent=11 // pred_fallthru
          _
        // Predicated region
        $region45: #{tpu_custom_call.1} parent=11 // pred_check
          %p524 = pneg %p270
        $region46: #{tpu_custom_call.1} parent=11 // pred_check_branch
          %526 = sbr.rel (%p524) target = $region48
        $region47: #{tpu_custom_call.1} parent=11 // pred_region
          _
        $region48: #{tpu_custom_call.1} parent=11 // pred_fallthru
          _
        // Predicated region
        $region49: #{tpu_custom_call.1} parent=11 // pred_check
          %p527 = pneg %p291
        $region50: #{tpu_custom_call.1} parent=11 // pred_check_branch
          %529 = sbr.rel (%p527) target = $region52
        $region51: #{tpu_custom_call.1} parent=11 // pred_region
          _
        $region52: #{tpu_custom_call.1} parent=11 // pred_fallthru
          _
        // Predicated region
        $region53: #{tpu_custom_call.1} parent=11 // pred_check
          %p530 = pneg %p312
        $region54: #{tpu_custom_call.1} parent=11 // pred_check_branch
          %532 = sbr.rel (%p530) target = $region56
        $region55: #{tpu_custom_call.1} parent=11 // pred_region
          _
        $region56: #{tpu_custom_call.1} parent=11 // pred_fallthru
          _
        // Predicated region
        $region57: #{tpu_custom_call.1} parent=11 // pred_check
          %p533 = pneg %p333
        $region58: #{tpu_custom_call.1} parent=11 // pred_check_branch
          %535 = sbr.rel (%p533) target = $region60
        $region59: #{tpu_custom_call.1} parent=11 // pred_region
          _
        $region60: #{tpu_custom_call.1} parent=11 // pred_fallthru
          _
        // Predicated region
        $region61: #{tpu_custom_call.1} parent=11 // pred_check
          %p536 = pneg %p354
        $region62: #{tpu_custom_call.1} parent=11 // pred_check_branch
          %538 = sbr.rel (%p536) target = $region64
        $region63: #{tpu_custom_call.1} parent=11 // pred_region
          _
        $region64: #{tpu_custom_call.1} parent=11 // pred_fallthru
          _
        // Predicated region
        $region65: #{tpu_custom_call.1} parent=11 // pred_check
          %p539 = pneg %p375
        $region66: #{tpu_custom_call.1} parent=11 // pred_check_branch
          %541 = sbr.rel (%p539) target = $region68
        $region67: #{tpu_custom_call.1} parent=11 // pred_region
          _
        $region68: #{tpu_custom_call.1} parent=11 // pred_fallthru
          _
        // Predicated region
        $region69: #{tpu_custom_call.1} parent=11 // pred_check
          %p542 = pneg %p396
        $region70: #{tpu_custom_call.1} parent=11 // pred_check_branch
          %544 = sbr.rel (%p542) target = $region72
        $region71: #{tpu_custom_call.1} parent=11 // pred_region
          _
        $region72: #{tpu_custom_call.1} parent=11 // pred_fallthru
          _
        // Predicated region
        $region73: #{tpu_custom_call.1} parent=11 // pred_check
          %p545 = pneg %p417
        $region74: #{tpu_custom_call.1} parent=11 // pred_check_branch
          %547 = sbr.rel (%p545) target = $region76
        $region75: #{tpu_custom_call.1} parent=11 // pred_region
          _
        $region76: #{tpu_custom_call.1} parent=11 // pred_fallthru
          _
        // Predicated region
        $region77: #{tpu_custom_call.1} parent=11 // pred_check
          %p548 = pneg %p438
        $region78: #{tpu_custom_call.1} parent=11 // pred_check_branch
          %550 = sbr.rel (%p548) target = $region80
        $region79: #{tpu_custom_call.1} parent=11 // pred_region
          _
        $region80: #{tpu_custom_call.1} parent=11 // pred_fallthru
          _
        // Predicated region
        $region81: #{tpu_custom_call.1} parent=11 // pred_check
          %p551 = pneg %p459
        $region82: #{tpu_custom_call.1} parent=11 // pred_check_branch
          %553 = sbr.rel (%p551) target = $region84
        $region83: #{tpu_custom_call.1} parent=11 // pred_region
          _
        $region84: #{tpu_custom_call.1} parent=11 // pred_fallthru
          _
      $region12: #{tpu_custom_call.1} parent=5 // pred_fallthru
        _
      %p554 = scmp.lt.s32.totalorder %s29, 2
      // Predicated region
      $region85: #{tpu_custom_call.1} parent=5 // pred_check
        %p555 = pneg %p554
      $region86: #{tpu_custom_call.1} parent=5 // pred_check_branch
        %557 = sbr.rel (%p555) target = $region88
      $region87: #{tpu_custom_call.1} parent=5 // pred_region
        // Predicated region
        $region89: #{tpu_custom_call.1} parent=87 // pred_check
          %p558 = pneg %p49
        $region90: #{tpu_custom_call.1} parent=87 // pred_check_branch
          %560 = sbr.rel (%p558) target = $region92
        $region91: #{tpu_custom_call.1} parent=87 // pred_region
          %p561 = scmp.lt.s32.totalorder %s29, 1
          %s562 = scalar_select %p561, %s29, 1
          %s563 = smul.addr %s562, 8
          %s564 = scalar_lea.vmem %s0, %s563
        $region92: #{tpu_custom_call.1} parent=87 // pred_fallthru
          _
        // Predicated region
        $region93: #{tpu_custom_call.1} parent=87 // pred_check
          %p565 = pneg %p75
        $region94: #{tpu_custom_call.1} parent=87 // pred_check_branch
          %567 = sbr.rel (%p565) target = $region96
        $region95: #{tpu_custom_call.1} parent=87 // pred_region
          %p568 = scmp.lt.s32.totalorder %s29, 1
          %s569 = scalar_select %p568, %s29, 1
          %s570 = scalar_lea.vmem %s1, %s569
        $region96: #{tpu_custom_call.1} parent=87 // pred_fallthru
          _
      $region88: #{tpu_custom_call.1} parent=5 // pred_fallthru
        _
      %p571 = scmp.le.s32.totalorder 1, %s29
      %p572 = scmp.lt.s32.totalorder %s29, 3
      %p573 = pnand %p571, %p572
      %p574 = pneg %p573
      // Predicated region
      $region97: #{tpu_custom_call.1} parent=5 // pred_check
        _
      $region98: #{tpu_custom_call.1} parent=5 // pred_check_branch
        %576 = sbr.rel (%p573) target = $region100
      $region99: #{tpu_custom_call.1} parent=5 // pred_region
        %s577 = ssub.s32 %s29, 1
        %p578 = scmp.lt.s32.totalorder %s34, 1
        %s579 = scalar_select %p578, %s34, 1
        %s580 = smul.addr %s579, 8
        %s581 = scalar_lea.vmem %s0, %s580
        %p582 = pneg %p55
        %p583 = pneg %p52
        %p584 = scmp.lt.s32.totalorder %s34, 1
        %s585 = scalar_select %p584, %s34, 1
        %s586 = scalar_lea.vmem %s1, %s585
        %p587 = pneg %p81
        %p588 = pneg %p78
        %p589 = pneg %p102
        %p590 = pneg %p99
        %p591 = pneg %p123
        %p592 = pneg %p120
        %p593 = pneg %p144
        %p594 = pneg %p141
        %p595 = pneg %p165
        %p596 = pneg %p162
        %p597 = pneg %p186
        %p598 = pneg %p183
        %p599 = pneg %p207
        %p600 = pneg %p204
        %p601 = pneg %p228
        %p602 = pneg %p225
        %p603 = pneg %p249
        %p604 = pneg %p246
        %p605 = pneg %p270
        %p606 = pneg %p267
        %p607 = pneg %p291
        %p608 = pneg %p288
        %p609 = pneg %p312
        %p610 = pneg %p309
        %p611 = pneg %p333
        %p612 = pneg %p330
        %p613 = pneg %p354
        %p614 = pneg %p351
        %p615 = pneg %p375
        %p616 = pneg %p372
        %p617 = pneg %p396
        %p618 = pneg %p393
        %p619 = pneg %p417
        %p620 = pneg %p414
        %p621 = pneg %p438
        %p622 = pneg %p435
        %p623 = pneg %p459
        %p624 = pneg %p456
        %p625 = pneg %p485
        %p626 = pneg %p482
        %s627 = sand.u32 %s472, 1
        %s628 = scalar_lea.sflag [#allocation3], %s627
        %s629 = sand.u32 %s472, 1
        %s630 = scalar_lea.vmem [#allocation2], %s629
        %p631 = scmp.lt.s32.totalorder %s34, 1
        %s632 = scalar_select %p631, %s34, 1
        %s633 = smul.addr %s632, 8
        %s634 = scalar_lea.vmem %s0, %s633
        %p635 = scmp.lt.s32.totalorder %s34, 1
        %s636 = scalar_select %p635, %s34, 1
        %s637 = scalar_lea.vmem %s1, %s636
        %v639 = vld [vmem:[%s637] sm:$0x1]
        %v640 = vld [vmem:[%s634] sm:$0xff]
        %v641 = vld [vmem:[%s2] sm:$0x1]
        %v642 = vld [vmem:[%s3] sm:$0x1]
        %vm643 = vcmask 261120
        %v644 = vsel %vm643, %v640, 0.0
        %645 = vadd.xlane.f32.xlu0 %v644
        %v646 = vpop.xlane.xlu0 %645
        %v647 = vrcp.pop 32.0
        %v648 = vmul.f32 %v646, %v647
        %v649 = vsub.f32 %v640, %v648
        %v650 = vmul.f32 %v649, %v649
        %v651 = vsel %vm643, %v650, 0.0
        %652 = vadd.xlane.f32.xlu0 %v651
        %v653 = vpop.xlane.xlu0 %652
        %v654 = vmul.f32 %v653, %v647
        %v655 = vadd.f32 %v654, 1e-12
        %v656 = vrsqrt.pop %v655
        %v657 = vmul.f32 %v649, %v656
        %v659 = vlaneseq
        %v660 = vshrl.u32 %v659, 7
        %v661 = vsub.s32 0, %v660
        %v662 = vrot.slane %v641, %v661
        %v664 = vmul.f32 %v657, %v662
        %v666 = vlaneseq
        %v667 = vshrl.u32 %v666, 7
        %v668 = vsub.s32 0, %v667
        %v669 = vrot.slane %v642, %v668
        %v671 = vadd.f32 %v664, %v669
        %v672 = vpack.c.bf16 %v671, %v671
        %v673 = vld [vmem:[%s4] sm:$0xf]
        %v674 = vld [vmem:[%s4 + $0x4] sm:$0xf]
        %v675 = vld [vmem:[%s4 + $0x8] sm:$0xf]
        %v676 = vld [vmem:[%s4 + $0xc] sm:$0xf]
        %v677 = vld [vmem:[%s5] sm:$0x1]
        %v679 = vlaneseq
        %v680 = vshrl.u32 %v679, 7
        %v681 = vsub.s32 0, %v680
        %v682 = vrot.slane %v677, %v681
        %v688 = vunpack.c.l.b16 %v673
        %v689 = vunpack.c.l.b16 %v674
        %v690 = vunpack.c.l.b16 %v675
        %v691 = vunpack.c.l.b16 %v676
        %v692 = vpack.c.b16 %v689, %v688
        %v693 = vpack.c.b16 %v691, %v690
        %v697 = vsel %vm643, %v672, 0
        %699 = vmatprep.subr.bf16.mxu0 0
        %700 = vmatpush1.bf16.msra.mxu0 0
        %701 = vmatprep.subr.bf16.mxu0 0
        %702 = vmatpush1.bf16.msra.mxu0 0
        %703 = vmatprep.subr.bf16.mxu0 0
        %704 = vmatpush1.bf16.msra.mxu0 0
        %705 = vmatprep.subr.bf16.mxu0 0
        %706 = vmatpush1.bf16.msra.mxu0 0
        %707 = vmatprep.subr.bf16.mxu0 0
        %708 = vmatpush1.bf16.msra.mxu0 0
        %709 = vmatprep.subr.bf16.mxu0 0
        %710 = vmatpush1.bf16.msra.mxu0 0
        %711 = vmatprep.subr.bf16.mxu0 0
        %712 = vmatpush1.bf16.msra.mxu0 %v693
        %713 = vmatprep.subr.bf16.mxu0 0
        %714 = vmatpush1.bf16.msra.mxu0 %v692
        %715 = vmatprep.subr.bf16.mxu0 0
        %716 = vmatpush2.bf16.msra.mxu0 0
        %717 = vmatprep.subr.bf16.mxu0 0
        %718 = vmatpush2.bf16.msra.mxu0 0
        %719 = vmatprep.subr.bf16.mxu0 0
        %720 = vmatpush2.bf16.msra.mxu0 0
        %721 = vmatprep.subr.bf16.mxu0 0
        %722 = vmatpush2.bf16.msra.mxu0 0
        %723 = vmatprep.subr.bf16.mxu0 0
        %724 = vmatpush2.bf16.msra.mxu0 0
        %725 = vmatprep.subr.bf16.mxu0 0
        %726 = vmatpush2.bf16.msra.mxu0 0
        %727 = vmatprep.subr.bf16.mxu0 0
        %728 = vmatpush2.bf16.msra.mxu0 0
        %729 = vmatprep.subr.bf16.mxu0 0
        %730 = vmatpush2.bf16.msra.mxu0 0
        %731 = vmatprep.mubr.bf16.mxu0 0
        %732 = vmatmul.mubr.bf16.gmra.mxu0 %v697
        %v733 = vpop.f32.mrf.mxu0
        %v734 = vadd.f32 %v682, %v733
        %v735 = vpop.f32.mrf.mxu0
        %v736 = vpop.f32.mrf.mxu0
        %v737 = vpop.f32.mrf.mxu0
        %738 = vdwg.mxu0
        %740 = vrot.lane.b32.xlu0 %v734, 120
        %v741 = vpop.permute.xlu0 %740
        %743 = vrot.lane.b32.xlu0 %v734, 112
        %v744 = vpop.permute.xlu0 %743
        %746 = vrot.lane.b32.xlu0 %v734, 104
        %v747 = vpop.permute.xlu0 %746
        %v749 = vcombine.low %v734, %v744
        %v750 = vcombine.high %v734, %v744
        %v752 = vunpack.c.l.s4 1983009808
        %v753 = vunpack.c.0.s8 %v752
        %v754 = vlaneseq
        %v755 = vshrl.u32 %v754, 7
        %v756 = vsub.s32 %v753, %v755
        %v757 = vrot.slane %v749, %v756
        %v759 = vunpack.c.l.s4 1983009808
        %v760 = vunpack.c.0.s8 %v759
        %v761 = vlaneseq
        %v762 = vshrl.u32 %v761, 7
        %v763 = vsub.s32 %v760, %v762
        %v764 = vrot.slane %v750, %v763
        %v765 = vcombine.low %v741, %v747
        %v766 = vcombine.high %v741, %v747
        %v768 = vunpack.c.l.s4 1983009808
        %v769 = vunpack.c.0.s8 %v768
        %v770 = vlaneseq
        %v771 = vshrl.u32 %v770, 7
        %v772 = vsub.s32 %v769, %v771
        %v773 = vrot.slane %v765, %v772
        %v775 = vunpack.c.l.s4 1983009808
        %v776 = vunpack.c.0.s8 %v775
        %v777 = vlaneseq
        %v778 = vshrl.u32 %v777, 7
        %v779 = vsub.s32 %v776, %v778
        %v780 = vrot.slane %v766, %v779
        %v781 = vcombine.low %v757, %v773
        %v782 = vcombine.high %v757, %v773
        %v784 = vunpack.c.l.s4 1934713408
        %v785 = vunpack.c.0.s8 %v784
        %v786 = vlaneseq
        %v787 = vshrl.u32 %v786, 7
        %v788 = vsub.s32 %v785, %v787
        %v789 = vrot.slane %v781, %v788
        %v791 = vunpack.c.l.s4 1934713408
        %v792 = vunpack.c.0.s8 %v791
        %v793 = vlaneseq
        %v794 = vshrl.u32 %v793, 7
        %v795 = vsub.s32 %v792, %v794
        %v796 = vrot.slane %v782, %v795
        %v797 = vcombine.low %v764, %v780
        %v798 = vcombine.high %v764, %v780
        %v800 = vunpack.c.l.s4 1934713408
        %v801 = vunpack.c.0.s8 %v800
        %v802 = vlaneseq
        %v803 = vshrl.u32 %v802, 7
        %v804 = vsub.s32 %v801, %v803
        %v805 = vrot.slane %v797, %v804
        %v807 = vunpack.c.l.s4 1934713408
        %v808 = vunpack.c.0.s8 %v807
        %v809 = vlaneseq
        %v810 = vshrl.u32 %v809, 7
        %v811 = vsub.s32 %v808, %v810
        %v812 = vrot.slane %v798, %v811
        %v813 = vcombine.high %v789, 0.0
        %v814 = vcombine.high %v796, 0.0
        %v815 = vcombine.high %v805, 0.0
        %v816 = vcombine.high %v812, 0.0
        %817 = vrot.lane.b32.xlu0 %v734, 96
        %v818 = vpop.permute.xlu0 %817
        %819 = vrot.lane.b32.xlu0 %v741, 96
        %v820 = vpop.permute.xlu0 %819
        %821 = vrot.lane.b32.xlu0 %v744, 96
        %v822 = vpop.permute.xlu0 %821
        %823 = vrot.lane.b32.xlu0 %v747, 96
        %v824 = vpop.permute.xlu0 %823
        %v829 = vcombine.low %v818, %v822
        %v830 = vcombine.high %v818, %v822
        %v832 = vunpack.c.l.s4 1983009808
        %v833 = vunpack.c.0.s8 %v832
        %v834 = vlaneseq
        %v835 = vshrl.u32 %v834, 7
        %v836 = vsub.s32 %v833, %v835
        %v837 = vrot.slane %v829, %v836
        %v839 = vunpack.c.l.s4 1983009808
        %v840 = vunpack.c.0.s8 %v839
        %v841 = vlaneseq
        %v842 = vshrl.u32 %v841, 7
        %v843 = vsub.s32 %v840, %v842
        %v844 = vrot.slane %v830, %v843
        %v845 = vcombine.low %v820, %v824
        %v846 = vcombine.high %v820, %v824
        %v848 = vunpack.c.l.s4 1983009808
        %v849 = vunpack.c.0.s8 %v848
        %v850 = vlaneseq
        %v851 = vshrl.u32 %v850, 7
        %v852 = vsub.s32 %v849, %v851
        %v853 = vrot.slane %v845, %v852
        %v855 = vunpack.c.l.s4 1983009808
        %v856 = vunpack.c.0.s8 %v855
        %v857 = vlaneseq
        %v858 = vshrl.u32 %v857, 7
        %v859 = vsub.s32 %v856, %v858
        %v860 = vrot.slane %v846, %v859
        %v861 = vcombine.low %v837, %v853
        %v862 = vcombine.high %v837, %v853
        %v864 = vunpack.c.l.s4 1934713408
        %v865 = vunpack.c.0.s8 %v864
        %v866 = vlaneseq
        %v867 = vshrl.u32 %v866, 7
        %v868 = vsub.s32 %v865, %v867
        %v869 = vrot.slane %v861, %v868
        %v871 = vunpack.c.l.s4 1934713408
        %v872 = vunpack.c.0.s8 %v871
        %v873 = vlaneseq
        %v874 = vshrl.u32 %v873, 7
        %v875 = vsub.s32 %v872, %v874
        %v876 = vrot.slane %v862, %v875
        %v877 = vcombine.low %v844, %v860
        %v878 = vcombine.high %v844, %v860
        %v880 = vunpack.c.l.s4 1934713408
        %v881 = vunpack.c.0.s8 %v880
        %v882 = vlaneseq
        %v883 = vshrl.u32 %v882, 7
        %v884 = vsub.s32 %v881, %v883
        %v885 = vrot.slane %v877, %v884
        %v887 = vunpack.c.l.s4 1934713408
        %v888 = vunpack.c.0.s8 %v887
        %v889 = vlaneseq
        %v890 = vshrl.u32 %v889, 7
        %v891 = vsub.s32 %v888, %v890
        %v892 = vrot.slane %v878, %v891
        %v893 = vcombine.high %v869, 0.0
        %v894 = vcombine.high %v876, 0.0
        %v895 = vcombine.high %v885, 0.0
        %v896 = vcombine.high %v892, 0.0
        %897 = vrot.lane.b32.xlu0 %v734, 64
        %v898 = vpop.permute.xlu0 %897
        %899 = vrot.lane.b32.xlu0 %v741, 64
        %v900 = vpop.permute.xlu0 %899
        %901 = vrot.lane.b32.xlu0 %v744, 64
        %v902 = vpop.permute.xlu0 %901
        %903 = vrot.lane.b32.xlu0 %v747, 64
        %v904 = vpop.permute.xlu0 %903
        %v909 = vcombine.low %v898, %v902
        %v910 = vcombine.high %v898, %v902
        %v912 = vunpack.c.l.s4 1983009808
        %v913 = vunpack.c.0.s8 %v912
        %v914 = vlaneseq
        %v915 = vshrl.u32 %v914, 7
        %v916 = vsub.s32 %v913, %v915
        %v917 = vrot.slane %v909, %v916
        %v919 = vunpack.c.l.s4 1983009808
        %v920 = vunpack.c.0.s8 %v919
        %v921 = vlaneseq
        %v922 = vshrl.u32 %v921, 7
        %v923 = vsub.s32 %v920, %v922
        %v924 = vrot.slane %v910, %v923
        %v925 = vcombine.low %v900, %v904
        %v926 = vcombine.high %v900, %v904
        %v928 = vunpack.c.l.s4 1983009808
        %v929 = vunpack.c.0.s8 %v928
        %v930 = vlaneseq
        %v931 = vshrl.u32 %v930, 7
        %v932 = vsub.s32 %v929, %v931
        %v933 = vrot.slane %v925, %v932
        %v935 = vunpack.c.l.s4 1983009808
        %v936 = vunpack.c.0.s8 %v935
        %v937 = vlaneseq
        %v938 = vshrl.u32 %v937, 7
        %v939 = vsub.s32 %v936, %v938
        %v940 = vrot.slane %v926, %v939
        %v941 = vcombine.low %v917, %v933
        %v942 = vcombine.high %v917, %v933
        %v944 = vunpack.c.l.s4 1934713408
        %v945 = vunpack.c.0.s8 %v944
        %v946 = vlaneseq
        %v947 = vshrl.u32 %v946, 7
        %v948 = vsub.s32 %v945, %v947
        %v949 = vrot.slane %v941, %v948
        %v951 = vunpack.c.l.s4 1934713408
        %v952 = vunpack.c.0.s8 %v951
        %v953 = vlaneseq
        %v954 = vshrl.u32 %v953, 7
        %v955 = vsub.s32 %v952, %v954
        %v956 = vrot.slane %v942, %v955
        %v957 = vcombine.low %v924, %v940
        %v958 = vcombine.high %v924, %v940
        %v960 = vunpack.c.l.s4 1934713408
        %v961 = vunpack.c.0.s8 %v960
        %v962 = vlaneseq
        %v963 = vshrl.u32 %v962, 7
        %v964 = vsub.s32 %v961, %v963
        %v965 = vrot.slane %v957, %v964
        %v967 = vunpack.c.l.s4 1934713408
        %v968 = vunpack.c.0.s8 %v967
        %v969 = vlaneseq
        %v970 = vshrl.u32 %v969, 7
        %v971 = vsub.s32 %v968, %v970
        %v972 = vrot.slane %v958, %v971
        %v973 = vcombine.high %v949, 0.0
        %v974 = vcombine.high %v956, 0.0
        %v975 = vcombine.high %v965, 0.0
        %v976 = vcombine.high %v972, 0.0
        %v977 = vcombine.low %v789, %v796
        %v979 = vunpack.c.l.s4 1983009808
        %v980 = vunpack.c.0.s8 %v979
        %v981 = vlaneseq
        %v982 = vshrl.u32 %v981, 7
        %v983 = vsub.s32 %v980, %v982
        %v984 = vrot.slane %v977, %v983
        %v985 = vcombine.low %v813, %v814
        %v987 = vunpack.c.l.s4 1983009808
        %v988 = vunpack.c.0.s8 %v987
        %v989 = vlaneseq
        %v990 = vshrl.u32 %v989, 7
        %v991 = vsub.s32 %v988, %v990
        %v992 = vrot.slane %v985, %v991
        %v993 = vcombine.low %v805, %v812
        %v995 = vunpack.c.l.s4 1983009808
        %v996 = vunpack.c.0.s8 %v995
        %v997 = vlaneseq
        %v998 = vshrl.u32 %v997, 7
        %v999 = vsub.s32 %v996, %v998
        %v1000 = vrot.slane %v993, %v999
        %v1001 = vcombine.low %v815, %v816
        %v1003 = vunpack.c.l.s4 1983009808
        %v1004 = vunpack.c.0.s8 %v1003
        %v1005 = vlaneseq
        %v1006 = vshrl.u32 %v1005, 7
        %v1007 = vsub.s32 %v1004, %v1006
        %v1008 = vrot.slane %v1001, %v1007
        %v1009 = vcombine.low %v984, %v992
        %v1010 = vcombine.high %v984, %v992
        %v1012 = vunpack.c.l.s4 1934713408
        %v1013 = vunpack.c.0.s8 %v1012
        %v1014 = vlaneseq
        %v1015 = vshrl.u32 %v1014, 7
        %v1016 = vsub.s32 %v1013, %v1015
        %v1017 = vrot.slane %v1009, %v1016
        %v1019 = vunpack.c.l.s4 1934713408
        %v1020 = vunpack.c.0.s8 %v1019
        %v1021 = vlaneseq
        %v1022 = vshrl.u32 %v1021, 7
        %v1023 = vsub.s32 %v1020, %v1022
        %v1024 = vrot.slane %v1010, %v1023
        %v1025 = vcombine.low %v1000, %v1008
        %v1026 = vcombine.high %v1000, %v1008
        %v1028 = vunpack.c.l.s4 1934713408
        %v1029 = vunpack.c.0.s8 %v1028
        %v1030 = vlaneseq
        %v1031 = vshrl.u32 %v1030, 7
        %v1032 = vsub.s32 %v1029, %v1031
        %v1033 = vrot.slane %v1025, %v1032
        %v1035 = vunpack.c.l.s4 1934713408
        %v1036 = vunpack.c.0.s8 %v1035
        %v1037 = vlaneseq
        %v1038 = vshrl.u32 %v1037, 7
        %v1039 = vsub.s32 %v1036, %v1038
        %v1040 = vrot.slane %v1026, %v1039
        %v1041 = vcombine.low %v1017, %v1033
        %v1042 = vcombine.high %v1017, %v1033
        %v1043 = vcombine.low %v1024, %v1040
        %v1044 = vcombine.high %v1024, %v1040
        %v1045 = vpack.c.bf16 %v1041, %v1041
        %v1046 = vpack.c.bf16 %v1042, %v1042
        %v1047 = vpack.c.bf16 %v1043, %v1043
        %v1048 = vpack.c.bf16 %v1044, %v1044
        %v1049 = vcombine.low %v869, %v876
        %v1051 = vunpack.c.l.s4 1983009808
        %v1052 = vunpack.c.0.s8 %v1051
        %v1053 = vlaneseq
        %v1054 = vshrl.u32 %v1053, 7
        %v1055 = vsub.s32 %v1052, %v1054
        %v1056 = vrot.slane %v1049, %v1055
        %v1057 = vcombine.low %v893, %v894
        %v1059 = vunpack.c.l.s4 1983009808
        %v1060 = vunpack.c.0.s8 %v1059
        %v1061 = vlaneseq
        %v1062 = vshrl.u32 %v1061, 7
        %v1063 = vsub.s32 %v1060, %v1062
        %v1064 = vrot.slane %v1057, %v1063
        %v1065 = vcombine.low %v885, %v892
        %v1067 = vunpack.c.l.s4 1983009808
        %v1068 = vunpack.c.0.s8 %v1067
        %v1069 = vlaneseq
        %v1070 = vshrl.u32 %v1069, 7
        %v1071 = vsub.s32 %v1068, %v1070
        %v1072 = vrot.slane %v1065, %v1071
        %v1073 = vcombine.low %v895, %v896
        %v1075 = vunpack.c.l.s4 1983009808
        %v1076 = vunpack.c.0.s8 %v1075
        %v1077 = vlaneseq
        %v1078 = vshrl.u32 %v1077, 7
        %v1079 = vsub.s32 %v1076, %v1078
        %v1080 = vrot.slane %v1073, %v1079
        %v1081 = vcombine.low %v1056, %v1064
        %v1082 = vcombine.high %v1056, %v1064
        %v1084 = vunpack.c.l.s4 1934713408
        %v1085 = vunpack.c.0.s8 %v1084
        %v1086 = vlaneseq
        %v1087 = vshrl.u32 %v1086, 7
        %v1088 = vsub.s32 %v1085, %v1087
        %v1089 = vrot.slane %v1081, %v1088
        %v1091 = vunpack.c.l.s4 1934713408
        %v1092 = vunpack.c.0.s8 %v1091
        %v1093 = vlaneseq
        %v1094 = vshrl.u32 %v1093, 7
        %v1095 = vsub.s32 %v1092, %v1094
        %v1096 = vrot.slane %v1082, %v1095
        %v1097 = vcombine.low %v1072, %v1080
        %v1098 = vcombine.high %v1072, %v1080
        %v1100 = vunpack.c.l.s4 1934713408
        %v1101 = vunpack.c.0.s8 %v1100
        %v1102 = vlaneseq
        %v1103 = vshrl.u32 %v1102, 7
        %v1104 = vsub.s32 %v1101, %v1103
        %v1105 = vrot.slane %v1097, %v1104
        %v1107 = vunpack.c.l.s4 1934713408
        %v1108 = vunpack.c.0.s8 %v1107
        %v1109 = vlaneseq
        %v1110 = vshrl.u32 %v1109, 7
        %v1111 = vsub.s32 %v1108, %v1110
        %v1112 = vrot.slane %v1098, %v1111
        %v1113 = vcombine.low %v1089, %v1105
        %v1114 = vcombine.high %v1089, %v1105
        %v1115 = vcombine.low %v1096, %v1112
        %v1116 = vcombine.high %v1096, %v1112
        %v1117 = vpack.c.bf16 %v1113, %v1113
        %v1118 = vpack.c.bf16 %v1114, %v1114
        %v1119 = vpack.c.bf16 %v1115, %v1115
        %v1120 = vpack.c.bf16 %v1116, %v1116
        %v1121 = vcombine.low %v949, %v956
        %v1123 = vunpack.c.l.s4 1983009808
        %v1124 = vunpack.c.0.s8 %v1123
        %v1125 = vlaneseq
        %v1126 = vshrl.u32 %v1125, 7
        %v1127 = vsub.s32 %v1124, %v1126
        %v1128 = vrot.slane %v1121, %v1127
        %v1129 = vcombine.low %v973, %v974
        %v1131 = vunpack.c.l.s4 1983009808
        %v1132 = vunpack.c.0.s8 %v1131
        %v1133 = vlaneseq
        %v1134 = vshrl.u32 %v1133, 7
        %v1135 = vsub.s32 %v1132, %v1134
        %v1136 = vrot.slane %v1129, %v1135
        %v1137 = vcombine.low %v965, %v972
        %v1139 = vunpack.c.l.s4 1983009808
        %v1140 = vunpack.c.0.s8 %v1139
        %v1141 = vlaneseq
        %v1142 = vshrl.u32 %v1141, 7
        %v1143 = vsub.s32 %v1140, %v1142
        %v1144 = vrot.slane %v1137, %v1143
        %v1145 = vcombine.low %v975, %v976
        %v1147 = vunpack.c.l.s4 1983009808
        %v1148 = vunpack.c.0.s8 %v1147
        %v1149 = vlaneseq
        %v1150 = vshrl.u32 %v1149, 7
        %v1151 = vsub.s32 %v1148, %v1150
        %v1152 = vrot.slane %v1145, %v1151
        %v1153 = vcombine.low %v1128, %v1136
        %v1154 = vcombine.high %v1128, %v1136
        %v1156 = vunpack.c.l.s4 1934713408
        %v1157 = vunpack.c.0.s8 %v1156
        %v1158 = vlaneseq
        %v1159 = vshrl.u32 %v1158, 7
        %v1160 = vsub.s32 %v1157, %v1159
        %v1161 = vrot.slane %v1153, %v1160
        %v1163 = vunpack.c.l.s4 1934713408
        %v1164 = vunpack.c.0.s8 %v1163
        %v1165 = vlaneseq
        %v1166 = vshrl.u32 %v1165, 7
        %v1167 = vsub.s32 %v1164, %v1166
        %v1168 = vrot.slane %v1154, %v1167
        %v1169 = vcombine.low %v1144, %v1152
        %v1170 = vcombine.high %v1144, %v1152
        %v1172 = vunpack.c.l.s4 1934713408
        %v1173 = vunpack.c.0.s8 %v1172
        %v1174 = vlaneseq
        %v1175 = vshrl.u32 %v1174, 7
        %v1176 = vsub.s32 %v1173, %v1175
        %v1177 = vrot.slane %v1169, %v1176
        %v1179 = vunpack.c.l.s4 1934713408
        %v1180 = vunpack.c.0.s8 %v1179
        %v1181 = vlaneseq
        %v1182 = vshrl.u32 %v1181, 7
        %v1183 = vsub.s32 %v1180, %v1182
        %v1184 = vrot.slane %v1170, %v1183
        %v1185 = vcombine.low %v1161, %v1177
        %v1186 = vcombine.high %v1161, %v1177
        %v1187 = vcombine.low %v1168, %v1184
        %v1188 = vcombine.high %v1168, %v1184
        %v1189 = vpack.c.bf16 %v1185, %v1185
        %v1190 = vpack.c.bf16 %v1186, %v1186
        %v1191 = vpack.c.bf16 %v1187, %v1187
        %v1192 = vpack.c.bf16 %v1188, %v1188
        %v1194 = vlaneseq
        %v1195 = vshrl.u32 %v1194, 7
        %v1196 = vsub.s32 0, %v1195
        %v1197 = vrot.slane %v639, %v1196
        %vm1199 = vcmask 64512
        %v1201 = vsel %vm1199, %v1045, 0
        %v1204 = vsel %vm1199, %v1117, 0
        %1206 = vmatprep.subr.bf16.mxu0 0
        %1207 = vmatpush1.bf16.xpose.msra.mxu0 0
        %1208 = vmatprep.subr.bf16.mxu0 0
        %1209 = vmatpush1.bf16.xpose.msra.mxu0 0
        %1210 = vmatprep.subr.bf16.mxu0 0
        %1211 = vmatpush1.bf16.xpose.msra.mxu0 0
        %1212 = vmatprep.subr.bf16.mxu0 0
        %1213 = vmatpush1.bf16.xpose.msra.mxu0 0
        %1214 = vmatprep.subr.bf16.mxu0 0
        %1215 = vmatpush1.bf16.xpose.msra.mxu0 0
        %1216 = vmatprep.subr.bf16.mxu0 0
        %1217 = vmatpush1.bf16.xpose.msra.mxu0 0
        %1218 = vmatprep.subr.bf16.mxu0 0
        %1219 = vmatpush1.bf16.xpose.msra.mxu0 0
        %1220 = vmatprep.subr.bf16.mxu0 0
        %1221 = vmatpush1.bf16.xpose.msra.mxu0 %v1204
        %1222 = vmatprep.subr.bf16.mxu0 0
        %1223 = vmatpush2.bf16.xpose.msra.mxu0 0
        %1224 = vmatprep.subr.bf16.mxu0 0
        %1225 = vmatpush2.bf16.xpose.msra.mxu0 0
        %1226 = vmatprep.subr.bf16.mxu0 0
        %1227 = vmatpush2.bf16.xpose.msra.mxu0 0
        %1228 = vmatprep.subr.bf16.mxu0 0
        %1229 = vmatpush2.bf16.xpose.msra.mxu0 0
        %1230 = vmatprep.subr.bf16.mxu0 0
        %1231 = vmatpush2.bf16.xpose.msra.mxu0 0
        %1232 = vmatprep.subr.bf16.mxu0 0
        %1233 = vmatpush2.bf16.xpose.msra.mxu0 0
        %1234 = vmatprep.subr.bf16.mxu0 0
        %1235 = vmatpush2.bf16.xpose.msra.mxu0 0
        %1236 = vmatprep.subr.bf16.mxu0 0
        %1237 = vmatpush2.bf16.xpose.msra.mxu0 0
        %1238 = vmatprep.mubr.bf16.mxu0 0
        %1239 = vmatmul.mubr.bf16.gmra.mxu0 %v1201
        %v1240 = vpop.f32.mrf.mxu0
        %v1241 = vadd.f32 %v1197, %v1240
        %v1242 = vpop.f32.mrf.mxu0
        %v1243 = vpop.f32.mrf.mxu0
        %v1244 = vpop.f32.mrf.mxu0
        %1245 = vdwg.mxu0
        %v1247 = vsel %vm1199, %v1046, 0
        %v1250 = vsel %vm1199, %v1118, 0
        %1252 = vmatprep.subr.bf16.mxu0 0
        %1253 = vmatpush1.bf16.xpose.msra.mxu0 0
        %1254 = vmatprep.subr.bf16.mxu0 0
        %1255 = vmatpush1.bf16.xpose.msra.mxu0 0
        %1256 = vmatprep.subr.bf16.mxu0 0
        %1257 = vmatpush1.bf16.xpose.msra.mxu0 0
        %1258 = vmatprep.subr.bf16.mxu0 0
        %1259 = vmatpush1.bf16.xpose.msra.mxu0 0
        %1260 = vmatprep.subr.bf16.mxu0 0
        %1261 = vmatpush1.bf16.xpose.msra.mxu0 0
        %1262 = vmatprep.subr.bf16.mxu0 0
        %1263 = vmatpush1.bf16.xpose.msra.mxu0 0
        %1264 = vmatprep.subr.bf16.mxu0 0
        %1265 = vmatpush1.bf16.xpose.msra.mxu0 0
        %1266 = vmatprep.subr.bf16.mxu0 0
        %1267 = vmatpush1.bf16.xpose.msra.mxu0 %v1250
        %1268 = vmatprep.subr.bf16.mxu0 0
        %1269 = vmatpush2.bf16.xpose.msra.mxu0 0
        %1270 = vmatprep.subr.bf16.mxu0 0
        %1271 = vmatpush2.bf16.xpose.msra.mxu0 0
        %1272 = vmatprep.subr.bf16.mxu0 0
        %1273 = vmatpush2.bf16.xpose.msra.mxu0 0
        %1274 = vmatprep.subr.bf16.mxu0 0
        %1275 = vmatpush2.bf16.xpose.msra.mxu0 0
        %1276 = vmatprep.subr.bf16.mxu0 0
        %1277 = vmatpush2.bf16.xpose.msra.mxu0 0
        %1278 = vmatprep.subr.bf16.mxu0 0
        %1279 = vmatpush2.bf16.xpose.msra.mxu0 0
        %1280 = vmatprep.subr.bf16.mxu0 0
        %1281 = vmatpush2.bf16.xpose.msra.mxu0 0
        %1282 = vmatprep.subr.bf16.mxu0 0
        %1283 = vmatpush2.bf16.xpose.msra.mxu0 0
        %1284 = vmatprep.mubr.bf16.mxu0 0
        %1285 = vmatmul.mubr.bf16.gmra.mxu0 %v1247
        %v1286 = vpop.f32.mrf.mxu0
        %v1287 = vadd.f32 %v1197, %v1286
        %v1288 = vpop.f32.mrf.mxu0
        %v1289 = vpop.f32.mrf.mxu0
        %v1290 = vpop.f32.mrf.mxu0
        %1291 = vdwg.mxu0
        %v1293 = vsel %vm1199, %v1047, 0
        %v1296 = vsel %vm1199, %v1119, 0
        %1298 = vmatprep.subr.bf16.mxu0 0
        %1299 = vmatpush1.bf16.xpose.msra.mxu0 0
        %1300 = vmatprep.subr.bf16.mxu0 0
        %1301 = vmatpush1.bf16.xpose.msra.mxu0 0
        %1302 = vmatprep.subr.bf16.mxu0 0
        %1303 = vmatpush1.bf16.xpose.msra.mxu0 0
        %1304 = vmatprep.subr.bf16.mxu0 0
        %1305 = vmatpush1.bf16.xpose.msra.mxu0 0
        %1306 = vmatprep.subr.bf16.mxu0 0
        %1307 = vmatpush1.bf16.xpose.msra.mxu0 0
        %1308 = vmatprep.subr.bf16.mxu0 0
        %1309 = vmatpush1.bf16.xpose.msra.mxu0 0
        %1310 = vmatprep.subr.bf16.mxu0 0
        %1311 = vmatpush1.bf16.xpose.msra.mxu0 0
        %1312 = vmatprep.subr.bf16.mxu0 0
        %1313 = vmatpush1.bf16.xpose.msra.mxu0 %v1296
        %1314 = vmatprep.subr.bf16.mxu0 0
        %1315 = vmatpush2.bf16.xpose.msra.mxu0 0
        %1316 = vmatprep.subr.bf16.mxu0 0
        %1317 = vmatpush2.bf16.xpose.msra.mxu0 0
        %1318 = vmatprep.subr.bf16.mxu0 0
        %1319 = vmatpush2.bf16.xpose.msra.mxu0 0
        %1320 = vmatprep.subr.bf16.mxu0 0
        %1321 = vmatpush2.bf16.xpose.msra.mxu0 0
        %1322 = vmatprep.subr.bf16.mxu0 0
        %1323 = vmatpush2.bf16.xpose.msra.mxu0 0
        %1324 = vmatprep.subr.bf16.mxu0 0
        %1325 = vmatpush2.bf16.xpose.msra.mxu0 0
        %1326 = vmatprep.subr.bf16.mxu0 0
        %1327 = vmatpush2.bf16.xpose.msra.mxu0 0
        %1328 = vmatprep.subr.bf16.mxu0 0
        %1329 = vmatpush2.bf16.xpose.msra.mxu0 0
        %1330 = vmatprep.mubr.bf16.mxu0 0
        %1331 = vmatmul.mubr.bf16.gmra.mxu0 %v1293
        %v1332 = vpop.f32.mrf.mxu0
        %v1333 = vadd.f32 %v1197, %v1332
        %v1334 = vpop.f32.mrf.mxu0
        %v1335 = vpop.f32.mrf.mxu0
        %v1336 = vpop.f32.mrf.mxu0
        %1337 = vdwg.mxu0
        %v1339 = vsel %vm1199, %v1048, 0
        %v1342 = vsel %vm1199, %v1120, 0
        %1344 = vmatprep.subr.bf16.mxu0 0
        %1345 = vmatpush1.bf16.xpose.msra.mxu0 0
        %1346 = vmatprep.subr.bf16.mxu0 0
        %1347 = vmatpush1.bf16.xpose.msra.mxu0 0
        %1348 = vmatprep.subr.bf16.mxu0 0
        %1349 = vmatpush1.bf16.xpose.msra.mxu0 0
        %1350 = vmatprep.subr.bf16.mxu0 0
        %1351 = vmatpush1.bf16.xpose.msra.mxu0 0
        %1352 = vmatprep.subr.bf16.mxu0 0
        %1353 = vmatpush1.bf16.xpose.msra.mxu0 0
        %1354 = vmatprep.subr.bf16.mxu0 0
        %1355 = vmatpush1.bf16.xpose.msra.mxu0 0
        %1356 = vmatprep.subr.bf16.mxu0 0
        %1357 = vmatpush1.bf16.xpose.msra.mxu0 0
        %1358 = vmatprep.subr.bf16.mxu0 0
        %1359 = vmatpush1.bf16.xpose.msra.mxu0 %v1342
        %1360 = vmatprep.subr.bf16.mxu0 0
        %1361 = vmatpush2.bf16.xpose.msra.mxu0 0
        %1362 = vmatprep.subr.bf16.mxu0 0
        %1363 = vmatpush2.bf16.xpose.msra.mxu0 0
        %1364 = vmatprep.subr.bf16.mxu0 0
        %1365 = vmatpush2.bf16.xpose.msra.mxu0 0
        %1366 = vmatprep.subr.bf16.mxu0 0
        %1367 = vmatpush2.bf16.xpose.msra.mxu0 0
        %1368 = vmatprep.subr.bf16.mxu0 0
        %1369 = vmatpush2.bf16.xpose.msra.mxu0 0
        %1370 = vmatprep.subr.bf16.mxu0 0
        %1371 = vmatpush2.bf16.xpose.msra.mxu0 0
        %1372 = vmatprep.subr.bf16.mxu0 0
        %1373 = vmatpush2.bf16.xpose.msra.mxu0 0
        %1374 = vmatprep.subr.bf16.mxu0 0
        %1375 = vmatpush2.bf16.xpose.msra.mxu0 0
        %1376 = vmatprep.mubr.bf16.mxu0 0
        %1377 = vmatmul.mubr.bf16.gmra.mxu0 %v1339
        %v1378 = vpop.f32.mrf.mxu0
        %v1379 = vadd.f32 %v1197, %v1378
        %v1380 = vpop.f32.mrf.mxu0
        %v1381 = vpop.f32.mrf.mxu0
        %v1382 = vpop.f32.mrf.mxu0
        %1383 = vdwg.mxu0
        %v1384 = vsel %vm1199, %v1241, -inf
        %1385 = vmax.xlane.f32.xlu0 %v1384
        %v1386 = vpop.xlane.xlu0 %1385
        %v1387 = vsel %vm1199, %v1287, -inf
        %1388 = vmax.xlane.f32.xlu0 %v1387
        %v1389 = vpop.xlane.xlu0 %1388
        %v1390 = vsel %vm1199, %v1333, -inf
        %1391 = vmax.xlane.f32.xlu0 %v1390
        %v1392 = vpop.xlane.xlu0 %1391
        %v1393 = vsel %vm1199, %v1379, -inf
        %1394 = vmax.xlane.f32.xlu0 %v1393
        %v1395 = vpop.xlane.xlu0 %1394
        %v1396 = vsub.f32 %v1241, %v1386
        %v1397 = vsub.f32 %v1287, %v1389
        %v1398 = vsub.f32 %v1333, %v1392
        %v1399 = vsub.f32 %v1379, %v1395
        %v1400 = vmul.f32 %v1396, 1.442695
        %v1401 = vpow.pop %v1400
        %v1402 = vmul.f32 %v1397, 1.442695
        %v1403 = vpow.pop %v1402
        %v1404 = vmul.f32 %v1398, 1.442695
        %v1405 = vpow.pop %v1404
        %v1406 = vmul.f32 %v1399, 1.442695
        %v1407 = vpow.pop %v1406
        %v1408 = vsel %vm1199, %v1401, 0.0
        %1409 = vadd.xlane.f32.xlu0 %v1408
        %v1410 = vpop.xlane.xlu0 %1409
        %v1411 = vsel %vm1199, %v1403, 0.0
        %1412 = vadd.xlane.f32.xlu0 %v1411
        %v1413 = vpop.xlane.xlu0 %1412
        %v1414 = vsel %vm1199, %v1405, 0.0
        %1415 = vadd.xlane.f32.xlu0 %v1414
        %v1416 = vpop.xlane.xlu0 %1415
        %v1417 = vsel %vm1199, %v1407, 0.0
        %1418 = vadd.xlane.f32.xlu0 %v1417
        %v1419 = vpop.xlane.xlu0 %1418
        %v1420 = vrcp.pop %v1410
        %v1421 = vrcp.pop %v1413
        %v1422 = vrcp.pop %v1416
        %v1423 = vrcp.pop %v1419
        %v1424 = vmul.f32 %v1401, %v1420
        %v1425 = vmul.f32 %v1403, %v1421
        %v1426 = vmul.f32 %v1405, %v1422
        %v1427 = vmul.f32 %v1407, %v1423
        %v1428 = vpack.c.bf16 %v1424, %v1424
        %v1429 = vpack.c.bf16 %v1425, %v1425
        %v1430 = vpack.c.bf16 %v1426, %v1426
        %v1431 = vpack.c.bf16 %v1427, %v1427
        %v1433 = vsel %vm1199, %v1428, 0
        %vm1435 = vcmask 1043456
        %v1437 = vsel %vm1435, %v1189, 0
        %1439 = vmatprep.subr.bf16.mxu0 0
        %1440 = vmatpush1.bf16.msra.mxu0 0
        %1441 = vmatprep.subr.bf16.mxu0 0
        %1442 = vmatpush1.bf16.msra.mxu0 0
        %1443 = vmatprep.subr.bf16.mxu0 0
        %1444 = vmatpush1.bf16.msra.mxu0 0
        %1445 = vmatprep.subr.bf16.mxu0 0
        %1446 = vmatpush1.bf16.msra.mxu0 0
        %1447 = vmatprep.subr.bf16.mxu0 0
        %1448 = vmatpush1.bf16.msra.mxu0 0
        %1449 = vmatprep.subr.bf16.mxu0 0
        %1450 = vmatpush1.bf16.msra.mxu0 0
        %1451 = vmatprep.subr.bf16.mxu0 0
        %1452 = vmatpush1.bf16.msra.mxu0 0
        %1453 = vmatprep.subr.bf16.mxu0 0
        %1454 = vmatpush1.bf16.msra.mxu0 %v1437
        %1455 = vmatprep.subr.bf16.mxu0 0
        %1456 = vmatpush2.bf16.msra.mxu0 0
        %1457 = vmatprep.subr.bf16.mxu0 0
        %1458 = vmatpush2.bf16.msra.mxu0 0
        %1459 = vmatprep.subr.bf16.mxu0 0
        %1460 = vmatpush2.bf16.msra.mxu0 0
        %1461 = vmatprep.subr.bf16.mxu0 0
        %1462 = vmatpush2.bf16.msra.mxu0 0
        %1463 = vmatprep.subr.bf16.mxu0 0
        %1464 = vmatpush2.bf16.msra.mxu0 0
        %1465 = vmatprep.subr.bf16.mxu0 0
        %1466 = vmatpush2.bf16.msra.mxu0 0
        %1467 = vmatprep.subr.bf16.mxu0 0
        %1468 = vmatpush2.bf16.msra.mxu0 0
        %1469 = vmatprep.subr.bf16.mxu0 0
        %1470 = vmatpush2.bf16.msra.mxu0 0
        %1471 = vmatprep.mubr.bf16.mxu0 0
        %1472 = vmatmul.mubr.bf16.gmra.mxu0 %v1433
        %v1473 = vpop.f32.mrf.mxu0
        %v1474 = vadd.f32 0.0, %v1473
        %v1475 = vpop.f32.mrf.mxu0
        %v1476 = vpop.f32.mrf.mxu0
        %v1477 = vpop.f32.mrf.mxu0
        %1478 = vdwg.mxu0
        %v1480 = vsel %vm1199, %v1429, 0
        %v1483 = vsel %vm1435, %v1190, 0
        %1485 = vmatprep.subr.bf16.mxu0 0
        %1486 = vmatpush1.bf16.msra.mxu0 0
        %1487 = vmatprep.subr.bf16.mxu0 0
        %1488 = vmatpush1.bf16.msra.mxu0 0
        %1489 = vmatprep.subr.bf16.mxu0 0
        %1490 = vmatpush1.bf16.msra.mxu0 0
        %1491 = vmatprep.subr.bf16.mxu0 0
        %1492 = vmatpush1.bf16.msra.mxu0 0
        %1493 = vmatprep.subr.bf16.mxu0 0
        %1494 = vmatpush1.bf16.msra.mxu0 0
        %1495 = vmatprep.subr.bf16.mxu0 0
        %1496 = vmatpush1.bf16.msra.mxu0 0
        %1497 = vmatprep.subr.bf16.mxu0 0
        %1498 = vmatpush1.bf16.msra.mxu0 0
        %1499 = vmatprep.subr.bf16.mxu0 0
        %1500 = vmatpush1.bf16.msra.mxu0 %v1483
        %1501 = vmatprep.subr.bf16.mxu0 0
        %1502 = vmatpush2.bf16.msra.mxu0 0
        %1503 = vmatprep.subr.bf16.mxu0 0
        %1504 = vmatpush2.bf16.msra.mxu0 0
        %1505 = vmatprep.subr.bf16.mxu0 0
        %1506 = vmatpush2.bf16.msra.mxu0 0
        %1507 = vmatprep.subr.bf16.mxu0 0
        %1508 = vmatpush2.bf16.msra.mxu0 0
        %1509 = vmatprep.subr.bf16.mxu0 0
        %1510 = vmatpush2.bf16.msra.mxu0 0
        %1511 = vmatprep.subr.bf16.mxu0 0
        %1512 = vmatpush2.bf16.msra.mxu0 0
        %1513 = vmatprep.subr.bf16.mxu0 0
        %1514 = vmatpush2.bf16.msra.mxu0 0
        %1515 = vmatprep.subr.bf16.mxu0 0
        %1516 = vmatpush2.bf16.msra.mxu0 0
        %1517 = vmatprep.mubr.bf16.mxu0 0
        %1518 = vmatmul.mubr.bf16.gmra.mxu0 %v1480
        %v1519 = vpop.f32.mrf.mxu0
        %v1520 = vadd.f32 0.0, %v1519
        %v1521 = vpop.f32.mrf.mxu0
        %v1522 = vpop.f32.mrf.mxu0
        %v1523 = vpop.f32.mrf.mxu0
        %1524 = vdwg.mxu0
        %v1526 = vsel %vm1199, %v1430, 0
        %v1529 = vsel %vm1435, %v1191, 0
        %1531 = vmatprep.subr.bf16.mxu0 0
        %1532 = vmatpush1.bf16.msra.mxu0 0
        %1533 = vmatprep.subr.bf16.mxu0 0
        %1534 = vmatpush1.bf16.msra.mxu0 0
        %1535 = vmatprep.subr.bf16.mxu0 0
        %1536 = vmatpush1.bf16.msra.mxu0 0
        %1537 = vmatprep.subr.bf16.mxu0 0
        %1538 = vmatpush1.bf16.msra.mxu0 0
        %1539 = vmatprep.subr.bf16.mxu0 0
        %1540 = vmatpush1.bf16.msra.mxu0 0
        %1541 = vmatprep.subr.bf16.mxu0 0
        %1542 = vmatpush1.bf16.msra.mxu0 0
        %1543 = vmatprep.subr.bf16.mxu0 0
        %1544 = vmatpush1.bf16.msra.mxu0 0
        %1545 = vmatprep.subr.bf16.mxu0 0
        %1546 = vmatpush1.bf16.msra.mxu0 %v1529
        %1547 = vmatprep.subr.bf16.mxu0 0
        %1548 = vmatpush2.bf16.msra.mxu0 0
        %1549 = vmatprep.subr.bf16.mxu0 0
        %1550 = vmatpush2.bf16.msra.mxu0 0
        %1551 = vmatprep.subr.bf16.mxu0 0
        %1552 = vmatpush2.bf16.msra.mxu0 0
        %1553 = vmatprep.subr.bf16.mxu0 0
        %1554 = vmatpush2.bf16.msra.mxu0 0
        %1555 = vmatprep.subr.bf16.mxu0 0
        %1556 = vmatpush2.bf16.msra.mxu0 0
        %1557 = vmatprep.subr.bf16.mxu0 0
        %1558 = vmatpush2.bf16.msra.mxu0 0
        %1559 = vmatprep.subr.bf16.mxu0 0
        %1560 = vmatpush2.bf16.msra.mxu0 0
        %1561 = vmatprep.subr.bf16.mxu0 0
        %1562 = vmatpush2.bf16.msra.mxu0 0
        %1563 = vmatprep.mubr.bf16.mxu0 0
        %1564 = vmatmul.mubr.bf16.gmra.mxu0 %v1526
        %v1565 = vpop.f32.mrf.mxu0
        %v1566 = vadd.f32 0.0, %v1565
        %v1567 = vpop.f32.mrf.mxu0
        %v1568 = vpop.f32.mrf.mxu0
        %v1569 = vpop.f32.mrf.mxu0
        %1570 = vdwg.mxu0
        %v1572 = vsel %vm1199, %v1431, 0
        %v1575 = vsel %vm1435, %v1192, 0
        %1577 = vmatprep.subr.bf16.mxu0 0
        %1578 = vmatpush1.bf16.msra.mxu0 0
        %1579 = vmatprep.subr.bf16.mxu0 0
        %1580 = vmatpush1.bf16.msra.mxu0 0
        %1581 = vmatprep.subr.bf16.mxu0 0
        %1582 = vmatpush1.bf16.msra.mxu0 0
        %1583 = vmatprep.subr.bf16.mxu0 0
        %1584 = vmatpush1.bf16.msra.mxu0 0
        %1585 = vmatprep.subr.bf16.mxu0 0
        %1586 = vmatpush1.bf16.msra.mxu0 0
        %1587 = vmatprep.subr.bf16.mxu0 0
        %1588 = vmatpush1.bf16.msra.mxu0 0
        %1589 = vmatprep.subr.bf16.mxu0 0
        %1590 = vmatpush1.bf16.msra.mxu0 0
        %1591 = vmatprep.subr.bf16.mxu0 0
        %1592 = vmatpush1.bf16.msra.mxu0 %v1575
        %1593 = vmatprep.subr.bf16.mxu0 0
        %1594 = vmatpush2.bf16.msra.mxu0 0
        %1595 = vmatprep.subr.bf16.mxu0 0
        %1596 = vmatpush2.bf16.msra.mxu0 0
        %1597 = vmatprep.subr.bf16.mxu0 0
        %1598 = vmatpush2.bf16.msra.mxu0 0
        %1599 = vmatprep.subr.bf16.mxu0 0
        %1600 = vmatpush2.bf16.msra.mxu0 0
        %1601 = vmatprep.subr.bf16.mxu0 0
        %1602 = vmatpush2.bf16.msra.mxu0 0
        %1603 = vmatprep.subr.bf16.mxu0 0
        %1604 = vmatpush2.bf16.msra.mxu0 0
        %1605 = vmatprep.subr.bf16.mxu0 0
        %1606 = vmatpush2.bf16.msra.mxu0 0
        %1607 = vmatprep.subr.bf16.mxu0 0
        %1608 = vmatpush2.bf16.msra.mxu0 0
        %1609 = vmatprep.mubr.bf16.mxu0 0
        %1610 = vmatmul.mubr.bf16.gmra.mxu0 %v1572
        %v1611 = vpop.f32.mrf.mxu0
        %v1612 = vadd.f32 0.0, %v1611
        %v1613 = vpop.f32.mrf.mxu0
        %v1614 = vpop.f32.mrf.mxu0
        %v1615 = vpop.f32.mrf.mxu0
        %1616 = vdwg.mxu0
        %v1617 = vcombine.low %v1474, %v1566
        %v1618 = vcombine.high %v1474, %v1566
        %v1620 = vunpack.c.l.s4 1983009808
        %v1621 = vunpack.c.0.s8 %v1620
        %v1622 = vlaneseq
        %v1623 = vshrl.u32 %v1622, 7
        %v1624 = vsub.s32 %v1621, %v1623
        %v1625 = vrot.slane %v1617, %v1624
        %v1627 = vunpack.c.l.s4 1983009808
        %v1628 = vunpack.c.0.s8 %v1627
        %v1629 = vlaneseq
        %v1630 = vshrl.u32 %v1629, 7
        %v1631 = vsub.s32 %v1628, %v1630
        %v1632 = vrot.slane %v1618, %v1631
        %v1633 = vcombine.low %v1520, %v1612
        %v1634 = vcombine.high %v1520, %v1612
        %v1636 = vunpack.c.l.s4 1983009808
        %v1637 = vunpack.c.0.s8 %v1636
        %v1638 = vlaneseq
        %v1639 = vshrl.u32 %v1638, 7
        %v1640 = vsub.s32 %v1637, %v1639
        %v1641 = vrot.slane %v1633, %v1640
        %v1643 = vunpack.c.l.s4 1983009808
        %v1644 = vunpack.c.0.s8 %v1643
        %v1645 = vlaneseq
        %v1646 = vshrl.u32 %v1645, 7
        %v1647 = vsub.s32 %v1644, %v1646
        %v1648 = vrot.slane %v1634, %v1647
        %v1649 = vcombine.low %v1625, %v1641
        %v1650 = vcombine.high %v1625, %v1641
        %v1652 = vunpack.c.l.s4 1934713408
        %v1653 = vunpack.c.0.s8 %v1652
        %v1654 = vlaneseq
        %v1655 = vshrl.u32 %v1654, 7
        %v1656 = vsub.s32 %v1653, %v1655
        %v1657 = vrot.slane %v1649, %v1656
        %v1659 = vunpack.c.l.s4 1934713408
        %v1660 = vunpack.c.0.s8 %v1659
        %v1661 = vlaneseq
        %v1662 = vshrl.u32 %v1661, 7
        %v1663 = vsub.s32 %v1660, %v1662
        %v1664 = vrot.slane %v1650, %v1663
        %v1665 = vcombine.low %v1632, %v1648
        %v1666 = vcombine.high %v1632, %v1648
        %v1668 = vunpack.c.l.s4 1934713408
        %v1669 = vunpack.c.0.s8 %v1668
        %v1670 = vlaneseq
        %v1671 = vshrl.u32 %v1670, 7
        %v1672 = vsub.s32 %v1669, %v1671
        %v1673 = vrot.slane %v1665, %v1672
        %v1675 = vunpack.c.l.s4 1934713408
        %v1676 = vunpack.c.0.s8 %v1675
        %v1677 = vlaneseq
        %v1678 = vshrl.u32 %v1677, 7
        %v1679 = vsub.s32 %v1676, %v1678
        %v1680 = vrot.slane %v1666, %v1679
        %v1681 = vcombine.high %v1657, 0.0
        %v1682 = vcombine.high %v1664, 0.0
        %v1683 = vcombine.high %v1673, 0.0
        %v1684 = vcombine.high %v1680, 0.0
        %v1685 = vcombine.low %v1657, %v1664
        %v1687 = vunpack.c.l.s4 1983009808
        %v1688 = vunpack.c.0.s8 %v1687
        %v1689 = vlaneseq
        %v1690 = vshrl.u32 %v1689, 7
        %v1691 = vsub.s32 %v1688, %v1690
        %v1692 = vrot.slane %v1685, %v1691
        %v1693 = vcombine.low %v1681, %v1682
        %v1695 = vunpack.c.l.s4 1983009808
        %v1696 = vunpack.c.0.s8 %v1695
        %v1697 = vlaneseq
        %v1698 = vshrl.u32 %v1697, 7
        %v1699 = vsub.s32 %v1696, %v1698
        %v1700 = vrot.slane %v1693, %v1699
        %v1701 = vcombine.low %v1673, %v1680
        %v1703 = vunpack.c.l.s4 1983009808
        %v1704 = vunpack.c.0.s8 %v1703
        %v1705 = vlaneseq
        %v1706 = vshrl.u32 %v1705, 7
        %v1707 = vsub.s32 %v1704, %v1706
        %v1708 = vrot.slane %v1701, %v1707
        %v1709 = vcombine.low %v1683, %v1684
        %v1711 = vunpack.c.l.s4 1983009808
        %v1712 = vunpack.c.0.s8 %v1711
        %v1713 = vlaneseq
        %v1714 = vshrl.u32 %v1713, 7
        %v1715 = vsub.s32 %v1712, %v1714
        %v1716 = vrot.slane %v1709, %v1715
        %v1717 = vcombine.low %v1692, %v1700
        %v1718 = vcombine.high %v1692, %v1700
        %v1720 = vunpack.c.l.s4 1934713408
        %v1721 = vunpack.c.0.s8 %v1720
        %v1722 = vlaneseq
        %v1723 = vshrl.u32 %v1722, 7
        %v1724 = vsub.s32 %v1721, %v1723
        %v1725 = vrot.slane %v1717, %v1724
        %v1727 = vunpack.c.l.s4 1934713408
        %v1728 = vunpack.c.0.s8 %v1727
        %v1729 = vlaneseq
        %v1730 = vshrl.u32 %v1729, 7
        %v1731 = vsub.s32 %v1728, %v1730
        %v1732 = vrot.slane %v1718, %v1731
        %v1733 = vcombine.low %v1708, %v1716
        %v1734 = vcombine.high %v1708, %v1716
        %v1736 = vunpack.c.l.s4 1934713408
        %v1737 = vunpack.c.0.s8 %v1736
        %v1738 = vlaneseq
        %v1739 = vshrl.u32 %v1738, 7
        %v1740 = vsub.s32 %v1737, %v1739
        %v1741 = vrot.slane %v1733, %v1740
        %v1743 = vunpack.c.l.s4 1934713408
        %v1744 = vunpack.c.0.s8 %v1743
        %v1745 = vlaneseq
        %v1746 = vshrl.u32 %v1745, 7
        %v1747 = vsub.s32 %v1744, %v1746
        %v1748 = vrot.slane %v1734, %v1747
        %v1749 = vcombine.low %v1725, %v1741
        %v1750 = vcombine.high %v1725, %v1741
        %v1751 = vcombine.low %v1732, %v1748
        %v1752 = vcombine.high %v1732, %v1748
        %1754 = vrot.lane.b32.xlu0 %v1750, 8
        %v1755 = vpop.permute.xlu0 %1754
        %1758 = vrot.lane.b32.xlu0 %v1751, 16
        %v1759 = vpop.permute.xlu0 %1758
        %1762 = vrot.lane.b32.xlu0 %v1752, 24
        %v1763 = vpop.permute.xlu0 %1762
        %v1765 = vsel %vm1199, %v1749, %v1755
        %vm1766 = vcmask 130048
        %v1767 = vsel %vm1766, %v1765, %v1759
        %vm1768 = vcmask 195584
        %v1769 = vsel %vm1768, %v1767, %v1763
        %v1770 = vpack.c.bf16 %v1769, %v1769
        %v1771 = vld [vmem:[%s6] sm:$0xf]
        %v1772 = vld [vmem:[%s6 + $0x4] sm:$0xf]
        %v1773 = vld [vmem:[%s6 + $0x8] sm:$0xf]
        %v1774 = vld [vmem:[%s6 + $0xc] sm:$0xf]
        %v1775 = vld [vmem:[%s7] sm:$0x1]
        %v1777 = vlaneseq
        %v1778 = vshrl.u32 %v1777, 7
        %v1779 = vsub.s32 0, %v1778
        %v1780 = vrot.slane %v1775, %v1779
        %v1786 = vunpack.c.l.b16 %v1771
        %v1787 = vunpack.c.l.b16 %v1772
        %v1788 = vunpack.c.l.b16 %v1773
        %v1789 = vunpack.c.l.b16 %v1774
        %v1790 = vpack.c.b16 %v1787, %v1786
        %v1791 = vpack.c.b16 %v1789, %v1788
        %v1795 = vsel %vm643, %v1770, 0
        %1797 = vmatprep.subr.bf16.mxu0 0
        %1798 = vmatpush1.bf16.msra.mxu0 0
        %1799 = vmatprep.subr.bf16.mxu0 0
        %1800 = vmatpush1.bf16.msra.mxu0 0
        %1801 = vmatprep.subr.bf16.mxu0 0
        %1802 = vmatpush1.bf16.msra.mxu0 0
        %1803 = vmatprep.subr.bf16.mxu0 0
        %1804 = vmatpush1.bf16.msra.mxu0 0
        %1805 = vmatprep.subr.bf16.mxu0 0
        %1806 = vmatpush1.bf16.msra.mxu0 0
        %1807 = vmatprep.subr.bf16.mxu0 0
        %1808 = vmatpush1.bf16.msra.mxu0 0
        %1809 = vmatprep.subr.bf16.mxu0 0
        %1810 = vmatpush1.bf16.msra.mxu0 %v1791
        %1811 = vmatprep.subr.bf16.mxu0 0
        %1812 = vmatpush1.bf16.msra.mxu0 %v1790
        %1813 = vmatprep.subr.bf16.mxu0 0
        %1814 = vmatpush2.bf16.msra.mxu0 0
        %1815 = vmatprep.subr.bf16.mxu0 0
        %1816 = vmatpush2.bf16.msra.mxu0 0
        %1817 = vmatprep.subr.bf16.mxu0 0
        %1818 = vmatpush2.bf16.msra.mxu0 0
        %1819 = vmatprep.subr.bf16.mxu0 0
        %1820 = vmatpush2.bf16.msra.mxu0 0
        %1821 = vmatprep.subr.bf16.mxu0 0
        %1822 = vmatpush2.bf16.msra.mxu0 0
        %1823 = vmatprep.subr.bf16.mxu0 0
        %1824 = vmatpush2.bf16.msra.mxu0 0
        %1825 = vmatprep.subr.bf16.mxu0 0
        %1826 = vmatpush2.bf16.msra.mxu0 0
        %1827 = vmatprep.subr.bf16.mxu0 0
        %1828 = vmatpush2.bf16.msra.mxu0 0
        %1829 = vmatprep.mubr.bf16.mxu0 0
        %1830 = vmatmul.mubr.bf16.gmra.mxu0 %v1795
        %v1831 = vpop.f32.mrf.mxu0
        %v1832 = vadd.f32 %v1780, %v1831
        %v1833 = vpop.f32.mrf.mxu0
        %v1834 = vpop.f32.mrf.mxu0
        %v1835 = vpop.f32.mrf.mxu0
        %1836 = vdwg.mxu0
        %v1837 = vunpack.c.l.bf16 %v672
        %v1838 = vadd.f32 %v1837, %v1832
        %v1839 = vld [vmem:[%s8] sm:$0x1]
        %v1840 = vld [vmem:[%s9] sm:$0x1]
        %v1841 = vsel %vm643, %v1838, 0.0
        %1842 = vadd.xlane.f32.xlu0 %v1841
        %v1843 = vpop.xlane.xlu0 %1842
        %v1844 = vmul.f32 %v1843, %v647
        %v1845 = vsub.f32 %v1838, %v1844
        %v1846 = vmul.f32 %v1845, %v1845
        %v1847 = vsel %vm643, %v1846, 0.0
        %1848 = vadd.xlane.f32.xlu0 %v1847
        %v1849 = vpop.xlane.xlu0 %1848
        %v1850 = vmul.f32 %v1849, %v647
        %v1851 = vadd.f32 %v1850, 1e-12
        %v1852 = vrsqrt.pop %v1851
        %v1853 = vmul.f32 %v1845, %v1852
        %v1855 = vlaneseq
        %v1856 = vshrl.u32 %v1855, 7
        %v1857 = vsub.s32 0, %v1856
        %v1858 = vrot.slane %v1839, %v1857
        %v1860 = vmul.f32 %v1853, %v1858
        %v1862 = vlaneseq
        %v1863 = vshrl.u32 %v1862, 7
        %v1864 = vsub.s32 0, %v1863
        %v1865 = vrot.slane %v1840, %v1864
        %v1867 = vadd.f32 %v1860, %v1865
        %v1868 = vpack.c.bf16 %v1867, %v1867
        %v1869 = vld [vmem:[%s10] sm:$0xf]
        %v1870 = vld [vmem:[%s10 + $0x4] sm:$0xf]
        %v1871 = vld [vmem:[%s10 + $0x8] sm:$0xf]
        %v1872 = vld [vmem:[%s10 + $0xc] sm:$0xf]
        %v1873 = vld [vmem:[%s11] sm:$0x1]
        %v1875 = vlaneseq
        %v1876 = vshrl.u32 %v1875, 7
        %v1877 = vsub.s32 0, %v1876
        %v1878 = vrot.slane %v1873, %v1877
        %v1884 = vunpack.c.l.b16 %v1869
        %v1885 = vunpack.c.l.b16 %v1870
        %v1886 = vunpack.c.l.b16 %v1871
        %v1887 = vunpack.c.l.b16 %v1872
        %v1888 = vpack.c.b16 %v1885, %v1884
        %v1889 = vpack.c.b16 %v1887, %v1886
        %v1893 = vsel %vm643, %v1868, 0
        %1895 = vmatprep.subr.bf16.mxu0 0
        %1896 = vmatpush1.bf16.msra.mxu0 0
        %1897 = vmatprep.subr.bf16.mxu0 0
        %1898 = vmatpush1.bf16.msra.mxu0 0
        %1899 = vmatprep.subr.bf16.mxu0 0
        %1900 = vmatpush1.bf16.msra.mxu0 0
        %1901 = vmatprep.subr.bf16.mxu0 0
        %1902 = vmatpush1.bf16.msra.mxu0 0
        %1903 = vmatprep.subr.bf16.mxu0 0
        %1904 = vmatpush1.bf16.msra.mxu0 0
        %1905 = vmatprep.subr.bf16.mxu0 0
        %1906 = vmatpush1.bf16.msra.mxu0 0
        %1907 = vmatprep.subr.bf16.mxu0 0
        %1908 = vmatpush1.bf16.msra.mxu0 %v1889
        %1909 = vmatprep.subr.bf16.mxu0 0
        %1910 = vmatpush1.bf16.msra.mxu0 %v1888
        %1911 = vmatprep.subr.bf16.mxu0 0
        %1912 = vmatpush2.bf16.msra.mxu0 0
        %1913 = vmatprep.subr.bf16.mxu0 0
        %1914 = vmatpush2.bf16.msra.mxu0 0
        %1915 = vmatprep.subr.bf16.mxu0 0
        %1916 = vmatpush2.bf16.msra.mxu0 0
        %1917 = vmatprep.subr.bf16.mxu0 0
        %1918 = vmatpush2.bf16.msra.mxu0 0
        %1919 = vmatprep.subr.bf16.mxu0 0
        %1920 = vmatpush2.bf16.msra.mxu0 0
        %1921 = vmatprep.subr.bf16.mxu0 0
        %1922 = vmatpush2.bf16.msra.mxu0 0
        %1923 = vmatprep.subr.bf16.mxu0 0
        %1924 = vmatpush2.bf16.msra.mxu0 0
        %1925 = vmatprep.subr.bf16.mxu0 0
        %1926 = vmatpush2.bf16.msra.mxu0 0
        %1927 = vmatprep.mubr.bf16.mxu0 0
        %1928 = vmatmul.mubr.bf16.gmra.mxu0 %v1893
        %v1929 = vpop.f32.mrf.mxu0
        %v1930 = vadd.f32 %v1878, %v1929
        %v1931 = vpop.f32.mrf.mxu0
        %v1932 = vpop.f32.mrf.mxu0
        %v1933 = vpop.f32.mrf.mxu0
        %1934 = vdwg.mxu0
        %v1935 = vmul.f32 %v1930, 0.5
        %v1936 = vmul.f32 %v1930, 0.044715
        %v1937 = vmul.f32 %v1936, %v1930
        %v1938 = vmul.f32 %v1937, %v1930
        %v1939 = vadd.f32 %v1930, %v1938
        %v1940 = vmul.f32 %v1939, 0.7978846
        %v1941 = vtanh.pop %v1940
        %v1942 = vadd.f32 %v1941, 1.0
        %v1943 = vmul.f32 %v1935, %v1942
        %v1944 = vpack.c.bf16 %v1943, %v1943
        %v1945 = vld [vmem:[%s12] sm:$0xf]
        %v1946 = vld [vmem:[%s12 + $0x4] sm:$0xf]
        %v1947 = vld [vmem:[%s12 + $0x8] sm:$0xf]
        %v1948 = vld [vmem:[%s12 + $0xc] sm:$0xf]
        %v1949 = vld [vmem:[%s12 + $0x10] sm:$0xf]
        %v1950 = vld [vmem:[%s12 + $0x14] sm:$0xf]
        %v1951 = vld [vmem:[%s12 + $0x18] sm:$0xf]
        %v1952 = vld [vmem:[%s12 + $0x1c] sm:$0xf]
        %v1953 = vld [vmem:[%s12 + $0x20] sm:$0xf]
        %v1954 = vld [vmem:[%s12 + $0x24] sm:$0xf]
        %v1955 = vld [vmem:[%s12 + $0x28] sm:$0xf]
        %v1956 = vld [vmem:[%s12 + $0x2c] sm:$0xf]
        %v1957 = vld [vmem:[%s12 + $0x30] sm:$0xf]
        %v1958 = vld [vmem:[%s12 + $0x34] sm:$0xf]
        %v1959 = vld [vmem:[%s12 + $0x38] sm:$0xf]
        %v1960 = vld [vmem:[%s12 + $0x3c] sm:$0xf]
        %v1961 = vld [vmem:[%s13] sm:$0x1]
        %v1963 = vlaneseq
        %v1964 = vshrl.u32 %v1963, 7
        %v1965 = vsub.s32 0, %v1964
        %v1966 = vrot.slane %v1961, %v1965
        %v1984 = vunpack.c.l.b16 %v1945
        %v1985 = vunpack.c.l.b16 %v1946
        %v1986 = vunpack.c.l.b16 %v1947
        %v1987 = vunpack.c.l.b16 %v1948
        %v1988 = vunpack.c.l.b16 %v1949
        %v1989 = vunpack.c.l.b16 %v1950
        %v1990 = vunpack.c.l.b16 %v1951
        %v1991 = vunpack.c.l.b16 %v1952
        %v1992 = vunpack.c.l.b16 %v1953
        %v1993 = vunpack.c.l.b16 %v1954
        %v1994 = vunpack.c.l.b16 %v1955
        %v1995 = vunpack.c.l.b16 %v1956
        %v1996 = vunpack.c.l.b16 %v1957
        %v1997 = vunpack.c.l.b16 %v1958
        %v1998 = vunpack.c.l.b16 %v1959
        %v1999 = vunpack.c.l.b16 %v1960
        %v2000 = vpack.c.b16 %v1985, %v1984
        %v2001 = vpack.c.b16 %v1987, %v1986
        %v2002 = vpack.c.b16 %v1989, %v1988
        %v2003 = vpack.c.b16 %v1991, %v1990
        %v2004 = vpack.c.b16 %v1993, %v1992
        %v2005 = vpack.c.b16 %v1995, %v1994
        %v2006 = vpack.c.b16 %v1997, %v1996
        %v2007 = vpack.c.b16 %v1999, %v1998
        %2016 = vmatprep.subr.bf16.mxu0 0
        %2017 = vmatpush1.bf16.msra.mxu0 %v2007
        %2018 = vmatprep.subr.bf16.mxu0 0
        %2019 = vmatpush1.bf16.msra.mxu0 %v2006
        %2020 = vmatprep.subr.bf16.mxu0 0
        %2021 = vmatpush1.bf16.msra.mxu0 %v2005
        %2022 = vmatprep.subr.bf16.mxu0 0
        %2023 = vmatpush1.bf16.msra.mxu0 %v2004
        %2024 = vmatprep.subr.bf16.mxu0 0
        %2025 = vmatpush1.bf16.msra.mxu0 %v2003
        %2026 = vmatprep.subr.bf16.mxu0 0
        %2027 = vmatpush1.bf16.msra.mxu0 %v2002
        %2028 = vmatprep.subr.bf16.mxu0 0
        %2029 = vmatpush1.bf16.msra.mxu0 %v2001
        %2030 = vmatprep.subr.bf16.mxu0 0
        %2031 = vmatpush1.bf16.msra.mxu0 %v2000
        %2032 = vmatprep.subr.bf16.mxu0 0
        %2033 = vmatpush2.bf16.msra.mxu0 0
        %2034 = vmatprep.subr.bf16.mxu0 0
        %2035 = vmatpush2.bf16.msra.mxu0 0
        %2036 = vmatprep.subr.bf16.mxu0 0
        %2037 = vmatpush2.bf16.msra.mxu0 0
        %2038 = vmatprep.subr.bf16.mxu0 0
        %2039 = vmatpush2.bf16.msra.mxu0 0
        %2040 = vmatprep.subr.bf16.mxu0 0
        %2041 = vmatpush2.bf16.msra.mxu0 0
        %2042 = vmatprep.subr.bf16.mxu0 0
        %2043 = vmatpush2.bf16.msra.mxu0 0
        %2044 = vmatprep.subr.bf16.mxu0 0
        %2045 = vmatpush2.bf16.msra.mxu0 0
        %2046 = vmatprep.subr.bf16.mxu0 0
        %2047 = vmatpush2.bf16.msra.mxu0 0
        %2048 = vmatprep.mubr.bf16.mxu0 0
        %2049 = vmatmul.mubr.bf16.gmra.mxu0 %v1944
        %v2050 = vpop.f32.mrf.mxu0
        %v2051 = vadd.f32 %v1966, %v2050
        %v2052 = vpop.f32.mrf.mxu0
        %v2053 = vpop.f32.mrf.mxu0
        %v2054 = vpop.f32.mrf.mxu0
        %2055 = vdwg.mxu0
        %v2056 = vunpack.c.l.bf16 %v1868
        %v2057 = vadd.f32 %v2056, %v2051
        %v2058 = vld [vmem:[%s14] sm:$0x1]
        %v2059 = vld [vmem:[%s15] sm:$0x1]
        %v2060 = vsel %vm643, %v2057, 0.0
        %2061 = vadd.xlane.f32.xlu0 %v2060
        %v2062 = vpop.xlane.xlu0 %2061
        %v2063 = vmul.f32 %v2062, %v647
        %v2064 = vsub.f32 %v2057, %v2063
        %v2065 = vmul.f32 %v2064, %v2064
        %v2066 = vsel %vm643, %v2065, 0.0
        %2067 = vadd.xlane.f32.xlu0 %v2066
        %v2068 = vpop.xlane.xlu0 %2067
        %v2069 = vmul.f32 %v2068, %v647
        %v2070 = vadd.f32 %v2069, 1e-12
        %v2071 = vrsqrt.pop %v2070
        %v2072 = vmul.f32 %v2064, %v2071
        %v2074 = vlaneseq
        %v2075 = vshrl.u32 %v2074, 7
        %v2076 = vsub.s32 0, %v2075
        %v2077 = vrot.slane %v2058, %v2076
        %v2079 = vmul.f32 %v2072, %v2077
        %v2081 = vlaneseq
        %v2082 = vshrl.u32 %v2081, 7
        %v2083 = vsub.s32 0, %v2082
        %v2084 = vrot.slane %v2059, %v2083
        %v2086 = vadd.f32 %v2079, %v2084
        %v2087 = vpack.c.bf16 %v2086, %v2086
        %s2088 = scalar_lea.vmem %s4, 16
        %v2089 = vld [vmem:[%s2088] sm:$0xf]
        %v2090 = vld [vmem:[%s2088 + $0x4] sm:$0xf]
        %v2091 = vld [vmem:[%s2088 + $0x8] sm:$0xf]
        %v2092 = vld [vmem:[%s2088 + $0xc] sm:$0xf]
        %s2093 = scalar_lea.vmem %s5, 1
        %v2094 = vld [vmem:[%s2093] sm:$0x1]
        %v2096 = vlaneseq
        %v2097 = vshrl.u32 %v2096, 7
        %v2098 = vsub.s32 0, %v2097
        %v2099 = vrot.slane %v2094, %v2098
        %v2105 = vunpack.c.l.b16 %v2089
        %v2106 = vunpack.c.l.b16 %v2090
        %v2107 = vunpack.c.l.b16 %v2091
        %v2108 = vunpack.c.l.b16 %v2092
        %v2109 = vpack.c.b16 %v2106, %v2105
        %v2110 = vpack.c.b16 %v2108, %v2107
        %v2114 = vsel %vm643, %v2087, 0
        %2116 = vmatprep.subr.bf16.mxu0 0
        %2117 = vmatpush1.bf16.msra.mxu0 0
        %2118 = vmatprep.subr.bf16.mxu0 0
        %2119 = vmatpush1.bf16.msra.mxu0 0
        %2120 = vmatprep.subr.bf16.mxu0 0
        %2121 = vmatpush1.bf16.msra.mxu0 0
        %2122 = vmatprep.subr.bf16.mxu0 0
        %2123 = vmatpush1.bf16.msra.mxu0 0
        %2124 = vmatprep.subr.bf16.mxu0 0
        %2125 = vmatpush1.bf16.msra.mxu0 0
        %2126 = vmatprep.subr.bf16.mxu0 0
        %2127 = vmatpush1.bf16.msra.mxu0 0
        %2128 = vmatprep.subr.bf16.mxu0 0
        %2129 = vmatpush1.bf16.msra.mxu0 %v2110
        %2130 = vmatprep.subr.bf16.mxu0 0
        %2131 = vmatpush1.bf16.msra.mxu0 %v2109
        %2132 = vmatprep.subr.bf16.mxu0 0
        %2133 = vmatpush2.bf16.msra.mxu0 0
        %2134 = vmatprep.subr.bf16.mxu0 0
        %2135 = vmatpush2.bf16.msra.mxu0 0
        %2136 = vmatprep.subr.bf16.mxu0 0
        %2137 = vmatpush2.bf16.msra.mxu0 0
        %2138 = vmatprep.subr.bf16.mxu0 0
        %2139 = vmatpush2.bf16.msra.mxu0 0
        %2140 = vmatprep.subr.bf16.mxu0 0
        %2141 = vmatpush2.bf16.msra.mxu0 0
        %2142 = vmatprep.subr.bf16.mxu0 0
        %2143 = vmatpush2.bf16.msra.mxu0 0
        %2144 = vmatprep.subr.bf16.mxu0 0
        %2145 = vmatpush2.bf16.msra.mxu0 0
        %2146 = vmatprep.subr.bf16.mxu0 0
        %2147 = vmatpush2.bf16.msra.mxu0 0
        %2148 = vmatprep.mubr.bf16.mxu0 0
        %2149 = vmatmul.mubr.bf16.gmra.mxu0 %v2114
        %v2150 = vpop.f32.mrf.mxu0
        %v2151 = vadd.f32 %v2099, %v2150
        %v2152 = vpop.f32.mrf.mxu0
        %v2153 = vpop.f32.mrf.mxu0
        %v2154 = vpop.f32.mrf.mxu0
        %2155 = vdwg.mxu0
        %2157 = vrot.lane.b32.xlu0 %v2151, 120
        %v2158 = vpop.permute.xlu0 %2157
        %2160 = vrot.lane.b32.xlu0 %v2151, 112
        %v2161 = vpop.permute.xlu0 %2160
        %2163 = vrot.lane.b32.xlu0 %v2151, 104
        %v2164 = vpop.permute.xlu0 %2163
        %v2166 = vcombine.low %v2151, %v2161
        %v2167 = vcombine.high %v2151, %v2161
        %v2169 = vunpack.c.l.s4 1983009808
        %v2170 = vunpack.c.0.s8 %v2169
        %v2171 = vlaneseq
        %v2172 = vshrl.u32 %v2171, 7
        %v2173 = vsub.s32 %v2170, %v2172
        %v2174 = vrot.slane %v2166, %v2173
        %v2176 = vunpack.c.l.s4 1983009808
        %v2177 = vunpack.c.0.s8 %v2176
        %v2178 = vlaneseq
        %v2179 = vshrl.u32 %v2178, 7
        %v2180 = vsub.s32 %v2177, %v2179
        %v2181 = vrot.slane %v2167, %v2180
        %v2182 = vcombine.low %v2158, %v2164
        %v2183 = vcombine.high %v2158, %v2164
        %v2185 = vunpack.c.l.s4 1983009808
        %v2186 = vunpack.c.0.s8 %v2185
        %v2187 = vlaneseq
        %v2188 = vshrl.u32 %v2187, 7
        %v2189 = vsub.s32 %v2186, %v2188
        %v2190 = vrot.slane %v2182, %v2189
        %v2192 = vunpack.c.l.s4 1983009808
        %v2193 = vunpack.c.0.s8 %v2192
        %v2194 = vlaneseq
        %v2195 = vshrl.u32 %v2194, 7
        %v2196 = vsub.s32 %v2193, %v2195
        %v2197 = vrot.slane %v2183, %v2196
        %v2198 = vcombine.low %v2174, %v2190
        %v2199 = vcombine.high %v2174, %v2190
        %v2201 = vunpack.c.l.s4 1934713408
        %v2202 = vunpack.c.0.s8 %v2201
        %v2203 = vlaneseq
        %v2204 = vshrl.u32 %v2203, 7
        %v2205 = vsub.s32 %v2202, %v2204
        %v2206 = vrot.slane %v2198, %v2205
        %v2208 = vunpack.c.l.s4 1934713408
        %v2209 = vunpack.c.0.s8 %v2208
        %v2210 = vlaneseq
        %v2211 = vshrl.u32 %v2210, 7
        %v2212 = vsub.s32 %v2209, %v2211
        %v2213 = vrot.slane %v2199, %v2212
        %v2214 = vcombine.low %v2181, %v2197
        %v2215 = vcombine.high %v2181, %v2197
        %v2217 = vunpack.c.l.s4 1934713408
        %v2218 = vunpack.c.0.s8 %v2217
        %v2219 = vlaneseq
        %v2220 = vshrl.u32 %v2219, 7
        %v2221 = vsub.s32 %v2218, %v2220
        %v2222 = vrot.slane %v2214, %v2221
        %v2224 = vunpack.c.l.s4 1934713408
        %v2225 = vunpack.c.0.s8 %v2224
        %v2226 = vlaneseq
        %v2227 = vshrl.u32 %v2226, 7
        %v2228 = vsub.s32 %v2225, %v2227
        %v2229 = vrot.slane %v2215, %v2228
        %v2230 = vcombine.high %v2206, 0.0
        %v2231 = vcombine.high %v2213, 0.0
        %v2232 = vcombine.high %v2222, 0.0
        %v2233 = vcombine.high %v2229, 0.0
        %2234 = vrot.lane.b32.xlu0 %v2151, 96
        %v2235 = vpop.permute.xlu0 %2234
        %2236 = vrot.lane.b32.xlu0 %v2158, 96
        %v2237 = vpop.permute.xlu0 %2236
        %2238 = vrot.lane.b32.xlu0 %v2161, 96
        %v2239 = vpop.permute.xlu0 %2238
        %2240 = vrot.lane.b32.xlu0 %v2164, 96
        %v2241 = vpop.permute.xlu0 %2240
        %v2246 = vcombine.low %v2235, %v2239
        %v2247 = vcombine.high %v2235, %v2239
        %v2249 = vunpack.c.l.s4 1983009808
        %v2250 = vunpack.c.0.s8 %v2249
        %v2251 = vlaneseq
        %v2252 = vshrl.u32 %v2251, 7
        %v2253 = vsub.s32 %v2250, %v2252
        %v2254 = vrot.slane %v2246, %v2253
        %v2256 = vunpack.c.l.s4 1983009808
        %v2257 = vunpack.c.0.s8 %v2256
        %v2258 = vlaneseq
        %v2259 = vshrl.u32 %v2258, 7
        %v2260 = vsub.s32 %v2257, %v2259
        %v2261 = vrot.slane %v2247, %v2260
        %v2262 = vcombine.low %v2237, %v2241
        %v2263 = vcombine.high %v2237, %v2241
        %v2265 = vunpack.c.l.s4 1983009808
        %v2266 = vunpack.c.0.s8 %v2265
        %v2267 = vlaneseq
        %v2268 = vshrl.u32 %v2267, 7
        %v2269 = vsub.s32 %v2266, %v2268
        %v2270 = vrot.slane %v2262, %v2269
        %v2272 = vunpack.c.l.s4 1983009808
        %v2273 = vunpack.c.0.s8 %v2272
        %v2274 = vlaneseq
        %v2275 = vshrl.u32 %v2274, 7
        %v2276 = vsub.s32 %v2273, %v2275
        %v2277 = vrot.slane %v2263, %v2276
        %v2278 = vcombine.low %v2254, %v2270
        %v2279 = vcombine.high %v2254, %v2270
        %v2281 = vunpack.c.l.s4 1934713408
        %v2282 = vunpack.c.0.s8 %v2281
        %v2283 = vlaneseq
        %v2284 = vshrl.u32 %v2283, 7
        %v2285 = vsub.s32 %v2282, %v2284
        %v2286 = vrot.slane %v2278, %v2285
        %v2288 = vunpack.c.l.s4 1934713408
        %v2289 = vunpack.c.0.s8 %v2288
        %v2290 = vlaneseq
        %v2291 = vshrl.u32 %v2290, 7
        %v2292 = vsub.s32 %v2289, %v2291
        %v2293 = vrot.slane %v2279, %v2292
        %v2294 = vcombine.low %v2261, %v2277
        %v2295 = vcombine.high %v2261, %v2277
        %v2297 = vunpack.c.l.s4 1934713408
        %v2298 = vunpack.c.0.s8 %v2297
        %v2299 = vlaneseq
        %v2300 = vshrl.u32 %v2299, 7
        %v2301 = vsub.s32 %v2298, %v2300
        %v2302 = vrot.slane %v2294, %v2301
        %v2304 = vunpack.c.l.s4 1934713408
        %v2305 = vunpack.c.0.s8 %v2304
        %v2306 = vlaneseq
        %v2307 = vshrl.u32 %v2306, 7
        %v2308 = vsub.s32 %v2305, %v2307
        %v2309 = vrot.slane %v2295, %v2308
        %v2310 = vcombine.high %v2286, 0.0
        %v2311 = vcombine.high %v2293, 0.0
        %v2312 = vcombine.high %v2302, 0.0
        %v2313 = vcombine.high %v2309, 0.0
        %2314 = vrot.lane.b32.xlu0 %v2151, 64
        %v2315 = vpop.permute.xlu0 %2314
        %2316 = vrot.lane.b32.xlu0 %v2158, 64
        %v2317 = vpop.permute.xlu0 %2316
        %2318 = vrot.lane.b32.xlu0 %v2161, 64
        %v2319 = vpop.permute.xlu0 %2318
        %2320 = vrot.lane.b32.xlu0 %v2164, 64
        %v2321 = vpop.permute.xlu0 %2320
        %v2326 = vcombine.low %v2315, %v2319
        %v2327 = vcombine.high %v2315, %v2319
        %v2329 = vunpack.c.l.s4 1983009808
        %v2330 = vunpack.c.0.s8 %v2329
        %v2331 = vlaneseq
        %v2332 = vshrl.u32 %v2331, 7
        %v2333 = vsub.s32 %v2330, %v2332
        %v2334 = vrot.slane %v2326, %v2333
        %v2336 = vunpack.c.l.s4 1983009808
        %v2337 = vunpack.c.0.s8 %v2336
        %v2338 = vlaneseq
        %v2339 = vshrl.u32 %v2338, 7
        %v2340 = vsub.s32 %v2337, %v2339
        %v2341 = vrot.slane %v2327, %v2340
        %v2342 = vcombine.low %v2317, %v2321
        %v2343 = vcombine.high %v2317, %v2321
        %v2345 = vunpack.c.l.s4 1983009808
        %v2346 = vunpack.c.0.s8 %v2345
        %v2347 = vlaneseq
        %v2348 = vshrl.u32 %v2347, 7
        %v2349 = vsub.s32 %v2346, %v2348
        %v2350 = vrot.slane %v2342, %v2349
        %v2352 = vunpack.c.l.s4 1983009808
        %v2353 = vunpack.c.0.s8 %v2352
        %v2354 = vlaneseq
        %v2355 = vshrl.u32 %v2354, 7
        %v2356 = vsub.s32 %v2353, %v2355
        %v2357 = vrot.slane %v2343, %v2356
        %v2358 = vcombine.low %v2334, %v2350
        %v2359 = vcombine.high %v2334, %v2350
        %v2361 = vunpack.c.l.s4 1934713408
        %v2362 = vunpack.c.0.s8 %v2361
        %v2363 = vlaneseq
        %v2364 = vshrl.u32 %v2363, 7
        %v2365 = vsub.s32 %v2362, %v2364
        %v2366 = vrot.slane %v2358, %v2365
        %v2368 = vunpack.c.l.s4 1934713408
        %v2369 = vunpack.c.0.s8 %v2368
        %v2370 = vlaneseq
        %v2371 = vshrl.u32 %v2370, 7
        %v2372 = vsub.s32 %v2369, %v2371
        %v2373 = vrot.slane %v2359, %v2372
        %v2374 = vcombine.low %v2341, %v2357
        %v2375 = vcombine.high %v2341, %v2357
        %v2377 = vunpack.c.l.s4 1934713408
        %v2378 = vunpack.c.0.s8 %v2377
        %v2379 = vlaneseq
        %v2380 = vshrl.u32 %v2379, 7
        %v2381 = vsub.s32 %v2378, %v2380
        %v2382 = vrot.slane %v2374, %v2381
        %v2384 = vunpack.c.l.s4 1934713408
        %v2385 = vunpack.c.0.s8 %v2384
        %v2386 = vlaneseq
        %v2387 = vshrl.u32 %v2386, 7
        %v2388 = vsub.s32 %v2385, %v2387
        %v2389 = vrot.slane %v2375, %v2388
        %v2390 = vcombine.high %v2366, 0.0
        %v2391 = vcombine.high %v2373, 0.0
        %v2392 = vcombine.high %v2382, 0.0
        %v2393 = vcombine.high %v2389, 0.0
        %v2394 = vcombine.low %v2206, %v2213
        %v2396 = vunpack.c.l.s4 1983009808
        %v2397 = vunpack.c.0.s8 %v2396
        %v2398 = vlaneseq
        %v2399 = vshrl.u32 %v2398, 7
        %v2400 = vsub.s32 %v2397, %v2399
        %v2401 = vrot.slane %v2394, %v2400
        %v2402 = vcombine.low %v2230, %v2231
        %v2404 = vunpack.c.l.s4 1983009808
        %v2405 = vunpack.c.0.s8 %v2404
        %v2406 = vlaneseq
        %v2407 = vshrl.u32 %v2406, 7
        %v2408 = vsub.s32 %v2405, %v2407
        %v2409 = vrot.slane %v2402, %v2408
        %v2410 = vcombine.low %v2222, %v2229
        %v2412 = vunpack.c.l.s4 1983009808
        %v2413 = vunpack.c.0.s8 %v2412
        %v2414 = vlaneseq
        %v2415 = vshrl.u32 %v2414, 7
        %v2416 = vsub.s32 %v2413, %v2415
        %v2417 = vrot.slane %v2410, %v2416
        %v2418 = vcombine.low %v2232, %v2233
        %v2420 = vunpack.c.l.s4 1983009808
        %v2421 = vunpack.c.0.s8 %v2420
        %v2422 = vlaneseq
        %v2423 = vshrl.u32 %v2422, 7
        %v2424 = vsub.s32 %v2421, %v2423
        %v2425 = vrot.slane %v2418, %v2424
        %v2426 = vcombine.low %v2401, %v2409
        %v2427 = vcombine.high %v2401, %v2409
        %v2429 = vunpack.c.l.s4 1934713408
        %v2430 = vunpack.c.0.s8 %v2429
        %v2431 = vlaneseq
        %v2432 = vshrl.u32 %v2431, 7
        %v2433 = vsub.s32 %v2430, %v2432
        %v2434 = vrot.slane %v2426, %v2433
        %v2436 = vunpack.c.l.s4 1934713408
        %v2437 = vunpack.c.0.s8 %v2436
        %v2438 = vlaneseq
        %v2439 = vshrl.u32 %v2438, 7
        %v2440 = vsub.s32 %v2437, %v2439
        %v2441 = vrot.slane %v2427, %v2440
        %v2442 = vcombine.low %v2417, %v2425
        %v2443 = vcombine.high %v2417, %v2425
        %v2445 = vunpack.c.l.s4 1934713408
        %v2446 = vunpack.c.0.s8 %v2445
        %v2447 = vlaneseq
        %v2448 = vshrl.u32 %v2447, 7
        %v2449 = vsub.s32 %v2446, %v2448
        %v2450 = vrot.slane %v2442, %v2449
        %v2452 = vunpack.c.l.s4 1934713408
        %v2453 = vunpack.c.0.s8 %v2452
        %v2454 = vlaneseq
        %v2455 = vshrl.u32 %v2454, 7
        %v2456 = vsub.s32 %v2453, %v2455
        %v2457 = vrot.slane %v2443, %v2456
        %v2458 = vcombine.low %v2434, %v2450
        %v2459 = vcombine.high %v2434, %v2450
        %v2460 = vcombine.low %v2441, %v2457
        %v2461 = vcombine.high %v2441, %v2457
        %v2462 = vpack.c.bf16 %v2458, %v2458
        %v2463 = vpack.c.bf16 %v2459, %v2459
        %v2464 = vpack.c.bf16 %v2460, %v2460
        %v2465 = vpack.c.bf16 %v2461, %v2461
        %v2466 = vcombine.low %v2286, %v2293
        %v2468 = vunpack.c.l.s4 1983009808
        %v2469 = vunpack.c.0.s8 %v2468
        %v2470 = vlaneseq
        %v2471 = vshrl.u32 %v2470, 7
        %v2472 = vsub.s32 %v2469, %v2471
        %v2473 = vrot.slane %v2466, %v2472
        %v2474 = vcombine.low %v2310, %v2311
        %v2476 = vunpack.c.l.s4 1983009808
        %v2477 = vunpack.c.0.s8 %v2476
        %v2478 = vlaneseq
        %v2479 = vshrl.u32 %v2478, 7
        %v2480 = vsub.s32 %v2477, %v2479
        %v2481 = vrot.slane %v2474, %v2480
        %v2482 = vcombine.low %v2302, %v2309
        %v2484 = vunpack.c.l.s4 1983009808
        %v2485 = vunpack.c.0.s8 %v2484
        %v2486 = vlaneseq
        %v2487 = vshrl.u32 %v2486, 7
        %v2488 = vsub.s32 %v2485, %v2487
        %v2489 = vrot.slane %v2482, %v2488
        %v2490 = vcombine.low %v2312, %v2313
        %v2492 = vunpack.c.l.s4 1983009808
        %v2493 = vunpack.c.0.s8 %v2492
        %v2494 = vlaneseq
        %v2495 = vshrl.u32 %v2494, 7
        %v2496 = vsub.s32 %v2493, %v2495
        %v2497 = vrot.slane %v2490, %v2496
        %v2498 = vcombine.low %v2473, %v2481
        %v2499 = vcombine.high %v2473, %v2481
        %v2501 = vunpack.c.l.s4 1934713408
        %v2502 = vunpack.c.0.s8 %v2501
        %v2503 = vlaneseq
        %v2504 = vshrl.u32 %v2503, 7
        %v2505 = vsub.s32 %v2502, %v2504
        %v2506 = vrot.slane %v2498, %v2505
        %v2508 = vunpack.c.l.s4 1934713408
        %v2509 = vunpack.c.0.s8 %v2508
        %v2510 = vlaneseq
        %v2511 = vshrl.u32 %v2510, 7
        %v2512 = vsub.s32 %v2509, %v2511
        %v2513 = vrot.slane %v2499, %v2512
        %v2514 = vcombine.low %v2489, %v2497
        %v2515 = vcombine.high %v2489, %v2497
        %v2517 = vunpack.c.l.s4 1934713408
        %v2518 = vunpack.c.0.s8 %v2517
        %v2519 = vlaneseq
        %v2520 = vshrl.u32 %v2519, 7
        %v2521 = vsub.s32 %v2518, %v2520
        %v2522 = vrot.slane %v2514, %v2521
        %v2524 = vunpack.c.l.s4 1934713408
        %v2525 = vunpack.c.0.s8 %v2524
        %v2526 = vlaneseq
        %v2527 = vshrl.u32 %v2526, 7
        %v2528 = vsub.s32 %v2525, %v2527
        %v2529 = vrot.slane %v2515, %v2528
        %v2530 = vcombine.low %v2506, %v2522
        %v2531 = vcombine.high %v2506, %v2522
        %v2532 = vcombine.low %v2513, %v2529
        %v2533 = vcombine.high %v2513, %v2529
        %v2534 = vpack.c.bf16 %v2530, %v2530
        %v2535 = vpack.c.bf16 %v2531, %v2531
        %v2536 = vpack.c.bf16 %v2532, %v2532
        %v2537 = vpack.c.bf16 %v2533, %v2533
        %v2538 = vcombine.low %v2366, %v2373
        %v2540 = vunpack.c.l.s4 1983009808
        %v2541 = vunpack.c.0.s8 %v2540
        %v2542 = vlaneseq
        %v2543 = vshrl.u32 %v2542, 7
        %v2544 = vsub.s32 %v2541, %v2543
        %v2545 = vrot.slane %v2538, %v2544
        %v2546 = vcombine.low %v2390, %v2391
        %v2548 = vunpack.c.l.s4 1983009808
        %v2549 = vunpack.c.0.s8 %v2548
        %v2550 = vlaneseq
        %v2551 = vshrl.u32 %v2550, 7
        %v2552 = vsub.s32 %v2549, %v2551
        %v2553 = vrot.slane %v2546, %v2552
        %v2554 = vcombine.low %v2382, %v2389
        %v2556 = vunpack.c.l.s4 1983009808
        %v2557 = vunpack.c.0.s8 %v2556
        %v2558 = vlaneseq
        %v2559 = vshrl.u32 %v2558, 7
        %v2560 = vsub.s32 %v2557, %v2559
        %v2561 = vrot.slane %v2554, %v2560
        %v2562 = vcombine.low %v2392, %v2393
        %v2564 = vunpack.c.l.s4 1983009808
        %v2565 = vunpack.c.0.s8 %v2564
        %v2566 = vlaneseq
        %v2567 = vshrl.u32 %v2566, 7
        %v2568 = vsub.s32 %v2565, %v2567
        %v2569 = vrot.slane %v2562, %v2568
        %v2570 = vcombine.low %v2545, %v2553
        %v2571 = vcombine.high %v2545, %v2553
        %v2573 = vunpack.c.l.s4 1934713408
        %v2574 = vunpack.c.0.s8 %v2573
        %v2575 = vlaneseq
        %v2576 = vshrl.u32 %v2575, 7
        %v2577 = vsub.s32 %v2574, %v2576
        %v2578 = vrot.slane %v2570, %v2577
        %v2580 = vunpack.c.l.s4 1934713408
        %v2581 = vunpack.c.0.s8 %v2580
        %v2582 = vlaneseq
        %v2583 = vshrl.u32 %v2582, 7
        %v2584 = vsub.s32 %v2581, %v2583
        %v2585 = vrot.slane %v2571, %v2584
        %v2586 = vcombine.low %v2561, %v2569
        %v2587 = vcombine.high %v2561, %v2569
        %v2589 = vunpack.c.l.s4 1934713408
        %v2590 = vunpack.c.0.s8 %v2589
        %v2591 = vlaneseq
        %v2592 = vshrl.u32 %v2591, 7
        %v2593 = vsub.s32 %v2590, %v2592
        %v2594 = vrot.slane %v2586, %v2593
        %v2596 = vunpack.c.l.s4 1934713408
        %v2597 = vunpack.c.0.s8 %v2596
        %v2598 = vlaneseq
        %v2599 = vshrl.u32 %v2598, 7
        %v2600 = vsub.s32 %v2597, %v2599
        %v2601 = vrot.slane %v2587, %v2600
        %v2602 = vcombine.low %v2578, %v2594
        %v2603 = vcombine.high %v2578, %v2594
        %v2604 = vcombine.low %v2585, %v2601
        %v2605 = vcombine.high %v2585, %v2601
        %v2606 = vpack.c.bf16 %v2602, %v2602
        %v2607 = vpack.c.bf16 %v2603, %v2603
        %v2608 = vpack.c.bf16 %v2604, %v2604
        %v2609 = vpack.c.bf16 %v2605, %v2605
        %v2611 = vsel %vm1199, %v2462, 0
        %v2614 = vsel %vm1199, %v2534, 0
        %2616 = vmatprep.subr.bf16.mxu0 0
        %2617 = vmatpush1.bf16.xpose.msra.mxu0 0
        %2618 = vmatprep.subr.bf16.mxu0 0
        %2619 = vmatpush1.bf16.xpose.msra.mxu0 0
        %2620 = vmatprep.subr.bf16.mxu0 0
        %2621 = vmatpush1.bf16.xpose.msra.mxu0 0
        %2622 = vmatprep.subr.bf16.mxu0 0
        %2623 = vmatpush1.bf16.xpose.msra.mxu0 0
        %2624 = vmatprep.subr.bf16.mxu0 0
        %2625 = vmatpush1.bf16.xpose.msra.mxu0 0
        %2626 = vmatprep.subr.bf16.mxu0 0
        %2627 = vmatpush1.bf16.xpose.msra.mxu0 0
        %2628 = vmatprep.subr.bf16.mxu0 0
        %2629 = vmatpush1.bf16.xpose.msra.mxu0 0
        %2630 = vmatprep.subr.bf16.mxu0 0
        %2631 = vmatpush1.bf16.xpose.msra.mxu0 %v2614
        %2632 = vmatprep.subr.bf16.mxu0 0
        %2633 = vmatpush2.bf16.xpose.msra.mxu0 0
        %2634 = vmatprep.subr.bf16.mxu0 0
        %2635 = vmatpush2.bf16.xpose.msra.mxu0 0
        %2636 = vmatprep.subr.bf16.mxu0 0
        %2637 = vmatpush2.bf16.xpose.msra.mxu0 0
        %2638 = vmatprep.subr.bf16.mxu0 0
        %2639 = vmatpush2.bf16.xpose.msra.mxu0 0
        %2640 = vmatprep.subr.bf16.mxu0 0
        %2641 = vmatpush2.bf16.xpose.msra.mxu0 0
        %2642 = vmatprep.subr.bf16.mxu0 0
        %2643 = vmatpush2.bf16.xpose.msra.mxu0 0
        %2644 = vmatprep.subr.bf16.mxu0 0
        %2645 = vmatpush2.bf16.xpose.msra.mxu0 0
        %2646 = vmatprep.subr.bf16.mxu0 0
        %2647 = vmatpush2.bf16.xpose.msra.mxu0 0
        %2648 = vmatprep.mubr.bf16.mxu0 0
        %2649 = vmatmul.mubr.bf16.gmra.mxu0 %v2611
        %v2650 = vpop.f32.mrf.mxu0
        %v2651 = vadd.f32 %v1197, %v2650
        %v2652 = vpop.f32.mrf.mxu0
        %v2653 = vpop.f32.mrf.mxu0
        %v2654 = vpop.f32.mrf.mxu0
        %2655 = vdwg.mxu0
        %v2657 = vsel %vm1199, %v2463, 0
        %v2660 = vsel %vm1199, %v2535, 0
        %2662 = vmatprep.subr.bf16.mxu0 0
        %2663 = vmatpush1.bf16.xpose.msra.mxu0 0
        %2664 = vmatprep.subr.bf16.mxu0 0
        %2665 = vmatpush1.bf16.xpose.msra.mxu0 0
        %2666 = vmatprep.subr.bf16.mxu0 0
        %2667 = vmatpush1.bf16.xpose.msra.mxu0 0
        %2668 = vmatprep.subr.bf16.mxu0 0
        %2669 = vmatpush1.bf16.xpose.msra.mxu0 0
        %2670 = vmatprep.subr.bf16.mxu0 0
        %2671 = vmatpush1.bf16.xpose.msra.mxu0 0
        %2672 = vmatprep.subr.bf16.mxu0 0
        %2673 = vmatpush1.bf16.xpose.msra.mxu0 0
        %2674 = vmatprep.subr.bf16.mxu0 0
        %2675 = vmatpush1.bf16.xpose.msra.mxu0 0
        %2676 = vmatprep.subr.bf16.mxu0 0
        %2677 = vmatpush1.bf16.xpose.msra.mxu0 %v2660
        %2678 = vmatprep.subr.bf16.mxu0 0
        %2679 = vmatpush2.bf16.xpose.msra.mxu0 0
        %2680 = vmatprep.subr.bf16.mxu0 0
        %2681 = vmatpush2.bf16.xpose.msra.mxu0 0
        %2682 = vmatprep.subr.bf16.mxu0 0
        %2683 = vmatpush2.bf16.xpose.msra.mxu0 0
        %2684 = vmatprep.subr.bf16.mxu0 0
        %2685 = vmatpush2.bf16.xpose.msra.mxu0 0
        %2686 = vmatprep.subr.bf16.mxu0 0
        %2687 = vmatpush2.bf16.xpose.msra.mxu0 0
        %2688 = vmatprep.subr.bf16.mxu0 0
        %2689 = vmatpush2.bf16.xpose.msra.mxu0 0
        %2690 = vmatprep.subr.bf16.mxu0 0
        %2691 = vmatpush2.bf16.xpose.msra.mxu0 0
        %2692 = vmatprep.subr.bf16.mxu0 0
        %2693 = vmatpush2.bf16.xpose.msra.mxu0 0
        %2694 = vmatprep.mubr.bf16.mxu0 0
        %2695 = vmatmul.mubr.bf16.gmra.mxu0 %v2657
        %v2696 = vpop.f32.mrf.mxu0
        %v2697 = vadd.f32 %v1197, %v2696
        %v2698 = vpop.f32.mrf.mxu0
        %v2699 = vpop.f32.mrf.mxu0
        %v2700 = vpop.f32.mrf.mxu0
        %2701 = vdwg.mxu0
        %v2703 = vsel %vm1199, %v2464, 0
        %v2706 = vsel %vm1199, %v2536, 0
        %2708 = vmatprep.subr.bf16.mxu0 0
        %2709 = vmatpush1.bf16.xpose.msra.mxu0 0
        %2710 = vmatprep.subr.bf16.mxu0 0
        %2711 = vmatpush1.bf16.xpose.msra.mxu0 0
        %2712 = vmatprep.subr.bf16.mxu0 0
        %2713 = vmatpush1.bf16.xpose.msra.mxu0 0
        %2714 = vmatprep.subr.bf16.mxu0 0
        %2715 = vmatpush1.bf16.xpose.msra.mxu0 0
        %2716 = vmatprep.subr.bf16.mxu0 0
        %2717 = vmatpush1.bf16.xpose.msra.mxu0 0
        %2718 = vmatprep.subr.bf16.mxu0 0
        %2719 = vmatpush1.bf16.xpose.msra.mxu0 0
        %2720 = vmatprep.subr.bf16.mxu0 0
        %2721 = vmatpush1.bf16.xpose.msra.mxu0 0
        %2722 = vmatprep.subr.bf16.mxu0 0
        %2723 = vmatpush1.bf16.xpose.msra.mxu0 %v2706
        %2724 = vmatprep.subr.bf16.mxu0 0
        %2725 = vmatpush2.bf16.xpose.msra.mxu0 0
        %2726 = vmatprep.subr.bf16.mxu0 0
        %2727 = vmatpush2.bf16.xpose.msra.mxu0 0
        %2728 = vmatprep.subr.bf16.mxu0 0
        %2729 = vmatpush2.bf16.xpose.msra.mxu0 0
        %2730 = vmatprep.subr.bf16.mxu0 0
        %2731 = vmatpush2.bf16.xpose.msra.mxu0 0
        %2732 = vmatprep.subr.bf16.mxu0 0
        %2733 = vmatpush2.bf16.xpose.msra.mxu0 0
        %2734 = vmatprep.subr.bf16.mxu0 0
        %2735 = vmatpush2.bf16.xpose.msra.mxu0 0
        %2736 = vmatprep.subr.bf16.mxu0 0
        %2737 = vmatpush2.bf16.xpose.msra.mxu0 0
        %2738 = vmatprep.subr.bf16.mxu0 0
        %2739 = vmatpush2.bf16.xpose.msra.mxu0 0
        %2740 = vmatprep.mubr.bf16.mxu0 0
        %2741 = vmatmul.mubr.bf16.gmra.mxu0 %v2703
        %v2742 = vpop.f32.mrf.mxu0
        %v2743 = vadd.f32 %v1197, %v2742
        %v2744 = vpop.f32.mrf.mxu0
        %v2745 = vpop.f32.mrf.mxu0
        %v2746 = vpop.f32.mrf.mxu0
        %2747 = vdwg.mxu0
        %v2749 = vsel %vm1199, %v2465, 0
        %v2752 = vsel %vm1199, %v2537, 0
        %2754 = vmatprep.subr.bf16.mxu0 0
        %2755 = vmatpush1.bf16.xpose.msra.mxu0 0
        %2756 = vmatprep.subr.bf16.mxu0 0
        %2757 = vmatpush1.bf16.xpose.msra.mxu0 0
        %2758 = vmatprep.subr.bf16.mxu0 0
        %2759 = vmatpush1.bf16.xpose.msra.mxu0 0
        %2760 = vmatprep.subr.bf16.mxu0 0
        %2761 = vmatpush1.bf16.xpose.msra.mxu0 0
        %2762 = vmatprep.subr.bf16.mxu0 0
        %2763 = vmatpush1.bf16.xpose.msra.mxu0 0
        %2764 = vmatprep.subr.bf16.mxu0 0
        %2765 = vmatpush1.bf16.xpose.msra.mxu0 0
        %2766 = vmatprep.subr.bf16.mxu0 0
        %2767 = vmatpush1.bf16.xpose.msra.mxu0 0
        %2768 = vmatprep.subr.bf16.mxu0 0
        %2769 = vmatpush1.bf16.xpose.msra.mxu0 %v2752
        %2770 = vmatprep.subr.bf16.mxu0 0
        %2771 = vmatpush2.bf16.xpose.msra.mxu0 0
        %2772 = vmatprep.subr.bf16.mxu0 0
        %2773 = vmatpush2.bf16.xpose.msra.mxu0 0
        %2774 = vmatprep.subr.bf16.mxu0 0
        %2775 = vmatpush2.bf16.xpose.msra.mxu0 0
        %2776 = vmatprep.subr.bf16.mxu0 0
        %2777 = vmatpush2.bf16.xpose.msra.mxu0 0
        %2778 = vmatprep.subr.bf16.mxu0 0
        %2779 = vmatpush2.bf16.xpose.msra.mxu0 0
        %2780 = vmatprep.subr.bf16.mxu0 0
        %2781 = vmatpush2.bf16.xpose.msra.mxu0 0
        %2782 = vmatprep.subr.bf16.mxu0 0
        %2783 = vmatpush2.bf16.xpose.msra.mxu0 0
        %2784 = vmatprep.subr.bf16.mxu0 0
        %2785 = vmatpush2.bf16.xpose.msra.mxu0 0
        %2786 = vmatprep.mubr.bf16.mxu0 0
        %2787 = vmatmul.mubr.bf16.gmra.mxu0 %v2749
        %v2788 = vpop.f32.mrf.mxu0
        %v2789 = vadd.f32 %v1197, %v2788
        %v2790 = vpop.f32.mrf.mxu0
        %v2791 = vpop.f32.mrf.mxu0
        %v2792 = vpop.f32.mrf.mxu0
        %2793 = vdwg.mxu0
        %v2794 = vsel %vm1199, %v2651, -inf
        %2795 = vmax.xlane.f32.xlu0 %v2794
        %v2796 = vpop.xlane.xlu0 %2795
        %v2797 = vsel %vm1199, %v2697, -inf
        %2798 = vmax.xlane.f32.xlu0 %v2797
        %v2799 = vpop.xlane.xlu0 %2798
        %v2800 = vsel %vm1199, %v2743, -inf
        %2801 = vmax.xlane.f32.xlu0 %v2800
        %v2802 = vpop.xlane.xlu0 %2801
        %v2803 = vsel %vm1199, %v2789, -inf
        %2804 = vmax.xlane.f32.xlu0 %v2803
        %v2805 = vpop.xlane.xlu0 %2804
        %v2806 = vsub.f32 %v2651, %v2796
        %v2807 = vsub.f32 %v2697, %v2799
        %v2808 = vsub.f32 %v2743, %v2802
        %v2809 = vsub.f32 %v2789, %v2805
        %v2810 = vmul.f32 %v2806, 1.442695
        %v2811 = vpow.pop %v2810
        %v2812 = vmul.f32 %v2807, 1.442695
        %v2813 = vpow.pop %v2812
        %v2814 = vmul.f32 %v2808, 1.442695
        %v2815 = vpow.pop %v2814
        %v2816 = vmul.f32 %v2809, 1.442695
        %v2817 = vpow.pop %v2816
        %v2818 = vsel %vm1199, %v2811, 0.0
        %2819 = vadd.xlane.f32.xlu0 %v2818
        %v2820 = vpop.xlane.xlu0 %2819
        %v2821 = vsel %vm1199, %v2813, 0.0
        %2822 = vadd.xlane.f32.xlu0 %v2821
        %v2823 = vpop.xlane.xlu0 %2822
        %v2824 = vsel %vm1199, %v2815, 0.0
        %2825 = vadd.xlane.f32.xlu0 %v2824
        %v2826 = vpop.xlane.xlu0 %2825
        %v2827 = vsel %vm1199, %v2817, 0.0
        %2828 = vadd.xlane.f32.xlu0 %v2827
        %v2829 = vpop.xlane.xlu0 %2828
        %v2830 = vrcp.pop %v2820
        %v2831 = vrcp.pop %v2823
        %v2832 = vrcp.pop %v2826
        %v2833 = vrcp.pop %v2829
        %v2834 = vmul.f32 %v2811, %v2830
        %v2835 = vmul.f32 %v2813, %v2831
        %v2836 = vmul.f32 %v2815, %v2832
        %v2837 = vmul.f32 %v2817, %v2833
        %v2838 = vpack.c.bf16 %v2834, %v2834
        %v2839 = vpack.c.bf16 %v2835, %v2835
        %v2840 = vpack.c.bf16 %v2836, %v2836
        %v2841 = vpack.c.bf16 %v2837, %v2837
        %v2843 = vsel %vm1199, %v2838, 0
        %v2846 = vsel %vm1435, %v2606, 0
        %2848 = vmatprep.subr.bf16.mxu0 0
        %2849 = vmatpush1.bf16.msra.mxu0 0
        %2850 = vmatprep.subr.bf16.mxu0 0
        %2851 = vmatpush1.bf16.msra.mxu0 0
        %2852 = vmatprep.subr.bf16.mxu0 0
        %2853 = vmatpush1.bf16.msra.mxu0 0
        %2854 = vmatprep.subr.bf16.mxu0 0
        %2855 = vmatpush1.bf16.msra.mxu0 0
        %2856 = vmatprep.subr.bf16.mxu0 0
        %2857 = vmatpush1.bf16.msra.mxu0 0
        %2858 = vmatprep.subr.bf16.mxu0 0
        %2859 = vmatpush1.bf16.msra.mxu0 0
        %2860 = vmatprep.subr.bf16.mxu0 0
        %2861 = vmatpush1.bf16.msra.mxu0 0
        %2862 = vmatprep.subr.bf16.mxu0 0
        %2863 = vmatpush1.bf16.msra.mxu0 %v2846
        %2864 = vmatprep.subr.bf16.mxu0 0
        %2865 = vmatpush2.bf16.msra.mxu0 0
        %2866 = vmatprep.subr.bf16.mxu0 0
        %2867 = vmatpush2.bf16.msra.mxu0 0
        %2868 = vmatprep.subr.bf16.mxu0 0
        %2869 = vmatpush2.bf16.msra.mxu0 0
        %2870 = vmatprep.subr.bf16.mxu0 0
        %2871 = vmatpush2.bf16.msra.mxu0 0
        %2872 = vmatprep.subr.bf16.mxu0 0
        %2873 = vmatpush2.bf16.msra.mxu0 0
        %2874 = vmatprep.subr.bf16.mxu0 0
        %2875 = vmatpush2.bf16.msra.mxu0 0
        %2876 = vmatprep.subr.bf16.mxu0 0
        %2877 = vmatpush2.bf16.msra.mxu0 0
        %2878 = vmatprep.subr.bf16.mxu0 0
        %2879 = vmatpush2.bf16.msra.mxu0 0
        %2880 = vmatprep.mubr.bf16.mxu0 0
        %2881 = vmatmul.mubr.bf16.gmra.mxu0 %v2843
        %v2882 = vpop.f32.mrf.mxu0
        %v2883 = vadd.f32 0.0, %v2882
        %v2884 = vpop.f32.mrf.mxu0
        %v2885 = vpop.f32.mrf.mxu0
        %v2886 = vpop.f32.mrf.mxu0
        %2887 = vdwg.mxu0
        %v2889 = vsel %vm1199, %v2839, 0
        %v2892 = vsel %vm1435, %v2607, 0
        %2894 = vmatprep.subr.bf16.mxu0 0
        %2895 = vmatpush1.bf16.msra.mxu0 0
        %2896 = vmatprep.subr.bf16.mxu0 0
        %2897 = vmatpush1.bf16.msra.mxu0 0
        %2898 = vmatprep.subr.bf16.mxu0 0
        %2899 = vmatpush1.bf16.msra.mxu0 0
        %2900 = vmatprep.subr.bf16.mxu0 0
        %2901 = vmatpush1.bf16.msra.mxu0 0
        %2902 = vmatprep.subr.bf16.mxu0 0
        %2903 = vmatpush1.bf16.msra.mxu0 0
        %2904 = vmatprep.subr.bf16.mxu0 0
        %2905 = vmatpush1.bf16.msra.mxu0 0
        %2906 = vmatprep.subr.bf16.mxu0 0
        %2907 = vmatpush1.bf16.msra.mxu0 0
        %2908 = vmatprep.subr.bf16.mxu0 0
        %2909 = vmatpush1.bf16.msra.mxu0 %v2892
        %2910 = vmatprep.subr.bf16.mxu0 0
        %2911 = vmatpush2.bf16.msra.mxu0 0
        %2912 = vmatprep.subr.bf16.mxu0 0
        %2913 = vmatpush2.bf16.msra.mxu0 0
        %2914 = vmatprep.subr.bf16.mxu0 0
        %2915 = vmatpush2.bf16.msra.mxu0 0
        %2916 = vmatprep.subr.bf16.mxu0 0
        %2917 = vmatpush2.bf16.msra.mxu0 0
        %2918 = vmatprep.subr.bf16.mxu0 0
        %2919 = vmatpush2.bf16.msra.mxu0 0
        %2920 = vmatprep.subr.bf16.mxu0 0
        %2921 = vmatpush2.bf16.msra.mxu0 0
        %2922 = vmatprep.subr.bf16.mxu0 0
        %2923 = vmatpush2.bf16.msra.mxu0 0
        %2924 = vmatprep.subr.bf16.mxu0 0
        %2925 = vmatpush2.bf16.msra.mxu0 0
        %2926 = vmatprep.mubr.bf16.mxu0 0
        %2927 = vmatmul.mubr.bf16.gmra.mxu0 %v2889
        %v2928 = vpop.f32.mrf.mxu0
        %v2929 = vadd.f32 0.0, %v2928
        %v2930 = vpop.f32.mrf.mxu0
        %v2931 = vpop.f32.mrf.mxu0
        %v2932 = vpop.f32.mrf.mxu0
        %2933 = vdwg.mxu0
        %v2935 = vsel %vm1199, %v2840, 0
        %v2938 = vsel %vm1435, %v2608, 0
        %2940 = vmatprep.subr.bf16.mxu0 0
        %2941 = vmatpush1.bf16.msra.mxu0 0
        %2942 = vmatprep.subr.bf16.mxu0 0
        %2943 = vmatpush1.bf16.msra.mxu0 0
        %2944 = vmatprep.subr.bf16.mxu0 0
        %2945 = vmatpush1.bf16.msra.mxu0 0
        %2946 = vmatprep.subr.bf16.mxu0 0
        %2947 = vmatpush1.bf16.msra.mxu0 0
        %2948 = vmatprep.subr.bf16.mxu0 0
        %2949 = vmatpush1.bf16.msra.mxu0 0
        %2950 = vmatprep.subr.bf16.mxu0 0
        %2951 = vmatpush1.bf16.msra.mxu0 0
        %2952 = vmatprep.subr.bf16.mxu0 0
        %2953 = vmatpush1.bf16.msra.mxu0 0
        %2954 = vmatprep.subr.bf16.mxu0 0
        %2955 = vmatpush1.bf16.msra.mxu0 %v2938
        %2956 = vmatprep.subr.bf16.mxu0 0
        %2957 = vmatpush2.bf16.msra.mxu0 0
        %2958 = vmatprep.subr.bf16.mxu0 0
        %2959 = vmatpush2.bf16.msra.mxu0 0
        %2960 = vmatprep.subr.bf16.mxu0 0
        %2961 = vmatpush2.bf16.msra.mxu0 0
        %2962 = vmatprep.subr.bf16.mxu0 0
        %2963 = vmatpush2.bf16.msra.mxu0 0
        %2964 = vmatprep.subr.bf16.mxu0 0
        %2965 = vmatpush2.bf16.msra.mxu0 0
        %2966 = vmatprep.subr.bf16.mxu0 0
        %2967 = vmatpush2.bf16.msra.mxu0 0
        %2968 = vmatprep.subr.bf16.mxu0 0
        %2969 = vmatpush2.bf16.msra.mxu0 0
        %2970 = vmatprep.subr.bf16.mxu0 0
        %2971 = vmatpush2.bf16.msra.mxu0 0
        %2972 = vmatprep.mubr.bf16.mxu0 0
        %2973 = vmatmul.mubr.bf16.gmra.mxu0 %v2935
        %v2974 = vpop.f32.mrf.mxu0
        %v2975 = vadd.f32 0.0, %v2974
        %v2976 = vpop.f32.mrf.mxu0
        %v2977 = vpop.f32.mrf.mxu0
        %v2978 = vpop.f32.mrf.mxu0
        %2979 = vdwg.mxu0
        %v2981 = vsel %vm1199, %v2841, 0
        %v2984 = vsel %vm1435, %v2609, 0
        %2986 = vmatprep.subr.bf16.mxu0 0
        %2987 = vmatpush1.bf16.msra.mxu0 0
        %2988 = vmatprep.subr.bf16.mxu0 0
        %2989 = vmatpush1.bf16.msra.mxu0 0
        %2990 = vmatprep.subr.bf16.mxu0 0
        %2991 = vmatpush1.bf16.msra.mxu0 0
        %2992 = vmatprep.subr.bf16.mxu0 0
        %2993 = vmatpush1.bf16.msra.mxu0 0
        %2994 = vmatprep.subr.bf16.mxu0 0
        %2995 = vmatpush1.bf16.msra.mxu0 0
        %2996 = vmatprep.subr.bf16.mxu0 0
        %2997 = vmatpush1.bf16.msra.mxu0 0
        %2998 = vmatprep.subr.bf16.mxu0 0
        %2999 = vmatpush1.bf16.msra.mxu0 0
        %3000 = vmatprep.subr.bf16.mxu0 0
        %3001 = vmatpush1.bf16.msra.mxu0 %v2984
        %3002 = vmatprep.subr.bf16.mxu0 0
        %3003 = vmatpush2.bf16.msra.mxu0 0
        %3004 = vmatprep.subr.bf16.mxu0 0
        %3005 = vmatpush2.bf16.msra.mxu0 0
        %3006 = vmatprep.subr.bf16.mxu0 0
        %3007 = vmatpush2.bf16.msra.mxu0 0
        %3008 = vmatprep.subr.bf16.mxu0 0
        %3009 = vmatpush2.bf16.msra.mxu0 0
        %3010 = vmatprep.subr.bf16.mxu0 0
        %3011 = vmatpush2.bf16.msra.mxu0 0
        %3012 = vmatprep.subr.bf16.mxu0 0
        %3013 = vmatpush2.bf16.msra.mxu0 0
        %3014 = vmatprep.subr.bf16.mxu0 0
        %3015 = vmatpush2.bf16.msra.mxu0 0
        %3016 = vmatprep.subr.bf16.mxu0 0
        %3017 = vmatpush2.bf16.msra.mxu0 0
        %3018 = vmatprep.mubr.bf16.mxu0 0
        %3019 = vmatmul.mubr.bf16.gmra.mxu0 %v2981
        %v3020 = vpop.f32.mrf.mxu0
        %v3021 = vadd.f32 0.0, %v3020
        %v3022 = vpop.f32.mrf.mxu0
        %v3023 = vpop.f32.mrf.mxu0
        %v3024 = vpop.f32.mrf.mxu0
        %3025 = vdwg.mxu0
        %v3026 = vcombine.low %v2883, %v2975
        %v3027 = vcombine.high %v2883, %v2975
        %v3029 = vunpack.c.l.s4 1983009808
        %v3030 = vunpack.c.0.s8 %v3029
        %v3031 = vlaneseq
        %v3032 = vshrl.u32 %v3031, 7
        %v3033 = vsub.s32 %v3030, %v3032
        %v3034 = vrot.slane %v3026, %v3033
        %v3036 = vunpack.c.l.s4 1983009808
        %v3037 = vunpack.c.0.s8 %v3036
        %v3038 = vlaneseq
        %v3039 = vshrl.u32 %v3038, 7
        %v3040 = vsub.s32 %v3037, %v3039
        %v3041 = vrot.slane %v3027, %v3040
        %v3042 = vcombine.low %v2929, %v3021
        %v3043 = vcombine.high %v2929, %v3021
        %v3045 = vunpack.c.l.s4 1983009808
        %v3046 = vunpack.c.0.s8 %v3045
        %v3047 = vlaneseq
        %v3048 = vshrl.u32 %v3047, 7
        %v3049 = vsub.s32 %v3046, %v3048
        %v3050 = vrot.slane %v3042, %v3049
        %v3052 = vunpack.c.l.s4 1983009808
        %v3053 = vunpack.c.0.s8 %v3052
        %v3054 = vlaneseq
        %v3055 = vshrl.u32 %v3054, 7
        %v3056 = vsub.s32 %v3053, %v3055
        %v3057 = vrot.slane %v3043, %v3056
        %v3058 = vcombine.low %v3034, %v3050
        %v3059 = vcombine.high %v3034, %v3050
        %v3061 = vunpack.c.l.s4 1934713408
        %v3062 = vunpack.c.0.s8 %v3061
        %v3063 = vlaneseq
        %v3064 = vshrl.u32 %v3063, 7
        %v3065 = vsub.s32 %v3062, %v3064
        %v3066 = vrot.slane %v3058, %v3065
        %v3068 = vunpack.c.l.s4 1934713408
        %v3069 = vunpack.c.0.s8 %v3068
        %v3070 = vlaneseq
        %v3071 = vshrl.u32 %v3070, 7
        %v3072 = vsub.s32 %v3069, %v3071
        %v3073 = vrot.slane %v3059, %v3072
        %v3074 = vcombine.low %v3041, %v3057
        %v3075 = vcombine.high %v3041, %v3057
        %v3077 = vunpack.c.l.s4 1934713408
        %v3078 = vunpack.c.0.s8 %v3077
        %v3079 = vlaneseq
        %v3080 = vshrl.u32 %v3079, 7
        %v3081 = vsub.s32 %v3078, %v3080
        %v3082 = vrot.slane %v3074, %v3081
        %v3084 = vunpack.c.l.s4 1934713408
        %v3085 = vunpack.c.0.s8 %v3084
        %v3086 = vlaneseq
        %v3087 = vshrl.u32 %v3086, 7
        %v3088 = vsub.s32 %v3085, %v3087
        %v3089 = vrot.slane %v3075, %v3088
        %v3090 = vcombine.high %v3066, 0.0
        %v3091 = vcombine.high %v3073, 0.0
        %v3092 = vcombine.high %v3082, 0.0
        %v3093 = vcombine.high %v3089, 0.0
        %v3094 = vcombine.low %v3066, %v3073
        %v3096 = vunpack.c.l.s4 1983009808
        %v3097 = vunpack.c.0.s8 %v3096
        %v3098 = vlaneseq
        %v3099 = vshrl.u32 %v3098, 7
        %v3100 = vsub.s32 %v3097, %v3099
        %v3101 = vrot.slane %v3094, %v3100
        %v3102 = vcombine.low %v3090, %v3091
        %v3104 = vunpack.c.l.s4 1983009808
        %v3105 = vunpack.c.0.s8 %v3104
        %v3106 = vlaneseq
        %v3107 = vshrl.u32 %v3106, 7
        %v3108 = vsub.s32 %v3105, %v3107
        %v3109 = vrot.slane %v3102, %v3108
        %v3110 = vcombine.low %v3082, %v3089
        %v3112 = vunpack.c.l.s4 1983009808
        %v3113 = vunpack.c.0.s8 %v3112
        %v3114 = vlaneseq
        %v3115 = vshrl.u32 %v3114, 7
        %v3116 = vsub.s32 %v3113, %v3115
        %v3117 = vrot.slane %v3110, %v3116
        %v3118 = vcombine.low %v3092, %v3093
        %v3120 = vunpack.c.l.s4 1983009808
        %v3121 = vunpack.c.0.s8 %v3120
        %v3122 = vlaneseq
        %v3123 = vshrl.u32 %v3122, 7
        %v3124 = vsub.s32 %v3121, %v3123
        %v3125 = vrot.slane %v3118, %v3124
        %v3126 = vcombine.low %v3101, %v3109
        %v3127 = vcombine.high %v3101, %v3109
        %v3129 = vunpack.c.l.s4 1934713408
        %v3130 = vunpack.c.0.s8 %v3129
        %v3131 = vlaneseq
        %v3132 = vshrl.u32 %v3131, 7
        %v3133 = vsub.s32 %v3130, %v3132
        %v3134 = vrot.slane %v3126, %v3133
        %v3136 = vunpack.c.l.s4 1934713408
        %v3137 = vunpack.c.0.s8 %v3136
        %v3138 = vlaneseq
        %v3139 = vshrl.u32 %v3138, 7
        %v3140 = vsub.s32 %v3137, %v3139
        %v3141 = vrot.slane %v3127, %v3140
        %v3142 = vcombine.low %v3117, %v3125
        %v3143 = vcombine.high %v3117, %v3125
        %v3145 = vunpack.c.l.s4 1934713408
        %v3146 = vunpack.c.0.s8 %v3145
        %v3147 = vlaneseq
        %v3148 = vshrl.u32 %v3147, 7
        %v3149 = vsub.s32 %v3146, %v3148
        %v3150 = vrot.slane %v3142, %v3149
        %v3152 = vunpack.c.l.s4 1934713408
        %v3153 = vunpack.c.0.s8 %v3152
        %v3154 = vlaneseq
        %v3155 = vshrl.u32 %v3154, 7
        %v3156 = vsub.s32 %v3153, %v3155
        %v3157 = vrot.slane %v3143, %v3156
        %v3158 = vcombine.low %v3134, %v3150
        %v3159 = vcombine.high %v3134, %v3150
        %v3160 = vcombine.low %v3141, %v3157
        %v3161 = vcombine.high %v3141, %v3157
        %3163 = vrot.lane.b32.xlu0 %v3159, 8
        %v3164 = vpop.permute.xlu0 %3163
        %3167 = vrot.lane.b32.xlu0 %v3160, 16
        %v3168 = vpop.permute.xlu0 %3167
        %3171 = vrot.lane.b32.xlu0 %v3161, 24
        %v3172 = vpop.permute.xlu0 %3171
        %v3174 = vsel %vm1199, %v3158, %v3164
        %v3175 = vsel %vm1766, %v3174, %v3168
        %v3176 = vsel %vm1768, %v3175, %v3172
        %v3177 = vpack.c.bf16 %v3176, %v3176
        %s3178 = scalar_lea.vmem %s6, 16
        %v3179 = vld [vmem:[%s3178] sm:$0xf]
        %v3180 = vld [vmem:[%s3178 + $0x4] sm:$0xf]
        %v3181 = vld [vmem:[%s3178 + $0x8] sm:$0xf]
        %v3182 = vld [vmem:[%s3178 + $0xc] sm:$0xf]
        %s3183 = scalar_lea.vmem %s7, 1
        %v3184 = vld [vmem:[%s3183] sm:$0x1]
        %v3186 = vlaneseq
        %v3187 = vshrl.u32 %v3186, 7
        %v3188 = vsub.s32 0, %v3187
        %v3189 = vrot.slane %v3184, %v3188
        %v3195 = vunpack.c.l.b16 %v3179
        %v3196 = vunpack.c.l.b16 %v3180
        %v3197 = vunpack.c.l.b16 %v3181
        %v3198 = vunpack.c.l.b16 %v3182
        %v3199 = vpack.c.b16 %v3196, %v3195
        %v3200 = vpack.c.b16 %v3198, %v3197
        %v3204 = vsel %vm643, %v3177, 0
        %3206 = vmatprep.subr.bf16.mxu0 0
        %3207 = vmatpush1.bf16.msra.mxu0 0
        %3208 = vmatprep.subr.bf16.mxu0 0
        %3209 = vmatpush1.bf16.msra.mxu0 0
        %3210 = vmatprep.subr.bf16.mxu0 0
        %3211 = vmatpush1.bf16.msra.mxu0 0
        %3212 = vmatprep.subr.bf16.mxu0 0
        %3213 = vmatpush1.bf16.msra.mxu0 0
        %3214 = vmatprep.subr.bf16.mxu0 0
        %3215 = vmatpush1.bf16.msra.mxu0 0
        %3216 = vmatprep.subr.bf16.mxu0 0
        %3217 = vmatpush1.bf16.msra.mxu0 0
        %3218 = vmatprep.subr.bf16.mxu0 0
        %3219 = vmatpush1.bf16.msra.mxu0 %v3200
        %3220 = vmatprep.subr.bf16.mxu0 0
        %3221 = vmatpush1.bf16.msra.mxu0 %v3199
        %3222 = vmatprep.subr.bf16.mxu0 0
        %3223 = vmatpush2.bf16.msra.mxu0 0
        %3224 = vmatprep.subr.bf16.mxu0 0
        %3225 = vmatpush2.bf16.msra.mxu0 0
        %3226 = vmatprep.subr.bf16.mxu0 0
        %3227 = vmatpush2.bf16.msra.mxu0 0
        %3228 = vmatprep.subr.bf16.mxu0 0
        %3229 = vmatpush2.bf16.msra.mxu0 0
        %3230 = vmatprep.subr.bf16.mxu0 0
        %3231 = vmatpush2.bf16.msra.mxu0 0
        %3232 = vmatprep.subr.bf16.mxu0 0
        %3233 = vmatpush2.bf16.msra.mxu0 0
        %3234 = vmatprep.subr.bf16.mxu0 0
        %3235 = vmatpush2.bf16.msra.mxu0 0
        %3236 = vmatprep.subr.bf16.mxu0 0
        %3237 = vmatpush2.bf16.msra.mxu0 0
        %3238 = vmatprep.mubr.bf16.mxu0 0
        %3239 = vmatmul.mubr.bf16.gmra.mxu0 %v3204
        %v3240 = vpop.f32.mrf.mxu0
        %v3241 = vadd.f32 %v3189, %v3240
        %v3242 = vpop.f32.mrf.mxu0
        %v3243 = vpop.f32.mrf.mxu0
        %v3244 = vpop.f32.mrf.mxu0
        %3245 = vdwg.mxu0
        %v3246 = vunpack.c.l.bf16 %v2087
        %v3247 = vadd.f32 %v3246, %v3241
        %s3248 = scalar_lea.vmem %s8, 1
        %v3249 = vld [vmem:[%s3248] sm:$0x1]
        %s3250 = scalar_lea.vmem %s9, 1
        %v3251 = vld [vmem:[%s3250] sm:$0x1]
        %v3252 = vsel %vm643, %v3247, 0.0
        %3253 = vadd.xlane.f32.xlu0 %v3252
        %v3254 = vpop.xlane.xlu0 %3253
        %v3255 = vmul.f32 %v3254, %v647
        %v3256 = vsub.f32 %v3247, %v3255
        %v3257 = vmul.f32 %v3256, %v3256
        %v3258 = vsel %vm643, %v3257, 0.0
        %3259 = vadd.xlane.f32.xlu0 %v3258
        %v3260 = vpop.xlane.xlu0 %3259
        %v3261 = vmul.f32 %v3260, %v647
        %v3262 = vadd.f32 %v3261, 1e-12
        %v3263 = vrsqrt.pop %v3262
        %v3264 = vmul.f32 %v3256, %v3263
        %v3266 = vlaneseq
        %v3267 = vshrl.u32 %v3266, 7
        %v3268 = vsub.s32 0, %v3267
        %v3269 = vrot.slane %v3249, %v3268
        %v3271 = vmul.f32 %v3264, %v3269
        %v3273 = vlaneseq
        %v3274 = vshrl.u32 %v3273, 7
        %v3275 = vsub.s32 0, %v3274
        %v3276 = vrot.slane %v3251, %v3275
        %v3278 = vadd.f32 %v3271, %v3276
        %v3279 = vpack.c.bf16 %v3278, %v3278
        %s3280 = scalar_lea.vmem %s10, 16
        %v3281 = vld [vmem:[%s3280] sm:$0xf]
        %v3282 = vld [vmem:[%s3280 + $0x4] sm:$0xf]
        %v3283 = vld [vmem:[%s3280 + $0x8] sm:$0xf]
        %v3284 = vld [vmem:[%s3280 + $0xc] sm:$0xf]
        %s3285 = scalar_lea.vmem %s11, 1
        %v3286 = vld [vmem:[%s3285] sm:$0x1]
        %v3288 = vlaneseq
        %v3289 = vshrl.u32 %v3288, 7
        %v3290 = vsub.s32 0, %v3289
        %v3291 = vrot.slane %v3286, %v3290
        %v3297 = vunpack.c.l.b16 %v3281
        %v3298 = vunpack.c.l.b16 %v3282
        %v3299 = vunpack.c.l.b16 %v3283
        %v3300 = vunpack.c.l.b16 %v3284
        %v3301 = vpack.c.b16 %v3298, %v3297
        %v3302 = vpack.c.b16 %v3300, %v3299
        %v3306 = vsel %vm643, %v3279, 0
        %3308 = vmatprep.subr.bf16.mxu0 0
        %3309 = vmatpush1.bf16.msra.mxu0 0
        %3310 = vmatprep.subr.bf16.mxu0 0
        %3311 = vmatpush1.bf16.msra.mxu0 0
        %3312 = vmatprep.subr.bf16.mxu0 0
        %3313 = vmatpush1.bf16.msra.mxu0 0
        %3314 = vmatprep.subr.bf16.mxu0 0
        %3315 = vmatpush1.bf16.msra.mxu0 0
        %3316 = vmatprep.subr.bf16.mxu0 0
        %3317 = vmatpush1.bf16.msra.mxu0 0
        %3318 = vmatprep.subr.bf16.mxu0 0
        %3319 = vmatpush1.bf16.msra.mxu0 0
        %3320 = vmatprep.subr.bf16.mxu0 0
        %3321 = vmatpush1.bf16.msra.mxu0 %v3302
        %3322 = vmatprep.subr.bf16.mxu0 0
        %3323 = vmatpush1.bf16.msra.mxu0 %v3301
        %3324 = vmatprep.subr.bf16.mxu0 0
        %3325 = vmatpush2.bf16.msra.mxu0 0
        %3326 = vmatprep.subr.bf16.mxu0 0
        %3327 = vmatpush2.bf16.msra.mxu0 0
        %3328 = vmatprep.subr.bf16.mxu0 0
        %3329 = vmatpush2.bf16.msra.mxu0 0
        %3330 = vmatprep.subr.bf16.mxu0 0
        %3331 = vmatpush2.bf16.msra.mxu0 0
        %3332 = vmatprep.subr.bf16.mxu0 0
        %3333 = vmatpush2.bf16.msra.mxu0 0
        %3334 = vmatprep.subr.bf16.mxu0 0
        %3335 = vmatpush2.bf16.msra.mxu0 0
        %3336 = vmatprep.subr.bf16.mxu0 0
        %3337 = vmatpush2.bf16.msra.mxu0 0
        %3338 = vmatprep.subr.bf16.mxu0 0
        %3339 = vmatpush2.bf16.msra.mxu0 0
        %3340 = vmatprep.mubr.bf16.mxu0 0
        %3341 = vmatmul.mubr.bf16.gmra.mxu0 %v3306
        %v3342 = vpop.f32.mrf.mxu0
        %v3343 = vadd.f32 %v3291, %v3342
        %v3344 = vpop.f32.mrf.mxu0
        %v3345 = vpop.f32.mrf.mxu0
        %v3346 = vpop.f32.mrf.mxu0
        %3347 = vdwg.mxu0
        %v3348 = vmul.f32 %v3343, 0.5
        %v3349 = vmul.f32 %v3343, 0.044715
        %v3350 = vmul.f32 %v3349, %v3343
        %v3351 = vmul.f32 %v3350, %v3343
        %v3352 = vadd.f32 %v3343, %v3351
        %v3353 = vmul.f32 %v3352, 0.7978846
        %v3354 = vtanh.pop %v3353
        %v3355 = vadd.f32 %v3354, 1.0
        %v3356 = vmul.f32 %v3348, %v3355
        %v3357 = vpack.c.bf16 %v3356, %v3356
        %s3358 = scalar_lea.vmem %s12, 64
        %v3359 = vld [vmem:[%s3358] sm:$0xf]
        %v3360 = vld [vmem:[%s3358 + $0x4] sm:$0xf]
        %v3361 = vld [vmem:[%s3358 + $0x8] sm:$0xf]
        %v3362 = vld [vmem:[%s3358 + $0xc] sm:$0xf]
        %v3363 = vld [vmem:[%s3358 + $0x10] sm:$0xf]
        %v3364 = vld [vmem:[%s3358 + $0x14] sm:$0xf]
        %v3365 = vld [vmem:[%s3358 + $0x18] sm:$0xf]
        %v3366 = vld [vmem:[%s3358 + $0x1c] sm:$0xf]
        %v3367 = vld [vmem:[%s3358 + $0x20] sm:$0xf]
        %v3368 = vld [vmem:[%s3358 + $0x24] sm:$0xf]
        %v3369 = vld [vmem:[%s3358 + $0x28] sm:$0xf]
        %v3370 = vld [vmem:[%s3358 + $0x2c] sm:$0xf]
        %v3371 = vld [vmem:[%s3358 + $0x30] sm:$0xf]
        %v3372 = vld [vmem:[%s3358 + $0x34] sm:$0xf]
        %v3373 = vld [vmem:[%s3358 + $0x38] sm:$0xf]
        %v3374 = vld [vmem:[%s3358 + $0x3c] sm:$0xf]
        %s3375 = scalar_lea.vmem %s13, 1
        %v3376 = vld [vmem:[%s3375] sm:$0x1]
        %v3378 = vlaneseq
        %v3379 = vshrl.u32 %v3378, 7
        %v3380 = vsub.s32 0, %v3379
        %v3381 = vrot.slane %v3376, %v3380
        %v3399 = vunpack.c.l.b16 %v3359
        %v3400 = vunpack.c.l.b16 %v3360
        %v3401 = vunpack.c.l.b16 %v3361
        %v3402 = vunpack.c.l.b16 %v3362
        %v3403 = vunpack.c.l.b16 %v3363
        %v3404 = vunpack.c.l.b16 %v3364
        %v3405 = vunpack.c.l.b16 %v3365
        %v3406 = vunpack.c.l.b16 %v3366
        %v3407 = vunpack.c.l.b16 %v3367
        %v3408 = vunpack.c.l.b16 %v3368
        %v3409 = vunpack.c.l.b16 %v3369
        %v3410 = vunpack.c.l.b16 %v3370
        %v3411 = vunpack.c.l.b16 %v3371
        %v3412 = vunpack.c.l.b16 %v3372
        %v3413 = vunpack.c.l.b16 %v3373
        %v3414 = vunpack.c.l.b16 %v3374
        %v3415 = vpack.c.b16 %v3400, %v3399
        %v3416 = vpack.c.b16 %v3402, %v3401
        %v3417 = vpack.c.b16 %v3404, %v3403
        %v3418 = vpack.c.b16 %v3406, %v3405
        %v3419 = vpack.c.b16 %v3408, %v3407
        %v3420 = vpack.c.b16 %v3410, %v3409
        %v3421 = vpack.c.b16 %v3412, %v3411
        %v3422 = vpack.c.b16 %v3414, %v3413
        %3431 = vmatprep.subr.bf16.mxu0 0
        %3432 = vmatpush1.bf16.msra.mxu0 %v3422
        %3433 = vmatprep.subr.bf16.mxu0 0
        %3434 = vmatpush1.bf16.msra.mxu0 %v3421
        %3435 = vmatprep.subr.bf16.mxu0 0
        %3436 = vmatpush1.bf16.msra.mxu0 %v3420
        %3437 = vmatprep.subr.bf16.mxu0 0
        %3438 = vmatpush1.bf16.msra.mxu0 %v3419
        %3439 = vmatprep.subr.bf16.mxu0 0
        %3440 = vmatpush1.bf16.msra.mxu0 %v3418
        %3441 = vmatprep.subr.bf16.mxu0 0
        %3442 = vmatpush1.bf16.msra.mxu0 %v3417
        %3443 = vmatprep.subr.bf16.mxu0 0
        %3444 = vmatpush1.bf16.msra.mxu0 %v3416
        %3445 = vmatprep.subr.bf16.mxu0 0
        %3446 = vmatpush1.bf16.msra.mxu0 %v3415
        %3447 = vmatprep.subr.bf16.mxu0 0
        %3448 = vmatpush2.bf16.msra.mxu0 0
        %3449 = vmatprep.subr.bf16.mxu0 0
        %3450 = vmatpush2.bf16.msra.mxu0 0
        %3451 = vmatprep.subr.bf16.mxu0 0
        %3452 = vmatpush2.bf16.msra.mxu0 0
        %3453 = vmatprep.subr.bf16.mxu0 0
        %3454 = vmatpush2.bf16.msra.mxu0 0
        %3455 = vmatprep.subr.bf16.mxu0 0
        %3456 = vmatpush2.bf16.msra.mxu0 0
        %3457 = vmatprep.subr.bf16.mxu0 0
        %3458 = vmatpush2.bf16.msra.mxu0 0
        %3459 = vmatprep.subr.bf16.mxu0 0
        %3460 = vmatpush2.bf16.msra.mxu0 0
        %3461 = vmatprep.subr.bf16.mxu0 0
        %3462 = vmatpush2.bf16.msra.mxu0 0
        %3463 = vmatprep.mubr.bf16.mxu0 0
        %3464 = vmatmul.mubr.bf16.gmra.mxu0 %v3357
        %v3465 = vpop.f32.mrf.mxu0
        %v3466 = vadd.f32 %v3381, %v3465
        %v3467 = vpop.f32.mrf.mxu0
        %v3468 = vpop.f32.mrf.mxu0
        %v3469 = vpop.f32.mrf.mxu0
        %3470 = vdwg.mxu0
        %v3471 = vunpack.c.l.bf16 %v3279
        %v3472 = vadd.f32 %v3471, %v3466
        %s3473 = scalar_lea.vmem %s14, 1
        %v3474 = vld [vmem:[%s3473] sm:$0x1]
        %s3475 = scalar_lea.vmem %s15, 1
        %v3476 = vld [vmem:[%s3475] sm:$0x1]
        %v3477 = vsel %vm643, %v3472, 0.0
        %3478 = vadd.xlane.f32.xlu0 %v3477
        %v3479 = vpop.xlane.xlu0 %3478
        %v3480 = vmul.f32 %v3479, %v647
        %v3481 = vsub.f32 %v3472, %v3480
        %v3482 = vmul.f32 %v3481, %v3481
        %v3483 = vsel %vm643, %v3482, 0.0
        %3484 = vadd.xlane.f32.xlu0 %v3483
        %v3485 = vpop.xlane.xlu0 %3484
        %v3486 = vmul.f32 %v3485, %v647
        %v3487 = vadd.f32 %v3486, 1e-12
        %v3488 = vrsqrt.pop %v3487
        %v3489 = vmul.f32 %v3481, %v3488
        %v3491 = vlaneseq
        %v3492 = vshrl.u32 %v3491, 7
        %v3493 = vsub.s32 0, %v3492
        %v3494 = vrot.slane %v3474, %v3493
        %v3496 = vmul.f32 %v3489, %v3494
        %v3498 = vlaneseq
        %v3499 = vshrl.u32 %v3498, 7
        %v3500 = vsub.s32 0, %v3499
        %v3501 = vrot.slane %v3476, %v3500
        %v3503 = vadd.f32 %v3496, %v3501
        %v3504 = vpack.c.bf16 %v3503, %v3503
        %v3505 = vld [vmem:[%s16] sm:$0xf]
        %v3506 = vld [vmem:[%s16 + $0x4] sm:$0xf]
        %v3507 = vld [vmem:[%s16 + $0x8] sm:$0xf]
        %v3508 = vld [vmem:[%s16 + $0xc] sm:$0xf]
        %v3509 = vld [vmem:[%s17] sm:$0x1]
        %v3514 = vunpack.c.l.b16 %v3505
        %v3515 = vunpack.c.l.b16 %v3506
        %v3516 = vunpack.c.l.b16 %v3507
        %v3517 = vunpack.c.l.b16 %v3508
        %v3518 = vpack.c.b16 %v3515, %v3514
        %v3519 = vpack.c.b16 %v3517, %v3516
        %v3523 = vsel %vm643, %v3504, 0
        %3525 = vmatprep.subr.bf16.mxu0 0
        %3526 = vmatpush1.bf16.msra.mxu0 0
        %3527 = vmatprep.subr.bf16.mxu0 0
        %3528 = vmatpush1.bf16.msra.mxu0 0
        %3529 = vmatprep.subr.bf16.mxu0 0
        %3530 = vmatpush1.bf16.msra.mxu0 0
        %3531 = vmatprep.subr.bf16.mxu0 0
        %3532 = vmatpush1.bf16.msra.mxu0 0
        %3533 = vmatprep.subr.bf16.mxu0 0
        %3534 = vmatpush1.bf16.msra.mxu0 0
        %3535 = vmatprep.subr.bf16.mxu0 0
        %3536 = vmatpush1.bf16.msra.mxu0 0
        %3537 = vmatprep.subr.bf16.mxu0 0
        %3538 = vmatpush1.bf16.msra.mxu0 %v3519
        %3539 = vmatprep.subr.bf16.mxu0 0
        %3540 = vmatpush1.bf16.msra.mxu0 %v3518
        %3541 = vmatprep.subr.bf16.mxu0 0
        %3542 = vmatpush2.bf16.msra.mxu0 0
        %3543 = vmatprep.subr.bf16.mxu0 0
        %3544 = vmatpush2.bf16.msra.mxu0 0
        %3545 = vmatprep.subr.bf16.mxu0 0
        %3546 = vmatpush2.bf16.msra.mxu0 0
        %3547 = vmatprep.subr.bf16.mxu0 0
        %3548 = vmatpush2.bf16.msra.mxu0 0
        %3549 = vmatprep.subr.bf16.mxu0 0
        %3550 = vmatpush2.bf16.msra.mxu0 0
        %3551 = vmatprep.subr.bf16.mxu0 0
        %3552 = vmatpush2.bf16.msra.mxu0 0
        %3553 = vmatprep.subr.bf16.mxu0 0
        %3554 = vmatpush2.bf16.msra.mxu0 0
        %3555 = vmatprep.subr.bf16.mxu0 0
        %3556 = vmatpush2.bf16.msra.mxu0 0
        %3557 = vmatprep.mubr.bf16.mxu0 0
        %3558 = vmatmul.mubr.bf16.gmra.mxu0 %v3523
        %v3559 = vpop.f32.mrf.mxu0
        %v3560 = vadd.f32 %v3509, %v3559
        %v3561 = vpop.f32.mrf.mxu0
        %v3562 = vpop.f32.mrf.mxu0
        %v3563 = vpop.f32.mrf.mxu0
        %3564 = vdwg.mxu0
        %v3565 = vtanh.pop %v3560
        %v3566 = vpack.c.bf16 %v3565, %v3565
        %v3567 = vld [vmem:[%s18] sm:$0xf]
        %v3568 = vld [vmem:[%s18 + $0x4] sm:$0xf]
        %v3569 = vld [vmem:[%s18 + $0x8] sm:$0xf]
        %v3570 = vld [vmem:[%s18 + $0xc] sm:$0xf]
        %v3571 = vld [vmem:[%s19] sm:$0x1]
        %v3576 = vunpack.c.l.b16 %v3567
        %v3577 = vunpack.c.l.b16 %v3568
        %v3578 = vunpack.c.l.b16 %v3569
        %v3579 = vunpack.c.l.b16 %v3570
        %v3580 = vpack.c.b16 %v3577, %v3576
        %v3581 = vpack.c.b16 %v3579, %v3578
        %v3585 = vsel %vm643, %v3566, 0
        %3587 = vmatprep.subr.bf16.mxu0 0
        %3588 = vmatpush1.bf16.msra.mxu0 0
        %3589 = vmatprep.subr.bf16.mxu0 0
        %3590 = vmatpush1.bf16.msra.mxu0 0
        %3591 = vmatprep.subr.bf16.mxu0 0
        %3592 = vmatpush1.bf16.msra.mxu0 0
        %3593 = vmatprep.subr.bf16.mxu0 0
        %3594 = vmatpush1.bf16.msra.mxu0 0
        %3595 = vmatprep.subr.bf16.mxu0 0
        %3596 = vmatpush1.bf16.msra.mxu0 0
        %3597 = vmatprep.subr.bf16.mxu0 0
        %3598 = vmatpush1.bf16.msra.mxu0 0
        %3599 = vmatprep.subr.bf16.mxu0 0
        %3600 = vmatpush1.bf16.msra.mxu0 %v3581
        %3601 = vmatprep.subr.bf16.mxu0 0
        %3602 = vmatpush1.bf16.msra.mxu0 %v3580
        %3603 = vmatprep.subr.bf16.mxu0 0
        %3604 = vmatpush2.bf16.msra.mxu0 0
        %3605 = vmatprep.subr.bf16.mxu0 0
        %3606 = vmatpush2.bf16.msra.mxu0 0
        %3607 = vmatprep.subr.bf16.mxu0 0
        %3608 = vmatpush2.bf16.msra.mxu0 0
        %3609 = vmatprep.subr.bf16.mxu0 0
        %3610 = vmatpush2.bf16.msra.mxu0 0
        %3611 = vmatprep.subr.bf16.mxu0 0
        %3612 = vmatpush2.bf16.msra.mxu0 0
        %3613 = vmatprep.subr.bf16.mxu0 0
        %3614 = vmatpush2.bf16.msra.mxu0 0
        %3615 = vmatprep.subr.bf16.mxu0 0
        %3616 = vmatpush2.bf16.msra.mxu0 0
        %3617 = vmatprep.subr.bf16.mxu0 0
        %3618 = vmatpush2.bf16.msra.mxu0 0
        %3619 = vmatprep.mubr.bf16.mxu0 0
        %3620 = vmatmul.mubr.bf16.gmra.mxu0 %v3585
        %v3621 = vpop.f32.mrf.mxu0
        %v3622 = vadd.f32 %v3571, %v3621
        %v3623 = vpop.f32.mrf.mxu0
        %v3624 = vpop.f32.mrf.mxu0
        %v3625 = vpop.f32.mrf.mxu0
        %3626 = vdwg.mxu0
        %vm3627 = vcmask 8192
        %v3628 = vsel %vm3627, %v3622, -inf
        %3629 = vmax.xlane.f32.xlu0 %v3628
        %v3630 = vpop.xlane.xlu0 %3629
        %v3631 = vsub.f32 %v3622, %v3630
        %v3632 = vmul.f32 %v3631, 1.442695
        %v3633 = vpow.pop %v3632
        %v3634 = vsel %vm3627, %v3633, 0.0
        %3635 = vadd.xlane.f32.xlu0 %v3634
        %v3636 = vpop.xlane.xlu0 %3635
        %v3637 = vrcp.pop %v3636
        %v3638 = vmul.f32 %v3633, %v3637
        %3639 = vst.msk [vmem:[%s630] sm:$0x1] %vm3627, %v3638
        %s3640 = sand.u32 %s472, 1
        %s3641 = scalar_lea.sflag [#allocation3], %s3640
        %s3642 = sand.u32 %s472, 1
        %s3643 = scalar_lea.vmem [#allocation2], %s3642
        // Predicated region
        $region101: #{tpu_custom_call.1} parent=99 // pred_check
          %p3644 = pneg %p482
        $region102: #{tpu_custom_call.1} parent=99 // pred_check_branch
          %3646 = sbr.rel (%p3644) target = $region104
        $region103: #{tpu_custom_call.1} parent=99 // pred_region
          %s3648 = ssub.s32 16, 16
          %3649 = vsyncadd %s3641, %s3648
          %s3650 = smul.addr %s34, 16
          %s3651 = scalar_lea.hbm %s20, %s3650
          %s3653 = sshll.u32 %s3643, 4
          %s3654 = int_to_ptr.vmem [resolvable:$true] %s3653
          %3656 = dma.vmem_to_hbm [thread:$0]  %s3654, 16, %s3651, %s3641
        $region104: #{tpu_custom_call.1} parent=99 // pred_fallthru
          _
      $region100: #{tpu_custom_call.1} parent=5 // pred_fallthru
        _
      %p3657 = scmp.le.s32.totalorder 2, %s29
      // Predicated region
      $region105: #{tpu_custom_call.1} parent=5 // pred_check
        %p3658 = pneg %p3657
      $region106: #{tpu_custom_call.1} parent=5 // pred_check_branch
        %3660 = sbr.rel (%p3658) target = $region108
      $region107: #{tpu_custom_call.1} parent=5 // pred_region
        %s3661 = ssub.s32 %s29, 2
        // Predicated region
        $region109: #{tpu_custom_call.1} parent=107 // pred_check
          %p3662 = pneg %p488
        $region110: #{tpu_custom_call.1} parent=107 // pred_check_branch
          %3664 = sbr.rel (%p3662) target = $region112
        $region111: #{tpu_custom_call.1} parent=107 // pred_region
          %s3665 = sand.u32 %s473, 1
          %s3666 = scalar_lea.sflag [#allocation3], %s3665
          %s3667 = sand.u32 %s473, 1
          %s3668 = scalar_lea.vmem [#allocation2], %s3667
          %3669 = dma.done %s3666, 16
        $region112: #{tpu_custom_call.1} parent=107 // pred_fallthru
          _
      $region108: #{tpu_custom_call.1} parent=5 // pred_fallthru
        _
    $region6: #{tpu_custom_call.1} parent=1 // loop_footer
      %s33 = sadd.s32 1, %s29
    $region7: #{tpu_custom_call.1} parent=1 // loop_footer_branch
      %28 = sbr.rel target = $region3
    $region8: #{tpu_custom_call.1} parent=1 // loop_exit
      _
    %3670 = vsyncpa [#allocation3], 1
    %s3671 = scalar_lea.sflag [#allocation3], 1
    %3672 = vsyncpa %s3671, 1

</llo_original>
